<compile_context>
chip_gen: v6e
topology: v6e:2x2x1
jax: 0.10.0
libtpu: 0.0.40
codegen_flags: <defaults>
</compile_context>

<pallas_src>
import jax
import jax.numpy as jnp
from jax.experimental import pallas as pl
from jax.experimental.pallas import tpu as pltpu


# ----------------------------------------------------------------------------
# Forward-pass kernel (one batch tile per grid step; all weights resident).
# ----------------------------------------------------------------------------
def _vae_fwd_kernel(x_ref, eps_ref,
                    w1, b1, w2, b2, w3, b3, wm, bm, wv, bv,
                    wd1, bd1, wd2, bd2, wd3, bd3, wd4, bd4,
                    out_ref, mean_ref, logvar_ref):
    f32 = jnp.float32
    x = x_ref[...].astype(f32)

    # --- encoder ---
    h = jnp.maximum(jnp.dot(x, w1[...], preferred_element_type=f32) + b1[...], 0.0)
    h = jnp.maximum(jnp.dot(h, w2[...], preferred_element_type=f32) + b2[...], 0.0)
    h = jnp.maximum(jnp.dot(h, w3[...], preferred_element_type=f32) + b3[...], 0.0)

    # --- latent heads ---
    mu = jnp.dot(h, wm[...], preferred_element_type=f32) + bm[...]
    lv = jnp.dot(h, wv[...], preferred_element_type=f32) + bv[...]

    # --- reparameterization: sigma = sqrt(exp(logvar)), z = mu + eps * sigma ---
    sigma = jnp.sqrt(jnp.exp(lv))
    z = mu + eps_ref[...].astype(f32) * sigma

    # --- decoder ---
    d = jnp.maximum(jnp.dot(z, wd1[...], preferred_element_type=f32) + bd1[...], 0.0)
    d = jnp.maximum(jnp.dot(d, wd2[...], preferred_element_type=f32) + bd2[...], 0.0)
    d = jnp.maximum(jnp.dot(d, wd3[...], preferred_element_type=f32) + bd3[...], 0.0)
    logits = jnp.dot(d, wd4[...], preferred_element_type=f32) + bd4[...]
    out = 1.0 / (1.0 + jnp.exp(-logits))          # sigmoid (explicit for Mosaic)

    out_ref[...] = out.astype(out_ref.dtype)
    mean_ref[...] = mu.astype(mean_ref.dtype)
    logvar_ref[...] = lv.astype(logvar_ref.dtype)


def vae_forward(x, eps, params, *, tb=8):
    """Pallas VAE forward: returns (output, mean, logvar), batch-tiled by `tb`."""
    B, D_in = x.shape
    D_lat = eps.shape[1]
    assert eps.shape[0] == B
    assert B % tb == 0 and tb % 8 == 0, "batch tile must divide B and be a multiple of 8"
    # NOTE on tile sizing: tb=8 is for the small demo.  For real batches pick the
    # largest tb whose double-buffered (tb, 784) blocks + resident weights fit the
    # scoped VMEM limit (~32 MiB default; only ~64 MiB physical/TC on v7x).

    grid = (B // tb,)

    def batch_spec(d):
        return pl.BlockSpec((tb, d), lambda i: (i, 0))

    def resident_spec(a):
        # Constant block index -> fetched once, stays in VMEM for the whole grid.
        return pl.BlockSpec(a.shape, lambda i: (0, 0))

    in_specs = [batch_spec(D_in), batch_spec(D_lat)] + [resident_spec(p) for p in params]
    out_specs = [batch_spec(D_in), batch_spec(D_lat), batch_spec(D_lat)]
    out_shapes = (
        jax.ShapeDtypeStruct((B, D_in), jnp.float32),
        jax.ShapeDtypeStruct((B, D_lat), jnp.float32),
        jax.ShapeDtypeStruct((B, D_lat), jnp.float32),
    )

    return pl.pallas_call(
        _vae_fwd_kernel,
        out_shape=out_shapes,
        grid_spec=pltpu.PrefetchScalarGridSpec(
            num_scalar_prefetch=0,
            grid=grid,
            in_specs=in_specs,
            out_specs=out_specs,
        ),
        compiler_params=pltpu.CompilerParams(
            # Batch axis is independent -> megacore-shardable (v7x: 2 TCs).
            dimension_semantics=("parallel",),
        ),
    )(x, eps, *params)


# ----------------------------------------------------------------------------
# VAE loss kernel: BCE(reduction='sum') + KL divergence, batch-tiled reduction.
# ----------------------------------------------------------------------------
def _vae_loss_kernel(x_ref, y_ref, mu_ref, lv_ref, loss_ref, bce_acc, kld_acc):
    pid = pl.program_id(0)

    @pl.when(pid == 0)
    def _():
        bce_acc[...] = jnp.zeros_like(bce_acc)
        kld_acc[...] = jnp.zeros_like(kld_acc)

    # --- BCE partial (elementwise only in the hot loop; VPU + EUP) ---
    x = x_ref[...].astype(jnp.float32)       # target ("input" in PyTorch)
    y = y_ref[...].astype(jnp.float32)       # prediction ("output")
    log_y = jnp.maximum(jnp.log(y), -100.0)          # PyTorch's -100 clamp
    log_1my = jnp.maximum(jnp.log(1.0 - y), -100.0)
    # x*log_y + (1-x)*log_1my  ==  log_1my + x*(log_y - log_1my)   (fewer VPU ops)
    bce_acc[...] += log_1my + x * (log_y - log_1my)

    # --- KL partial ---
    mu = mu_ref[...].astype(jnp.float32)
    lv = lv_ref[...].astype(jnp.float32)
    kld_acc[...] += jnp.exp(lv) + mu * mu - lv - 1.0

    # --- single global reduce + scalar store on the last step only ---
    @pl.when(pid == pl.num_programs(0) - 1)
    def _():
        loss_ref[0, 0] = -jnp.sum(bce_acc[...]) + 0.5 * jnp.sum(kld_acc[...])


def vae_loss(inp, out, mean_vec, logvar_vec, *, tb=8):
    """Total VAE loss (scalar): BCE-sum(out, inp) + 0.5*sum(exp(lv)+mu^2-lv-1)."""
    B, D = inp.shape
    L = mean_vec.shape[1]
    assert inp.shape == out.shape and mean_vec.shape == logvar_vec.shape
    assert B % tb == 0 and tb % 8 == 0  # TODO(synk): mask the tail tile for ragged B

    loss = pl.pallas_call(
        _vae_loss_kernel,
        out_shape=jax.ShapeDtypeStruct((1, 1), jnp.float32),
        grid_spec=pltpu.PrefetchScalarGridSpec(
            num_scalar_prefetch=0,
            grid=(B // tb,),
            in_specs=[
                pl.BlockSpec((tb, D), lambda i: (i, 0)),
                pl.BlockSpec((tb, D), lambda i: (i, 0)),
                pl.BlockSpec((tb, L), lambda i: (i, 0)),
                pl.BlockSpec((tb, L), lambda i: (i, 0)),
            ],
            out_specs=pl.BlockSpec((1, 1), lambda i: (0, 0),
                                   memory_space=pltpu.SMEM),
            scratch_shapes=[
                pltpu.VMEM((tb, D), jnp.float32),   # BCE elementwise accumulator
                pltpu.VMEM((tb, L), jnp.float32),   # KLD elementwise accumulator
            ],
        ),
        compiler_params=pltpu.CompilerParams(
            dimension_semantics=("arbitrary",),     # reduction over batch tiles
        ),
    )(inp, out, mean_vec, logvar_vec)
    return loss[0, 0]


# ----------------------------------------------------------------------------
# Pure-JAX references.
# ----------------------------------------------------------------------------
def vae_forward_ref(x, eps, params):
    (w1, b1, w2, b2, w3, b3, wm, bm, wv, bv,
     wd1, bd1, wd2, bd2, wd3, bd3, wd4, bd4) = params
    hp = jax.lax.Precision.HIGHEST
    h = jax.nn.relu(jnp.dot(x, w1, precision=hp) + b1)
    h = jax.nn.relu(jnp.dot(h, w2, precision=hp) + b2)
    h = jax.nn.relu(jnp.dot(h, w3, precision=hp) + b3)
    mu = jnp.dot(h, wm, precision=hp) + bm
    lv = jnp.dot(h, wv, precision=hp) + bv
    sigma = jnp.sqrt(jnp.exp(lv))
    z = mu + eps * sigma
    d = jax.nn.relu(jnp.dot(z, wd1, precision=hp) + bd1)
    d = jax.nn.relu(jnp.dot(d, wd2, precision=hp) + bd2)
    d = jax.nn.relu(jnp.dot(d, wd3, precision=hp) + bd3)
    out = jax.nn.sigmoid(jnp.dot(d, wd4, precision=hp) + bd4)
    return out, mu, lv


def vae_loss_ref(inp, out, mean_vec, logvar_vec):
    log_y = jnp.maximum(jnp.log(out), -100.0)
    log_1my = jnp.maximum(jnp.log(1.0 - out), -100.0)
    bce = -jnp.sum(inp * log_y + (1.0 - inp) * log_1my)
    kld = 0.5 * jnp.sum(jnp.exp(logvar_vec) + mean_vec ** 2 - (logvar_vec + 1.0))
    return bce + kld


# ----------------------------------------------------------------------------
# Demo / self-check.
# ----------------------------------------------------------------------------
if __name__ == "__main__":
    key = jax.random.PRNGKey(0)
    keys = jax.random.split(key, 12)

    B, TB = 16, 8
    D_IN, H1, H2, H3, D_LAT = 28 * 28, 400, 200, 100, 20

    def init_linear(k, fan_in, fan_out):
        kw, kb = jax.random.split(k)
        lim = 1.0 / jnp.sqrt(jnp.float32(fan_in))
        w = jax.random.uniform(kw, (fan_in, fan_out), jnp.float32, -lim, lim)
        b = jax.random.uniform(kb, (1, fan_out), jnp.float32, -lim, lim)
        return w, b

    w1, b1 = init_linear(keys[0], D_IN, H1)
    w2, b2 = init_linear(keys[1], H1, H2)
    w3, b3 = init_linear(keys[2], H2, H3)
    wm, bm = init_linear(keys[3], H3, D_LAT)
    wv, bv = init_linear(keys[4], H3, D_LAT)
    wd1, bd1 = init_linear(keys[5], D_LAT, H3)
    wd2, bd2 = init_linear(keys[6], H3, H2)
    wd3, bd3 = init_linear(keys[7], H2, H1)
    wd4, bd4 = init_linear(keys[8], H1, D_IN)
    params = (w1, b1, w2, b2, w3, b3, wm, bm, wv, bv,
              wd1, bd1, wd2, bd2, wd3, bd3, wd4, bd4)

    # Flattened "image" in (0,1) and reparameterization noise.
    x = jax.nn.sigmoid(jax.random.normal(keys[9], (B, D_IN), jnp.float32))
    eps = jax.random.normal(keys[10], (B, D_LAT), jnp.float32)

    # --- forward pass (Pallas) vs reference ---
    out, mu, lv = vae_forward(x, eps, params, tb=TB)
    jax.block_until_ready((out, mu, lv))

    out_r, mu_r, lv_r = vae_forward_ref(x, eps, params)
    assert jnp.allclose(out, out_r, rtol=2e-2, atol=2e-2), "output mismatch"
    assert jnp.allclose(mu, mu_r, rtol=2e-2, atol=2e-2), "mean mismatch"
    assert jnp.allclose(lv, lv_r, rtol=2e-2, atol=2e-2), "logvar mismatch"

    # --- companion VAE loss (Pallas, batch-tiled reduction) vs reference ---
    loss = vae_loss(x, out, mu, lv, tb=TB)
    jax.block_until_ready(loss)
    loss_r = vae_loss_ref(x, out, mu, lv)
    assert jnp.allclose(loss, loss_r, rtol=1e-5, atol=1e-2), (loss, loss_r)

    print("KERNEL_OK")
</pallas_src>

<mosaic_0001>
module attributes {stable_mosaic.version = 11 : i64} {
  func.func @_vae_fwd_kernel(%arg0: i32, %arg1: memref<8x784xf32, #tpu.memory_space<vmem>>, %arg2: memref<8x20xf32, #tpu.memory_space<vmem>>, %arg3: memref<784x400xf32, #tpu.memory_space<vmem>>, %arg4: memref<1x400xf32, #tpu.memory_space<vmem>>, %arg5: memref<400x200xf32, #tpu.memory_space<vmem>>, %arg6: memref<1x200xf32, #tpu.memory_space<vmem>>, %arg7: memref<200x100xf32, #tpu.memory_space<vmem>>, %arg8: memref<1x100xf32, #tpu.memory_space<vmem>>, %arg9: memref<100x20xf32, #tpu.memory_space<vmem>>, %arg10: memref<1x20xf32, #tpu.memory_space<vmem>>, %arg11: memref<100x20xf32, #tpu.memory_space<vmem>>, %arg12: memref<1x20xf32, #tpu.memory_space<vmem>>, %arg13: memref<20x100xf32, #tpu.memory_space<vmem>>, %arg14: memref<1x100xf32, #tpu.memory_space<vmem>>, %arg15: memref<100x200xf32, #tpu.memory_space<vmem>>, %arg16: memref<1x200xf32, #tpu.memory_space<vmem>>, %arg17: memref<200x400xf32, #tpu.memory_space<vmem>>, %arg18: memref<1x400xf32, #tpu.memory_space<vmem>>, %arg19: memref<400x784xf32, #tpu.memory_space<vmem>>, %arg20: memref<1x784xf32, #tpu.memory_space<vmem>>, %arg21: memref<8x784xf32, #tpu.memory_space<vmem>>, %arg22: memref<8x20xf32, #tpu.memory_space<vmem>>, %arg23: memref<8x20xf32, #tpu.memory_space<vmem>>) attributes {dimension_semantics = [#tpu.dimension_semantics<parallel>], iteration_bounds = array<i64: 2>, scalar_prefetch = 0 : i64, scratch_operands = 0 : i64, tpu.core_type = #tpu.core_type<tc>, window_params = [{transform_indices = @transform_0, window_bounds = array<i64: 8, 784>}, {transform_indices = @transform_1, window_bounds = array<i64: 8, 20>}, {pipeline_mode = #tpu.pipeline_mode<synchronous>, transform_indices = @transform_2, window_bounds = array<i64: 784, 400>}, {pipeline_mode = #tpu.pipeline_mode<synchronous>, transform_indices = @transform_3, window_bounds = array<i64: 1, 400>}, {pipeline_mode = #tpu.pipeline_mode<synchronous>, transform_indices = @transform_4, window_bounds = array<i64: 400, 200>}, {pipeline_mode = #tpu.pipeline_mode<synchronous>, transform_indices = @transform_5, window_bounds = array<i64: 1, 200>}, {pipeline_mode = #tpu.pipeline_mode<synchronous>, transform_indices = @transform_6, window_bounds = array<i64: 200, 100>}, {pipeline_mode = #tpu.pipeline_mode<synchronous>, transform_indices = @transform_7, window_bounds = array<i64: 1, 100>}, {pipeline_mode = #tpu.pipeline_mode<synchronous>, transform_indices = @transform_8, window_bounds = array<i64: 100, 20>}, {pipeline_mode = #tpu.pipeline_mode<synchronous>, transform_indices = @transform_9, window_bounds = array<i64: 1, 20>}, {pipeline_mode = #tpu.pipeline_mode<synchronous>, transform_indices = @transform_10, window_bounds = array<i64: 100, 20>}, {pipeline_mode = #tpu.pipeline_mode<synchronous>, transform_indices = @transform_11, window_bounds = array<i64: 1, 20>}, {pipeline_mode = #tpu.pipeline_mode<synchronous>, transform_indices = @transform_12, window_bounds = array<i64: 20, 100>}, {pipeline_mode = #tpu.pipeline_mode<synchronous>, transform_indices = @transform_13, window_bounds = array<i64: 1, 100>}, {pipeline_mode = #tpu.pipeline_mode<synchronous>, transform_indices = @transform_14, window_bounds = array<i64: 100, 200>}, {pipeline_mode = #tpu.pipeline_mode<synchronous>, transform_indices = @transform_15, window_bounds = array<i64: 1, 200>}, {pipeline_mode = #tpu.pipeline_mode<synchronous>, transform_indices = @transform_16, window_bounds = array<i64: 200, 400>}, {pipeline_mode = #tpu.pipeline_mode<synchronous>, transform_indices = @transform_17, window_bounds = array<i64: 1, 400>}, {pipeline_mode = #tpu.pipeline_mode<synchronous>, transform_indices = @transform_18, window_bounds = array<i64: 400, 784>}, {pipeline_mode = #tpu.pipeline_mode<synchronous>, transform_indices = @transform_19, window_bounds = array<i64: 1, 784>}, {transform_indices = @transform_20, window_bounds = array<i64: 8, 784>}, {transform_indices = @transform_21, window_bounds = array<i64: 8, 20>}, {transform_indices = @transform_22, window_bounds = array<i64: 8, 20>}]} {
    %c0 = arith.constant 0 : index
    %c0_0 = arith.constant 0 : index
    %0 = vector.load %arg1[%c0, %c0_0] : memref<8x784xf32, #tpu.memory_space<vmem>>, vector<8x784xf32>
    %c0_1 = arith.constant 0 : index
    %c0_2 = arith.constant 0 : index
    %1 = vector.load %arg3[%c0_1, %c0_2] : memref<784x400xf32, #tpu.memory_space<vmem>>, vector<784x400xf32>
    %cst = arith.constant dense<0.000000e+00> : vector<8x400xf32>
    %2 = tpu.matmul %0, %1, %cst {dimension_numbers = #tpu.dot_dimension_numbers<[1], [0], [0], [1], [0, 0, 1, 1], [], []>} : vector<8x784xf32>, vector<784x400xf32>, vector<8x400xf32> -> vector<8x400xf32>
    %c0_3 = arith.constant 0 : index
    %c0_4 = arith.constant 0 : index
    %3 = vector.load %arg4[%c0_3, %c0_4] : memref<1x400xf32, #tpu.memory_space<vmem>>, vector<1x400xf32>
    %4 = vector.broadcast %3 : vector<1x400xf32> to vector<8x400xf32>
    %5 = arith.addf %2, %4 : vector<8x400xf32>
    %cst_5 = arith.constant 0.000000e+00 : f32
    %6 = vector.broadcast %cst_5 : f32 to vector<8x400xf32>
    %7 = arith.maximumf %5, %6 : vector<8x400xf32>
    %c0_6 = arith.constant 0 : index
    %c0_7 = arith.constant 0 : index
    %8 = vector.load %arg5[%c0_6, %c0_7] : memref<400x200xf32, #tpu.memory_space<vmem>>, vector<400x200xf32>
    %cst_8 = arith.constant dense<0.000000e+00> : vector<8x200xf32>
    %9 = tpu.matmul %7, %8, %cst_8 {dimension_numbers = #tpu.dot_dimension_numbers<[1], [0], [0], [1], [0, 0, 1, 1], [], []>} : vector<8x400xf32>, vector<400x200xf32>, vector<8x200xf32> -> vector<8x200xf32>
    %c0_9 = arith.constant 0 : index
    %c0_10 = arith.constant 0 : index
    %10 = vector.load %arg6[%c0_9, %c0_10] : memref<1x200xf32, #tpu.memory_space<vmem>>, vector<1x200xf32>
    %11 = vector.broadcast %10 : vector<1x200xf32> to vector<8x200xf32>
    %12 = arith.addf %9, %11 : vector<8x200xf32>
    %cst_11 = arith.constant 0.000000e+00 : f32
    %13 = vector.broadcast %cst_11 : f32 to vector<8x200xf32>
    %14 = arith.maximumf %12, %13 : vector<8x200xf32>
    %c0_12 = arith.constant 0 : index
    %c0_13 = arith.constant 0 : index
    %15 = vector.load %arg7[%c0_12, %c0_13] : memref<200x100xf32, #tpu.memory_space<vmem>>, vector<200x100xf32>
    %cst_14 = arith.constant dense<0.000000e+00> : vector<8x100xf32>
    %16 = tpu.matmul %14, %15, %cst_14 {dimension_numbers = #tpu.dot_dimension_numbers<[1], [0], [0], [1], [0, 0, 1, 1], [], []>} : vector<8x200xf32>, vector<200x100xf32>, vector<8x100xf32> -> vector<8x100xf32>
    %c0_15 = arith.constant 0 : index
    %c0_16 = arith.constant 0 : index
    %17 = vector.load %arg8[%c0_15, %c0_16] : memref<1x100xf32, #tpu.memory_space<vmem>>, vector<1x100xf32>
    %18 = vector.broadcast %17 : vector<1x100xf32> to vector<8x100xf32>
    %19 = arith.addf %16, %18 : vector<8x100xf32>
    %cst_17 = arith.constant 0.000000e+00 : f32
    %20 = vector.broadcast %cst_17 : f32 to vector<8x100xf32>
    %21 = arith.maximumf %19, %20 : vector<8x100xf32>
    %c0_18 = arith.constant 0 : index
    %c0_19 = arith.constant 0 : index
    %22 = vector.load %arg9[%c0_18, %c0_19] : memref<100x20xf32, #tpu.memory_space<vmem>>, vector<100x20xf32>
    %cst_20 = arith.constant dense<0.000000e+00> : vector<8x20xf32>
    %23 = tpu.matmul %21, %22, %cst_20 {dimension_numbers = #tpu.dot_dimension_numbers<[1], [0], [0], [1], [0, 0, 1, 1], [], []>} : vector<8x100xf32>, vector<100x20xf32>, vector<8x20xf32> -> vector<8x20xf32>
    %c0_21 = arith.constant 0 : index
    %c0_22 = arith.constant 0 : index
    %24 = vector.load %arg10[%c0_21, %c0_22] : memref<1x20xf32, #tpu.memory_space<vmem>>, vector<1x20xf32>
    %25 = vector.broadcast %24 : vector<1x20xf32> to vector<8x20xf32>
    %26 = arith.addf %23, %25 : vector<8x20xf32>
    %c0_23 = arith.constant 0 : index
    %c0_24 = arith.constant 0 : index
    %27 = vector.load %arg11[%c0_23, %c0_24] : memref<100x20xf32, #tpu.memory_space<vmem>>, vector<100x20xf32>
    %cst_25 = arith.constant dense<0.000000e+00> : vector<8x20xf32>
    %28 = tpu.matmul %21, %27, %cst_25 {dimension_numbers = #tpu.dot_dimension_numbers<[1], [0], [0], [1], [0, 0, 1, 1], [], []>} : vector<8x100xf32>, vector<100x20xf32>, vector<8x20xf32> -> vector<8x20xf32>
    %c0_26 = arith.constant 0 : index
    %c0_27 = arith.constant 0 : index
    %29 = vector.load %arg12[%c0_26, %c0_27] : memref<1x20xf32, #tpu.memory_space<vmem>>, vector<1x20xf32>
    %30 = vector.broadcast %29 : vector<1x20xf32> to vector<8x20xf32>
    %31 = arith.addf %28, %30 : vector<8x20xf32>
    %32 = math.exp %31 : vector<8x20xf32>
    %33 = math.sqrt %32 : vector<8x20xf32>
    %c0_28 = arith.constant 0 : index
    %c0_29 = arith.constant 0 : index
    %34 = vector.load %arg2[%c0_28, %c0_29] : memref<8x20xf32, #tpu.memory_space<vmem>>, vector<8x20xf32>
    %35 = arith.mulf %34, %33 : vector<8x20xf32>
    %36 = arith.addf %26, %35 : vector<8x20xf32>
    %c0_30 = arith.constant 0 : index
    %c0_31 = arith.constant 0 : index
    %37 = vector.load %arg13[%c0_30, %c0_31] : memref<20x100xf32, #tpu.memory_space<vmem>>, vector<20x100xf32>
    %cst_32 = arith.constant dense<0.000000e+00> : vector<8x100xf32>
    %38 = tpu.matmul %36, %37, %cst_32 {dimension_numbers = #tpu.dot_dimension_numbers<[1], [0], [0], [1], [0, 0, 1, 1], [], []>} : vector<8x20xf32>, vector<20x100xf32>, vector<8x100xf32> -> vector<8x100xf32>
    %c0_33 = arith.constant 0 : index
    %c0_34 = arith.constant 0 : index
    %39 = vector.load %arg14[%c0_33, %c0_34] : memref<1x100xf32, #tpu.memory_space<vmem>>, vector<1x100xf32>
    %40 = vector.broadcast %39 : vector<1x100xf32> to vector<8x100xf32>
    %41 = arith.addf %38, %40 : vector<8x100xf32>
    %cst_35 = arith.constant 0.000000e+00 : f32
    %42 = vector.broadcast %cst_35 : f32 to vector<8x100xf32>
    %43 = arith.maximumf %41, %42 : vector<8x100xf32>
    %c0_36 = arith.constant 0 : index
    %c0_37 = arith.constant 0 : index
    %44 = vector.load %arg15[%c0_36, %c0_37] : memref<100x200xf32, #tpu.memory_space<vmem>>, vector<100x200xf32>
    %cst_38 = arith.constant dense<0.000000e+00> : vector<8x200xf32>
    %45 = tpu.matmul %43, %44, %cst_38 {dimension_numbers = #tpu.dot_dimension_numbers<[1], [0], [0], [1], [0, 0, 1, 1], [], []>} : vector<8x100xf32>, vector<100x200xf32>, vector<8x200xf32> -> vector<8x200xf32>
    %c0_39 = arith.constant 0 : index
    %c0_40 = arith.constant 0 : index
    %46 = vector.load %arg16[%c0_39, %c0_40] : memref<1x200xf32, #tpu.memory_space<vmem>>, vector<1x200xf32>
    %47 = vector.broadcast %46 : vector<1x200xf32> to vector<8x200xf32>
    %48 = arith.addf %45, %47 : vector<8x200xf32>
    %cst_41 = arith.constant 0.000000e+00 : f32
    %49 = vector.broadcast %cst_41 : f32 to vector<8x200xf32>
    %50 = arith.maximumf %48, %49 : vector<8x200xf32>
    %c0_42 = arith.constant 0 : index
    %c0_43 = arith.constant 0 : index
    %51 = vector.load %arg17[%c0_42, %c0_43] : memref<200x400xf32, #tpu.memory_space<vmem>>, vector<200x400xf32>
    %cst_44 = arith.constant dense<0.000000e+00> : vector<8x400xf32>
    %52 = tpu.matmul %50, %51, %cst_44 {dimension_numbers = #tpu.dot_dimension_numbers<[1], [0], [0], [1], [0, 0, 1, 1], [], []>} : vector<8x200xf32>, vector<200x400xf32>, vector<8x400xf32> -> vector<8x400xf32>
    %c0_45 = arith.constant 0 : index
    %c0_46 = arith.constant 0 : index
    %53 = vector.load %arg18[%c0_45, %c0_46] : memref<1x400xf32, #tpu.memory_space<vmem>>, vector<1x400xf32>
    %54 = vector.broadcast %53 : vector<1x400xf32> to vector<8x400xf32>
    %55 = arith.addf %52, %54 : vector<8x400xf32>
    %cst_47 = arith.constant 0.000000e+00 : f32
    %56 = vector.broadcast %cst_47 : f32 to vector<8x400xf32>
    %57 = arith.maximumf %55, %56 : vector<8x400xf32>
    %c0_48 = arith.constant 0 : index
    %c0_49 = arith.constant 0 : index
    %58 = vector.load %arg19[%c0_48, %c0_49] : memref<400x784xf32, #tpu.memory_space<vmem>>, vector<400x784xf32>
    %cst_50 = arith.constant dense<0.000000e+00> : vector<8x784xf32>
    %59 = tpu.matmul %57, %58, %cst_50 {dimension_numbers = #tpu.dot_dimension_numbers<[1], [0], [0], [1], [0, 0, 1, 1], [], []>} : vector<8x400xf32>, vector<400x784xf32>, vector<8x784xf32> -> vector<8x784xf32>
    %c0_51 = arith.constant 0 : index
    %c0_52 = arith.constant 0 : index
    %60 = vector.load %arg20[%c0_51, %c0_52] : memref<1x784xf32, #tpu.memory_space<vmem>>, vector<1x784xf32>
    %61 = vector.broadcast %60 : vector<1x784xf32> to vector<8x784xf32>
    %62 = arith.addf %59, %61 : vector<8x784xf32>
    %cst_53 = arith.constant 0.000000e+00 : f32
    %63 = vector.broadcast %cst_53 : f32 to vector<8x784xf32>
    %64 = arith.subf %63, %62 : vector<8x784xf32>
    %65 = math.exp %64 : vector<8x784xf32>
    %cst_54 = arith.constant 1.000000e+00 : f32
    %66 = vector.broadcast %cst_54 : f32 to vector<8x784xf32>
    %67 = arith.addf %66, %65 : vector<8x784xf32>
    %cst_55 = arith.constant 1.000000e+00 : f32
    %68 = vector.broadcast %cst_55 : f32 to vector<8x784xf32>
    %69 = arith.divf %68, %67 : vector<8x784xf32>
    %c0_56 = arith.constant 0 : index
    %c0_57 = arith.constant 0 : index
    %70 = vector.load %arg21[%c0_56, %c0_57] : memref<8x784xf32, #tpu.memory_space<vmem>>, vector<8x784xf32>
    tpu.vector_store %arg21[%c0_56, %c0_57], %69 {strides = array<i32>} : memref<8x784xf32, #tpu.memory_space<vmem>>, vector<8x784xf32>,
    %c0_58 = arith.constant 0 : index
    %c0_59 = arith.constant 0 : index
    %71 = vector.load %arg22[%c0_58, %c0_59] : memref<8x20xf32, #tpu.memory_space<vmem>>, vector<8x20xf32>
    tpu.vector_store %arg22[%c0_58, %c0_59], %26 {strides = array<i32>} : memref<8x20xf32, #tpu.memory_space<vmem>>, vector<8x20xf32>,
    %c0_60 = arith.constant 0 : index
    %c0_61 = arith.constant 0 : index
    %72 = vector.load %arg23[%c0_60, %c0_61] : memref<8x20xf32, #tpu.memory_space<vmem>>, vector<8x20xf32>
    tpu.vector_store %arg23[%c0_60, %c0_61], %31 {strides = array<i32>} : memref<8x20xf32, #tpu.memory_space<vmem>>, vector<8x20xf32>,
    return
  }
  func.func @transform_0(%arg0: i32) -> (i32, i32) {
    %c0_i32 = arith.constant 0 : i32
    %c0_i32_0 = arith.constant 0 : i32
    return %arg0, %c0_i32 : i32, i32
  }
  func.func @transform_1(%arg0: i32) -> (i32, i32) {
    %c0_i32 = arith.constant 0 : i32
    %c0_i32_0 = arith.constant 0 : i32
    return %arg0, %c0_i32 : i32, i32
  }
  func.func @transform_2(%arg0: i32) -> (i32, i32) {
    %c0_i32 = arith.constant 0 : i32
    %c0_i32_0 = arith.constant 0 : i32
    %c0_i32_1 = arith.constant 0 : i32
    return %c0_i32, %c0_i32_0 : i32, i32
  }
  func.func @transform_3(%arg0: i32) -> (i32, i32) {
    %c0_i32 = arith.constant 0 : i32
    %c0_i32_0 = arith.constant 0 : i32
    %c0_i32_1 = arith.constant 0 : i32
    return %c0_i32, %c0_i32_0 : i32, i32
  }
  func.func @transform_4(%arg0: i32) -> (i32, i32) {
    %c0_i32 = arith.constant 0 : i32
    %c0_i32_0 = arith.constant 0 : i32
    %c0_i32_1 = arith.constant 0 : i32
    return %c0_i32, %c0_i32_0 : i32, i32
  }
  func.func @transform_5(%arg0: i32) -> (i32, i32) {
    %c0_i32 = arith.constant 0 : i32
    %c0_i32_0 = arith.constant 0 : i32
    %c0_i32_1 = arith.constant 0 : i32
    return %c0_i32, %c0_i32_0 : i32, i32
  }
  func.func @transform_6(%arg0: i32) -> (i32, i32) {
    %c0_i32 = arith.constant 0 : i32
    %c0_i32_0 = arith.constant 0 : i32
    %c0_i32_1 = arith.constant 0 : i32
    return %c0_i32, %c0_i32_0 : i32, i32
  }
  func.func @transform_7(%arg0: i32) -> (i32, i32) {
    %c0_i32 = arith.constant 0 : i32
    %c0_i32_0 = arith.constant 0 : i32
    %c0_i32_1 = arith.constant 0 : i32
    return %c0_i32, %c0_i32_0 : i32, i32
  }
  func.func @transform_8(%arg0: i32) -> (i32, i32) {
    %c0_i32 = arith.constant 0 : i32
    %c0_i32_0 = arith.constant 0 : i32
    %c0_i32_1 = arith.constant 0 : i32
    return %c0_i32, %c0_i32_0 : i32, i32
  }
  func.func @transform_9(%arg0: i32) -> (i32, i32) {
    %c0_i32 = arith.constant 0 : i32
    %c0_i32_0 = arith.constant 0 : i32
    %c0_i32_1 = arith.constant 0 : i32
    return %c0_i32, %c0_i32_0 : i32, i32
  }
  func.func @transform_10(%arg0: i32) -> (i32, i32) {
    %c0_i32 = arith.constant 0 : i32
    %c0_i32_0 = arith.constant 0 : i32
    %c0_i32_1 = arith.constant 0 : i32
    return %c0_i32, %c0_i32_0 : i32, i32
  }
  func.func @transform_11(%arg0: i32) -> (i32, i32) {
    %c0_i32 = arith.constant 0 : i32
    %c0_i32_0 = arith.constant 0 : i32
    %c0_i32_1 = arith.constant 0 : i32
    return %c0_i32, %c0_i32_0 : i32, i32
  }
  func.func @transform_12(%arg0: i32) -> (i32, i32) {
    %c0_i32 = arith.constant 0 : i32
    %c0_i32_0 = arith.constant 0 : i32
    %c0_i32_1 = arith.constant 0 : i32
    return %c0_i32, %c0_i32_0 : i32, i32
  }
  func.func @transform_13(%arg0: i32) -> (i32, i32) {
    %c0_i32 = arith.constant 0 : i32
    %c0_i32_0 = arith.constant 0 : i32
    %c0_i32_1 = arith.constant 0 : i32
    return %c0_i32, %c0_i32_0 : i32, i32
  }
  func.func @transform_14(%arg0: i32) -> (i32, i32) {
    %c0_i32 = arith.constant 0 : i32
    %c0_i32_0 = arith.constant 0 : i32
    %c0_i32_1 = arith.constant 0 : i32
    return %c0_i32, %c0_i32_0 : i32, i32
  }
  func.func @transform_15(%arg0: i32) -> (i32, i32) {
    %c0_i32 = arith.constant 0 : i32
    %c0_i32_0 = arith.constant 0 : i32
    %c0_i32_1 = arith.constant 0 : i32
    return %c0_i32, %c0_i32_0 : i32, i32
  }
  func.func @transform_16(%arg0: i32) -> (i32, i32) {
    %c0_i32 = arith.constant 0 : i32
    %c0_i32_0 = arith.constant 0 : i32
    %c0_i32_1 = arith.constant 0 : i32
    return %c0_i32, %c0_i32_0 : i32, i32
  }
  func.func @transform_17(%arg0: i32) -> (i32, i32) {
    %c0_i32 = arith.constant 0 : i32
    %c0_i32_0 = arith.constant 0 : i32
    %c0_i32_1 = arith.constant 0 : i32
    return %c0_i32, %c0_i32_0 : i32, i32
  }
  func.func @transform_18(%arg0: i32) -> (i32, i32) {
    %c0_i32 = arith.constant 0 : i32
    %c0_i32_0 = arith.constant 0 : i32
    %c0_i32_1 = arith.constant 0 : i32
    return %c0_i32, %c0_i32_0 : i32, i32
  }
  func.func @transform_19(%arg0: i32) -> (i32, i32) {
    %c0_i32 = arith.constant 0 : i32
    %c0_i32_0 = arith.constant 0 : i32
    %c0_i32_1 = arith.constant 0 : i32
    return %c0_i32, %c0_i32_0 : i32, i32
  }
  func.func @transform_20(%arg0: i32) -> (i32, i32) {
    %c0_i32 = arith.constant 0 : i32
    %c0_i32_0 = arith.constant 0 : i32
    return %arg0, %c0_i32 : i32, i32
  }
  func.func @transform_21(%arg0: i32) -> (i32, i32) {
    %c0_i32 = arith.constant 0 : i32
    %c0_i32_0 = arith.constant 0 : i32
    return %arg0, %c0_i32 : i32, i32
  }
  func.func @transform_22(%arg0: i32) -> (i32, i32) {
    %c0_i32 = arith.constant 0 : i32
    %c0_i32_0 = arith.constant 0 : i32
    return %arg0, %c0_i32 : i32, i32
  }
}

</mosaic_0001>

<llo_original>
// kernel: tpu_custom_call.1
$region0: #{tpu_custom_call.1}
  #allocation0 [shape = 'u32[]', space=smem, size = 0x4, offset = 0x4, fixed_abs, tag = 'smem constant byte address 0x4 - core index']
  #allocation1 [shape = 'u32[144,128]{1,0:T(1,128)}', space=vmem, size = 0x12000, scoped, tag = 'internal scratch']
  %s0 = inlined_call_operand.vmem [shape: f32[16,784], index: 0, kind: input, shape index: {}]
  %s1 = inlined_call_operand.vmem [shape: f32[16,20], index: 1, kind: input, shape index: {}]
  %s2 = inlined_call_operand.vmem [shape: f32[784,400], index: 2, kind: input, shape index: {}]
  %s3 = inlined_call_operand.vmem [shape: f32[1,400], index: 3, kind: input, shape index: {}]
  %s4 = inlined_call_operand.vmem [shape: f32[400,200], index: 4, kind: input, shape index: {}]
  %s5 = inlined_call_operand.vmem [shape: f32[1,200], index: 5, kind: input, shape index: {}]
  %s6 = inlined_call_operand.vmem [shape: f32[200,100], index: 6, kind: input, shape index: {}]
  %s7 = inlined_call_operand.vmem [shape: f32[1,100], index: 7, kind: input, shape index: {}]
  %s8 = inlined_call_operand.vmem [shape: f32[100,20], index: 8, kind: input, shape index: {}]
  %s9 = inlined_call_operand.vmem [shape: f32[1,20], index: 9, kind: input, shape index: {}]
  %s10 = inlined_call_operand.vmem [shape: f32[100,20], index: 10, kind: input, shape index: {}]
  %s11 = inlined_call_operand.vmem [shape: f32[1,20], index: 11, kind: input, shape index: {}]
  %s12 = inlined_call_operand.vmem [shape: f32[20,100], index: 12, kind: input, shape index: {}]
  %s13 = inlined_call_operand.vmem [shape: f32[1,100], index: 13, kind: input, shape index: {}]
  %s14 = inlined_call_operand.vmem [shape: f32[100,200], index: 14, kind: input, shape index: {}]
  %s15 = inlined_call_operand.vmem [shape: f32[1,200], index: 15, kind: input, shape index: {}]
  %s16 = inlined_call_operand.vmem [shape: f32[200,400], index: 16, kind: input, shape index: {}]
  %s17 = inlined_call_operand.vmem [shape: f32[1,400], index: 17, kind: input, shape index: {}]
  %s18 = inlined_call_operand.vmem [shape: f32[400,784], index: 18, kind: input, shape index: {}]
  %s19 = inlined_call_operand.vmem [shape: f32[1,784], index: 19, kind: input, shape index: {}]
  %s20 = inlined_call_operand.hbm [shape: f32[16,784], index: 20, kind: output, shape index: {0}]
  %s21 = inlined_call_operand.hbm [shape: f32[16,20], index: 21, kind: output, shape index: {1}]
  %s22 = inlined_call_operand.hbm [shape: f32[16,20], index: 22, kind: output, shape index: {2}]
  %23 = xla_tuple %s20, %s21, %s22
  %s24 = sld [smem:[#allocation0]]
  $region129: #{tpu_custom_call.1} parent=0
    _
  %s26 = ssub.s32 1, %s24
  %s27 = scalar_select 0, %s26, %s24
  $region1: #{tpu_custom_call.1} parent=0
    #allocation2 [shape = 'u8[57344]{0}', space=vmem, size = 0xe000, scoped, tag = 'output window, operand 0']
    #allocation3 [shape = 's32[2]{0}', space=sflag, size = 0x8, scoped, tag = 'scoped memory for tpu_custom_call.1']
    #allocation4 [shape = 'u8[8192]{0}', space=vmem, size = 0x2000, scoped, tag = 'output window, operand 1']
    #allocation5 [shape = 's32[2]{0}', space=sflag, size = 0x8, scoped, tag = 'scoped memory for tpu_custom_call.1']
    #allocation6 [shape = 'u8[8192]{0}', space=vmem, size = 0x2000, scoped, tag = 'output window, operand 2']
    %28 = vsyncpa [#allocation3], 0
    %s29 = scalar_lea.sflag [#allocation3], 1
    %30 = vsyncpa %s29, 0
    %31 = vsyncpa [#allocation5], 0
    %s32 = scalar_lea.sflag [#allocation5], 1
    %33 = vsyncpa %s32, 0
    loop: start=0, step=1, limit=4
    $region2: #{tpu_custom_call.1} parent=1 // loop_pre_header
      _
    $region3: #{tpu_custom_call.1} parent=1 // loop_header
      %s35 = sphi 0, %s39
      %p36 = scmp.ge.s32.totalorder %s35, 4
      %s45 = sphi 0, %s47
      %s48 = sphi 0, %s45
      %s49 = sphi 0, %s48
      %s65 = sphi 0, %s49
      %s71 = sphi 0, %s73
      %s74 = sphi 0, %s71
      %s75 = sphi 0, %s74
      %s91 = sphi 0, %s75
      %s95 = sphi 0, %s95
      %s97 = sphi 0, %s95
      %s98 = sphi 0, %s97
      %s112 = sphi 0, %s98
      %s116 = sphi 0, %s116
      %s118 = sphi 0, %s116
      %s119 = sphi 0, %s118
      %s133 = sphi 0, %s119
      %s137 = sphi 0, %s137
      %s139 = sphi 0, %s137
      %s140 = sphi 0, %s139
      %s154 = sphi 0, %s140
      %s158 = sphi 0, %s158
      %s160 = sphi 0, %s158
      %s161 = sphi 0, %s160
      %s175 = sphi 0, %s161
      %s179 = sphi 0, %s179
      %s181 = sphi 0, %s179
      %s182 = sphi 0, %s181
      %s196 = sphi 0, %s182
      %s200 = sphi 0, %s200
      %s202 = sphi 0, %s200
      %s203 = sphi 0, %s202
      %s217 = sphi 0, %s203
      %s221 = sphi 0, %s221
      %s223 = sphi 0, %s221
      %s224 = sphi 0, %s223
      %s238 = sphi 0, %s224
      %s242 = sphi 0, %s242
      %s244 = sphi 0, %s242
      %s245 = sphi 0, %s244
      %s259 = sphi 0, %s245
      %s263 = sphi 0, %s263
      %s265 = sphi 0, %s263
      %s266 = sphi 0, %s265
      %s280 = sphi 0, %s266
      %s284 = sphi 0, %s284
      %s286 = sphi 0, %s284
      %s287 = sphi 0, %s286
      %s301 = sphi 0, %s287
      %s305 = sphi 0, %s305
      %s307 = sphi 0, %s305
      %s308 = sphi 0, %s307
      %s322 = sphi 0, %s308
      %s326 = sphi 0, %s326
      %s328 = sphi 0, %s326
      %s329 = sphi 0, %s328
      %s343 = sphi 0, %s329
      %s347 = sphi 0, %s347
      %s349 = sphi 0, %s347
      %s350 = sphi 0, %s349
      %s364 = sphi 0, %s350
      %s368 = sphi 0, %s368
      %s370 = sphi 0, %s368
      %s371 = sphi 0, %s370
      %s385 = sphi 0, %s371
      %s389 = sphi 0, %s389
      %s391 = sphi 0, %s389
      %s392 = sphi 0, %s391
      %s406 = sphi 0, %s392
      %s410 = sphi 0, %s410
      %s412 = sphi 0, %s410
      %s413 = sphi 0, %s412
      %s427 = sphi 0, %s413
      %s431 = sphi 0, %s431
      %s433 = sphi 0, %s431
      %s434 = sphi 0, %s433
      %s448 = sphi 0, %s434
      %s452 = sphi 0, %s452
      %s454 = sphi 0, %s452
      %s455 = sphi 0, %s454
      %s469 = sphi 0, %s455
      %s475 = sphi 0, %s477
      %s478 = sphi 0, %s475
      %s479 = sphi 0, %s478
      %s495 = sphi 0, %s479
      %s501 = sphi 0, %s503
      %s504 = sphi 0, %s501
      %s505 = sphi 0, %s504
      %s521 = sphi 0, %s505
      %s527 = sphi 0, %s529
      %s530 = sphi 0, %s527
      %s531 = sphi 0, %s530
      %s547 = sphi 0, %s531
    $region4: #{tpu_custom_call.1} parent=1 // loop_header_branch
      %38 = sbr.rel (%p36) target = $region8
    $region5: #{tpu_custom_call.1} parent=1 // loop_body
      %s40 = ssub.s32 %s35, 1
      %s41 = ssub.s32 %s35, 2
      %s42 = sadd.s32 %s35, 1
      %s43 = ssub.s32 %s35, %s42
      %p44 = scmp.eq.s32.totalorder %s43, 0
      %s46 = sadd.s32 %s45, 1
      %s47 = scalar_select %p44, %s45, %s46
      %p50 = pneg %p44
      %p51 = scmp.eq.s32.totalorder %s35, 1
      %p52 = por %p50, %p51
      %p53 = scmp.ne.s32.totalorder %s45, %s48
      %p54 = scmp.eq.s32.totalorder %s35, 0
      %p55 = por %p53, %p54
      %p56 = scmp.ne.s32.totalorder %s45, %s48
      %p57 = scmp.eq.s32.totalorder %s40, 1
      %p58 = por %p56, %p57
      %p59 = scmp.ne.s32.totalorder %s48, %s49
      %p60 = scmp.eq.s32.totalorder %s40, 0
      %p61 = por %p59, %p60
      %p62 = scmp.ne.s32.totalorder %s48, %s49
      %p63 = scmp.eq.s32.totalorder %s41, 1
      %p64 = por %p62, %p63
      %p66 = scmp.ne.s32.totalorder %s49, %s65
      %p67 = scmp.eq.s32.totalorder %s41, 0
      %p68 = por %p66, %p67
      %s69 = ssub.s32 %s35, %s42
      %p70 = scmp.eq.s32.totalorder %s69, 0
      %s72 = sadd.s32 %s71, 1
      %s73 = scalar_select %p70, %s71, %s72
      %p76 = pneg %p70
      %p77 = scmp.eq.s32.totalorder %s35, 1
      %p78 = por %p76, %p77
      %p79 = scmp.ne.s32.totalorder %s71, %s74
      %p80 = scmp.eq.s32.totalorder %s35, 0
      %p81 = por %p79, %p80
      %p82 = scmp.ne.s32.totalorder %s71, %s74
      %p83 = scmp.eq.s32.totalorder %s40, 1
      %p84 = por %p82, %p83
      %p85 = scmp.ne.s32.totalorder %s74, %s75
      %p86 = scmp.eq.s32.totalorder %s40, 0
      %p87 = por %p85, %p86
      %p88 = scmp.ne.s32.totalorder %s74, %s75
      %p89 = scmp.eq.s32.totalorder %s41, 1
      %p90 = por %p88, %p89
      %p92 = scmp.ne.s32.totalorder %s75, %s91
      %p93 = scmp.eq.s32.totalorder %s41, 0
      %p94 = por %p92, %p93
      %s96 = sadd.s32 %s95, 1
      %p99 = scmp.eq.s32.totalorder %s35, 1
      %p100 = scmp.ne.s32.totalorder %s95, %s97
      %p101 = scmp.eq.s32.totalorder %s35, 0
      %p102 = por %p100, %p101
      %p103 = scmp.ne.s32.totalorder %s95, %s97
      %p104 = scmp.eq.s32.totalorder %s40, 1
      %p105 = por %p103, %p104
      %p106 = scmp.ne.s32.totalorder %s97, %s98
      %p107 = scmp.eq.s32.totalorder %s40, 0
      %p108 = por %p106, %p107
      %p109 = scmp.ne.s32.totalorder %s97, %s98
      %p110 = scmp.eq.s32.totalorder %s41, 1
      %p111 = por %p109, %p110
      %p113 = scmp.ne.s32.totalorder %s98, %s112
      %p114 = scmp.eq.s32.totalorder %s41, 0
      %p115 = por %p113, %p114
      %s117 = sadd.s32 %s116, 1
      %p120 = scmp.eq.s32.totalorder %s35, 1
      %p121 = scmp.ne.s32.totalorder %s116, %s118
      %p122 = scmp.eq.s32.totalorder %s35, 0
      %p123 = por %p121, %p122
      %p124 = scmp.ne.s32.totalorder %s116, %s118
      %p125 = scmp.eq.s32.totalorder %s40, 1
      %p126 = por %p124, %p125
      %p127 = scmp.ne.s32.totalorder %s118, %s119
      %p128 = scmp.eq.s32.totalorder %s40, 0
      %p129 = por %p127, %p128
      %p130 = scmp.ne.s32.totalorder %s118, %s119
      %p131 = scmp.eq.s32.totalorder %s41, 1
      %p132 = por %p130, %p131
      %p134 = scmp.ne.s32.totalorder %s119, %s133
      %p135 = scmp.eq.s32.totalorder %s41, 0
      %p136 = por %p134, %p135
      %s138 = sadd.s32 %s137, 1
      %p141 = scmp.eq.s32.totalorder %s35, 1
      %p142 = scmp.ne.s32.totalorder %s137, %s139
      %p143 = scmp.eq.s32.totalorder %s35, 0
      %p144 = por %p142, %p143
      %p145 = scmp.ne.s32.totalorder %s137, %s139
      %p146 = scmp.eq.s32.totalorder %s40, 1
      %p147 = por %p145, %p146
      %p148 = scmp.ne.s32.totalorder %s139, %s140
      %p149 = scmp.eq.s32.totalorder %s40, 0
      %p150 = por %p148, %p149
      %p151 = scmp.ne.s32.totalorder %s139, %s140
      %p152 = scmp.eq.s32.totalorder %s41, 1
      %p153 = por %p151, %p152
      %p155 = scmp.ne.s32.totalorder %s140, %s154
      %p156 = scmp.eq.s32.totalorder %s41, 0
      %p157 = por %p155, %p156
      %s159 = sadd.s32 %s158, 1
      %p162 = scmp.eq.s32.totalorder %s35, 1
      %p163 = scmp.ne.s32.totalorder %s158, %s160
      %p164 = scmp.eq.s32.totalorder %s35, 0
      %p165 = por %p163, %p164
      %p166 = scmp.ne.s32.totalorder %s158, %s160
      %p167 = scmp.eq.s32.totalorder %s40, 1
      %p168 = por %p166, %p167
      %p169 = scmp.ne.s32.totalorder %s160, %s161
      %p170 = scmp.eq.s32.totalorder %s40, 0
      %p171 = por %p169, %p170
      %p172 = scmp.ne.s32.totalorder %s160, %s161
      %p173 = scmp.eq.s32.totalorder %s41, 1
      %p174 = por %p172, %p173
      %p176 = scmp.ne.s32.totalorder %s161, %s175
      %p177 = scmp.eq.s32.totalorder %s41, 0
      %p178 = por %p176, %p177
      %s180 = sadd.s32 %s179, 1
      %p183 = scmp.eq.s32.totalorder %s35, 1
      %p184 = scmp.ne.s32.totalorder %s179, %s181
      %p185 = scmp.eq.s32.totalorder %s35, 0
      %p186 = por %p184, %p185
      %p187 = scmp.ne.s32.totalorder %s179, %s181
      %p188 = scmp.eq.s32.totalorder %s40, 1
      %p189 = por %p187, %p188
      %p190 = scmp.ne.s32.totalorder %s181, %s182
      %p191 = scmp.eq.s32.totalorder %s40, 0
      %p192 = por %p190, %p191
      %p193 = scmp.ne.s32.totalorder %s181, %s182
      %p194 = scmp.eq.s32.totalorder %s41, 1
      %p195 = por %p193, %p194
      %p197 = scmp.ne.s32.totalorder %s182, %s196
      %p198 = scmp.eq.s32.totalorder %s41, 0
      %p199 = por %p197, %p198
      %s201 = sadd.s32 %s200, 1
      %p204 = scmp.eq.s32.totalorder %s35, 1
      %p205 = scmp.ne.s32.totalorder %s200, %s202
      %p206 = scmp.eq.s32.totalorder %s35, 0
      %p207 = por %p205, %p206
      %p208 = scmp.ne.s32.totalorder %s200, %s202
      %p209 = scmp.eq.s32.totalorder %s40, 1
      %p210 = por %p208, %p209
      %p211 = scmp.ne.s32.totalorder %s202, %s203
      %p212 = scmp.eq.s32.totalorder %s40, 0
      %p213 = por %p211, %p212
      %p214 = scmp.ne.s32.totalorder %s202, %s203
      %p215 = scmp.eq.s32.totalorder %s41, 1
      %p216 = por %p214, %p215
      %p218 = scmp.ne.s32.totalorder %s203, %s217
      %p219 = scmp.eq.s32.totalorder %s41, 0
      %p220 = por %p218, %p219
      %s222 = sadd.s32 %s221, 1
      %p225 = scmp.eq.s32.totalorder %s35, 1
      %p226 = scmp.ne.s32.totalorder %s221, %s223
      %p227 = scmp.eq.s32.totalorder %s35, 0
      %p228 = por %p226, %p227
      %p229 = scmp.ne.s32.totalorder %s221, %s223
      %p230 = scmp.eq.s32.totalorder %s40, 1
      %p231 = por %p229, %p230
      %p232 = scmp.ne.s32.totalorder %s223, %s224
      %p233 = scmp.eq.s32.totalorder %s40, 0
      %p234 = por %p232, %p233
      %p235 = scmp.ne.s32.totalorder %s223, %s224
      %p236 = scmp.eq.s32.totalorder %s41, 1
      %p237 = por %p235, %p236
      %p239 = scmp.ne.s32.totalorder %s224, %s238
      %p240 = scmp.eq.s32.totalorder %s41, 0
      %p241 = por %p239, %p240
      %s243 = sadd.s32 %s242, 1
      %p246 = scmp.eq.s32.totalorder %s35, 1
      %p247 = scmp.ne.s32.totalorder %s242, %s244
      %p248 = scmp.eq.s32.totalorder %s35, 0
      %p249 = por %p247, %p248
      %p250 = scmp.ne.s32.totalorder %s242, %s244
      %p251 = scmp.eq.s32.totalorder %s40, 1
      %p252 = por %p250, %p251
      %p253 = scmp.ne.s32.totalorder %s244, %s245
      %p254 = scmp.eq.s32.totalorder %s40, 0
      %p255 = por %p253, %p254
      %p256 = scmp.ne.s32.totalorder %s244, %s245
      %p257 = scmp.eq.s32.totalorder %s41, 1
      %p258 = por %p256, %p257
      %p260 = scmp.ne.s32.totalorder %s245, %s259
      %p261 = scmp.eq.s32.totalorder %s41, 0
      %p262 = por %p260, %p261
      %s264 = sadd.s32 %s263, 1
      %p267 = scmp.eq.s32.totalorder %s35, 1
      %p268 = scmp.ne.s32.totalorder %s263, %s265
      %p269 = scmp.eq.s32.totalorder %s35, 0
      %p270 = por %p268, %p269
      %p271 = scmp.ne.s32.totalorder %s263, %s265
      %p272 = scmp.eq.s32.totalorder %s40, 1
      %p273 = por %p271, %p272
      %p274 = scmp.ne.s32.totalorder %s265, %s266
      %p275 = scmp.eq.s32.totalorder %s40, 0
      %p276 = por %p274, %p275
      %p277 = scmp.ne.s32.totalorder %s265, %s266
      %p278 = scmp.eq.s32.totalorder %s41, 1
      %p279 = por %p277, %p278
      %p281 = scmp.ne.s32.totalorder %s266, %s280
      %p282 = scmp.eq.s32.totalorder %s41, 0
      %p283 = por %p281, %p282
      %s285 = sadd.s32 %s284, 1
      %p288 = scmp.eq.s32.totalorder %s35, 1
      %p289 = scmp.ne.s32.totalorder %s284, %s286
      %p290 = scmp.eq.s32.totalorder %s35, 0
      %p291 = por %p289, %p290
      %p292 = scmp.ne.s32.totalorder %s284, %s286
      %p293 = scmp.eq.s32.totalorder %s40, 1
      %p294 = por %p292, %p293
      %p295 = scmp.ne.s32.totalorder %s286, %s287
      %p296 = scmp.eq.s32.totalorder %s40, 0
      %p297 = por %p295, %p296
      %p298 = scmp.ne.s32.totalorder %s286, %s287
      %p299 = scmp.eq.s32.totalorder %s41, 1
      %p300 = por %p298, %p299
      %p302 = scmp.ne.s32.totalorder %s287, %s301
      %p303 = scmp.eq.s32.totalorder %s41, 0
      %p304 = por %p302, %p303
      %s306 = sadd.s32 %s305, 1
      %p309 = scmp.eq.s32.totalorder %s35, 1
      %p310 = scmp.ne.s32.totalorder %s305, %s307
      %p311 = scmp.eq.s32.totalorder %s35, 0
      %p312 = por %p310, %p311
      %p313 = scmp.ne.s32.totalorder %s305, %s307
      %p314 = scmp.eq.s32.totalorder %s40, 1
      %p315 = por %p313, %p314
      %p316 = scmp.ne.s32.totalorder %s307, %s308
      %p317 = scmp.eq.s32.totalorder %s40, 0
      %p318 = por %p316, %p317
      %p319 = scmp.ne.s32.totalorder %s307, %s308
      %p320 = scmp.eq.s32.totalorder %s41, 1
      %p321 = por %p319, %p320
      %p323 = scmp.ne.s32.totalorder %s308, %s322
      %p324 = scmp.eq.s32.totalorder %s41, 0
      %p325 = por %p323, %p324
      %s327 = sadd.s32 %s326, 1
      %p330 = scmp.eq.s32.totalorder %s35, 1
      %p331 = scmp.ne.s32.totalorder %s326, %s328
      %p332 = scmp.eq.s32.totalorder %s35, 0
      %p333 = por %p331, %p332
      %p334 = scmp.ne.s32.totalorder %s326, %s328
      %p335 = scmp.eq.s32.totalorder %s40, 1
      %p336 = por %p334, %p335
      %p337 = scmp.ne.s32.totalorder %s328, %s329
      %p338 = scmp.eq.s32.totalorder %s40, 0
      %p339 = por %p337, %p338
      %p340 = scmp.ne.s32.totalorder %s328, %s329
      %p341 = scmp.eq.s32.totalorder %s41, 1
      %p342 = por %p340, %p341
      %p344 = scmp.ne.s32.totalorder %s329, %s343
      %p345 = scmp.eq.s32.totalorder %s41, 0
      %p346 = por %p344, %p345
      %s348 = sadd.s32 %s347, 1
      %p351 = scmp.eq.s32.totalorder %s35, 1
      %p352 = scmp.ne.s32.totalorder %s347, %s349
      %p353 = scmp.eq.s32.totalorder %s35, 0
      %p354 = por %p352, %p353
      %p355 = scmp.ne.s32.totalorder %s347, %s349
      %p356 = scmp.eq.s32.totalorder %s40, 1
      %p357 = por %p355, %p356
      %p358 = scmp.ne.s32.totalorder %s349, %s350
      %p359 = scmp.eq.s32.totalorder %s40, 0
      %p360 = por %p358, %p359
      %p361 = scmp.ne.s32.totalorder %s349, %s350
      %p362 = scmp.eq.s32.totalorder %s41, 1
      %p363 = por %p361, %p362
      %p365 = scmp.ne.s32.totalorder %s350, %s364
      %p366 = scmp.eq.s32.totalorder %s41, 0
      %p367 = por %p365, %p366
      %s369 = sadd.s32 %s368, 1
      %p372 = scmp.eq.s32.totalorder %s35, 1
      %p373 = scmp.ne.s32.totalorder %s368, %s370
      %p374 = scmp.eq.s32.totalorder %s35, 0
      %p375 = por %p373, %p374
      %p376 = scmp.ne.s32.totalorder %s368, %s370
      %p377 = scmp.eq.s32.totalorder %s40, 1
      %p378 = por %p376, %p377
      %p379 = scmp.ne.s32.totalorder %s370, %s371
      %p380 = scmp.eq.s32.totalorder %s40, 0
      %p381 = por %p379, %p380
      %p382 = scmp.ne.s32.totalorder %s370, %s371
      %p383 = scmp.eq.s32.totalorder %s41, 1
      %p384 = por %p382, %p383
      %p386 = scmp.ne.s32.totalorder %s371, %s385
      %p387 = scmp.eq.s32.totalorder %s41, 0
      %p388 = por %p386, %p387
      %s390 = sadd.s32 %s389, 1
      %p393 = scmp.eq.s32.totalorder %s35, 1
      %p394 = scmp.ne.s32.totalorder %s389, %s391
      %p395 = scmp.eq.s32.totalorder %s35, 0
      %p396 = por %p394, %p395
      %p397 = scmp.ne.s32.totalorder %s389, %s391
      %p398 = scmp.eq.s32.totalorder %s40, 1
      %p399 = por %p397, %p398
      %p400 = scmp.ne.s32.totalorder %s391, %s392
      %p401 = scmp.eq.s32.totalorder %s40, 0
      %p402 = por %p400, %p401
      %p403 = scmp.ne.s32.totalorder %s391, %s392
      %p404 = scmp.eq.s32.totalorder %s41, 1
      %p405 = por %p403, %p404
      %p407 = scmp.ne.s32.totalorder %s392, %s406
      %p408 = scmp.eq.s32.totalorder %s41, 0
      %p409 = por %p407, %p408
      %s411 = sadd.s32 %s410, 1
      %p414 = scmp.eq.s32.totalorder %s35, 1
      %p415 = scmp.ne.s32.totalorder %s410, %s412
      %p416 = scmp.eq.s32.totalorder %s35, 0
      %p417 = por %p415, %p416
      %p418 = scmp.ne.s32.totalorder %s410, %s412
      %p419 = scmp.eq.s32.totalorder %s40, 1
      %p420 = por %p418, %p419
      %p421 = scmp.ne.s32.totalorder %s412, %s413
      %p422 = scmp.eq.s32.totalorder %s40, 0
      %p423 = por %p421, %p422
      %p424 = scmp.ne.s32.totalorder %s412, %s413
      %p425 = scmp.eq.s32.totalorder %s41, 1
      %p426 = por %p424, %p425
      %p428 = scmp.ne.s32.totalorder %s413, %s427
      %p429 = scmp.eq.s32.totalorder %s41, 0
      %p430 = por %p428, %p429
      %s432 = sadd.s32 %s431, 1
      %p435 = scmp.eq.s32.totalorder %s35, 1
      %p436 = scmp.ne.s32.totalorder %s431, %s433
      %p437 = scmp.eq.s32.totalorder %s35, 0
      %p438 = por %p436, %p437
      %p439 = scmp.ne.s32.totalorder %s431, %s433
      %p440 = scmp.eq.s32.totalorder %s40, 1
      %p441 = por %p439, %p440
      %p442 = scmp.ne.s32.totalorder %s433, %s434
      %p443 = scmp.eq.s32.totalorder %s40, 0
      %p444 = por %p442, %p443
      %p445 = scmp.ne.s32.totalorder %s433, %s434
      %p446 = scmp.eq.s32.totalorder %s41, 1
      %p447 = por %p445, %p446
      %p449 = scmp.ne.s32.totalorder %s434, %s448
      %p450 = scmp.eq.s32.totalorder %s41, 0
      %p451 = por %p449, %p450
      %s453 = sadd.s32 %s452, 1
      %p456 = scmp.eq.s32.totalorder %s35, 1
      %p457 = scmp.ne.s32.totalorder %s452, %s454
      %p458 = scmp.eq.s32.totalorder %s35, 0
      %p459 = por %p457, %p458
      %p460 = scmp.ne.s32.totalorder %s452, %s454
      %p461 = scmp.eq.s32.totalorder %s40, 1
      %p462 = por %p460, %p461
      %p463 = scmp.ne.s32.totalorder %s454, %s455
      %p464 = scmp.eq.s32.totalorder %s40, 0
      %p465 = por %p463, %p464
      %p466 = scmp.ne.s32.totalorder %s454, %s455
      %p467 = scmp.eq.s32.totalorder %s41, 1
      %p468 = por %p466, %p467
      %p470 = scmp.ne.s32.totalorder %s455, %s469
      %p471 = scmp.eq.s32.totalorder %s41, 0
      %p472 = por %p470, %p471
      %s473 = ssub.s32 %s35, %s42
      %p474 = scmp.eq.s32.totalorder %s473, 0
      %s476 = sadd.s32 %s475, 1
      %s477 = scalar_select %p474, %s475, %s476
      %p480 = pneg %p474
      %p481 = scmp.eq.s32.totalorder %s35, 1
      %p482 = por %p480, %p481
      %p483 = scmp.ne.s32.totalorder %s475, %s478
      %p484 = scmp.eq.s32.totalorder %s35, 0
      %p485 = por %p483, %p484
      %p486 = scmp.ne.s32.totalorder %s475, %s478
      %p487 = scmp.eq.s32.totalorder %s40, 1
      %p488 = por %p486, %p487
      %p489 = scmp.ne.s32.totalorder %s478, %s479
      %p490 = scmp.eq.s32.totalorder %s40, 0
      %p491 = por %p489, %p490
      %p492 = scmp.ne.s32.totalorder %s478, %s479
      %p493 = scmp.eq.s32.totalorder %s41, 1
      %p494 = por %p492, %p493
      %p496 = scmp.ne.s32.totalorder %s479, %s495
      %p497 = scmp.eq.s32.totalorder %s41, 0
      %p498 = por %p496, %p497
      %s499 = ssub.s32 %s35, %s42
      %p500 = scmp.eq.s32.totalorder %s499, 0
      %s502 = sadd.s32 %s501, 1
      %s503 = scalar_select %p500, %s501, %s502
      %p506 = pneg %p500
      %p507 = scmp.eq.s32.totalorder %s35, 1
      %p508 = por %p506, %p507
      %p509 = scmp.ne.s32.totalorder %s501, %s504
      %p510 = scmp.eq.s32.totalorder %s35, 0
      %p511 = por %p509, %p510
      %p512 = scmp.ne.s32.totalorder %s501, %s504
      %p513 = scmp.eq.s32.totalorder %s40, 1
      %p514 = por %p512, %p513
      %p515 = scmp.ne.s32.totalorder %s504, %s505
      %p516 = scmp.eq.s32.totalorder %s40, 0
      %p517 = por %p515, %p516
      %p518 = scmp.ne.s32.totalorder %s504, %s505
      %p519 = scmp.eq.s32.totalorder %s41, 1
      %p520 = por %p518, %p519
      %p522 = scmp.ne.s32.totalorder %s505, %s521
      %p523 = scmp.eq.s32.totalorder %s41, 0
      %p524 = por %p522, %p523
      %s525 = ssub.s32 %s35, %s42
      %p526 = scmp.eq.s32.totalorder %s525, 0
      %s528 = sadd.s32 %s527, 1
      %s529 = scalar_select %p526, %s527, %s528
      %p532 = pneg %p526
      %p533 = scmp.eq.s32.totalorder %s35, 1
      %p534 = por %p532, %p533
      %p535 = scmp.ne.s32.totalorder %s527, %s530
      %p536 = scmp.eq.s32.totalorder %s35, 0
      %p537 = por %p535, %p536
      %p538 = scmp.ne.s32.totalorder %s527, %s530
      %p539 = scmp.eq.s32.totalorder %s40, 1
      %p540 = por %p538, %p539
      %p541 = scmp.ne.s32.totalorder %s530, %s531
      %p542 = scmp.eq.s32.totalorder %s40, 0
      %p543 = por %p541, %p542
      %p544 = scmp.ne.s32.totalorder %s530, %s531
      %p545 = scmp.eq.s32.totalorder %s41, 1
      %p546 = por %p544, %p545
      %p548 = scmp.ne.s32.totalorder %s531, %s547
      %p549 = scmp.eq.s32.totalorder %s41, 0
      %p550 = por %p548, %p549
      %p551 = scmp.le.s32.totalorder 1, %s35
      %p552 = scmp.lt.s32.totalorder %s35, 3
      %p553 = pnand %p551, %p552
      %p554 = pneg %p553
      // Predicated region
      $region9: #{tpu_custom_call.1} parent=5 // pred_check
        _
      $region10: #{tpu_custom_call.1} parent=5 // pred_check_branch
        %556 = sbr.rel (%p553) target = $region12
      $region11: #{tpu_custom_call.1} parent=5 // pred_region
        %s557 = ssub.s32 %s35, 1
        // Predicated region
        $region13: #{tpu_custom_call.1} parent=11 // pred_check
          %p558 = pneg %p108
        $region14: #{tpu_custom_call.1} parent=11 // pred_check_branch
          %560 = sbr.rel (%p558) target = $region16
        $region15: #{tpu_custom_call.1} parent=11 // pred_region
          _
        $region16: #{tpu_custom_call.1} parent=11 // pred_fallthru
          _
        // Predicated region
        $region17: #{tpu_custom_call.1} parent=11 // pred_check
          %p561 = pneg %p129
        $region18: #{tpu_custom_call.1} parent=11 // pred_check_branch
          %563 = sbr.rel (%p561) target = $region20
        $region19: #{tpu_custom_call.1} parent=11 // pred_region
          _
        $region20: #{tpu_custom_call.1} parent=11 // pred_fallthru
          _
        // Predicated region
        $region21: #{tpu_custom_call.1} parent=11 // pred_check
          %p564 = pneg %p150
        $region22: #{tpu_custom_call.1} parent=11 // pred_check_branch
          %566 = sbr.rel (%p564) target = $region24
        $region23: #{tpu_custom_call.1} parent=11 // pred_region
          _
        $region24: #{tpu_custom_call.1} parent=11 // pred_fallthru
          _
        // Predicated region
        $region25: #{tpu_custom_call.1} parent=11 // pred_check
          %p567 = pneg %p171
        $region26: #{tpu_custom_call.1} parent=11 // pred_check_branch
          %569 = sbr.rel (%p567) target = $region28
        $region27: #{tpu_custom_call.1} parent=11 // pred_region
          _
        $region28: #{tpu_custom_call.1} parent=11 // pred_fallthru
          _
        // Predicated region
        $region29: #{tpu_custom_call.1} parent=11 // pred_check
          %p570 = pneg %p192
        $region30: #{tpu_custom_call.1} parent=11 // pred_check_branch
          %572 = sbr.rel (%p570) target = $region32
        $region31: #{tpu_custom_call.1} parent=11 // pred_region
          _
        $region32: #{tpu_custom_call.1} parent=11 // pred_fallthru
          _
        // Predicated region
        $region33: #{tpu_custom_call.1} parent=11 // pred_check
          %p573 = pneg %p213
        $region34: #{tpu_custom_call.1} parent=11 // pred_check_branch
          %575 = sbr.rel (%p573) target = $region36
        $region35: #{tpu_custom_call.1} parent=11 // pred_region
          _
        $region36: #{tpu_custom_call.1} parent=11 // pred_fallthru
          _
        // Predicated region
        $region37: #{tpu_custom_call.1} parent=11 // pred_check
          %p576 = pneg %p234
        $region38: #{tpu_custom_call.1} parent=11 // pred_check_branch
          %578 = sbr.rel (%p576) target = $region40
        $region39: #{tpu_custom_call.1} parent=11 // pred_region
          _
        $region40: #{tpu_custom_call.1} parent=11 // pred_fallthru
          _
        // Predicated region
        $region41: #{tpu_custom_call.1} parent=11 // pred_check
          %p579 = pneg %p255
        $region42: #{tpu_custom_call.1} parent=11 // pred_check_branch
          %581 = sbr.rel (%p579) target = $region44
        $region43: #{tpu_custom_call.1} parent=11 // pred_region
          _
        $region44: #{tpu_custom_call.1} parent=11 // pred_fallthru
          _
        // Predicated region
        $region45: #{tpu_custom_call.1} parent=11 // pred_check
          %p582 = pneg %p276
        $region46: #{tpu_custom_call.1} parent=11 // pred_check_branch
          %584 = sbr.rel (%p582) target = $region48
        $region47: #{tpu_custom_call.1} parent=11 // pred_region
          _
        $region48: #{tpu_custom_call.1} parent=11 // pred_fallthru
          _
        // Predicated region
        $region49: #{tpu_custom_call.1} parent=11 // pred_check
          %p585 = pneg %p297
        $region50: #{tpu_custom_call.1} parent=11 // pred_check_branch
          %587 = sbr.rel (%p585) target = $region52
        $region51: #{tpu_custom_call.1} parent=11 // pred_region
          _
        $region52: #{tpu_custom_call.1} parent=11 // pred_fallthru
          _
        // Predicated region
        $region53: #{tpu_custom_call.1} parent=11 // pred_check
          %p588 = pneg %p318
        $region54: #{tpu_custom_call.1} parent=11 // pred_check_branch
          %590 = sbr.rel (%p588) target = $region56
        $region55: #{tpu_custom_call.1} parent=11 // pred_region
          _
        $region56: #{tpu_custom_call.1} parent=11 // pred_fallthru
          _
        // Predicated region
        $region57: #{tpu_custom_call.1} parent=11 // pred_check
          %p591 = pneg %p339
        $region58: #{tpu_custom_call.1} parent=11 // pred_check_branch
          %593 = sbr.rel (%p591) target = $region60
        $region59: #{tpu_custom_call.1} parent=11 // pred_region
          _
        $region60: #{tpu_custom_call.1} parent=11 // pred_fallthru
          _
        // Predicated region
        $region61: #{tpu_custom_call.1} parent=11 // pred_check
          %p594 = pneg %p360
        $region62: #{tpu_custom_call.1} parent=11 // pred_check_branch
          %596 = sbr.rel (%p594) target = $region64
        $region63: #{tpu_custom_call.1} parent=11 // pred_region
          _
        $region64: #{tpu_custom_call.1} parent=11 // pred_fallthru
          _
        // Predicated region
        $region65: #{tpu_custom_call.1} parent=11 // pred_check
          %p597 = pneg %p381
        $region66: #{tpu_custom_call.1} parent=11 // pred_check_branch
          %599 = sbr.rel (%p597) target = $region68
        $region67: #{tpu_custom_call.1} parent=11 // pred_region
          _
        $region68: #{tpu_custom_call.1} parent=11 // pred_fallthru
          _
        // Predicated region
        $region69: #{tpu_custom_call.1} parent=11 // pred_check
          %p600 = pneg %p402
        $region70: #{tpu_custom_call.1} parent=11 // pred_check_branch
          %602 = sbr.rel (%p600) target = $region72
        $region71: #{tpu_custom_call.1} parent=11 // pred_region
          _
        $region72: #{tpu_custom_call.1} parent=11 // pred_fallthru
          _
        // Predicated region
        $region73: #{tpu_custom_call.1} parent=11 // pred_check
          %p603 = pneg %p423
        $region74: #{tpu_custom_call.1} parent=11 // pred_check_branch
          %605 = sbr.rel (%p603) target = $region76
        $region75: #{tpu_custom_call.1} parent=11 // pred_region
          _
        $region76: #{tpu_custom_call.1} parent=11 // pred_fallthru
          _
        // Predicated region
        $region77: #{tpu_custom_call.1} parent=11 // pred_check
          %p606 = pneg %p444
        $region78: #{tpu_custom_call.1} parent=11 // pred_check_branch
          %608 = sbr.rel (%p606) target = $region80
        $region79: #{tpu_custom_call.1} parent=11 // pred_region
          _
        $region80: #{tpu_custom_call.1} parent=11 // pred_fallthru
          _
        // Predicated region
        $region81: #{tpu_custom_call.1} parent=11 // pred_check
          %p609 = pneg %p465
        $region82: #{tpu_custom_call.1} parent=11 // pred_check_branch
          %611 = sbr.rel (%p609) target = $region84
        $region83: #{tpu_custom_call.1} parent=11 // pred_region
          _
        $region84: #{tpu_custom_call.1} parent=11 // pred_fallthru
          _
      $region12: #{tpu_custom_call.1} parent=5 // pred_fallthru
        _
      %p612 = scmp.lt.s32.totalorder %s35, 2
      // Predicated region
      $region85: #{tpu_custom_call.1} parent=5 // pred_check
        %p613 = pneg %p612
      $region86: #{tpu_custom_call.1} parent=5 // pred_check_branch
        %615 = sbr.rel (%p613) target = $region88
      $region87: #{tpu_custom_call.1} parent=5 // pred_region
        // Predicated region
        $region89: #{tpu_custom_call.1} parent=87 // pred_check
          %p616 = pneg %p55
        $region90: #{tpu_custom_call.1} parent=87 // pred_check_branch
          %618 = sbr.rel (%p616) target = $region92
        $region91: #{tpu_custom_call.1} parent=87 // pred_region
          %p619 = scmp.lt.s32.totalorder %s35, 1
          %s620 = scalar_select %p619, %s35, 1
          %s621 = smul.addr %s620, 7
          %s622 = smul.addr %s621, 8
          %s623 = scalar_lea.vmem %s0, %s622
        $region92: #{tpu_custom_call.1} parent=87 // pred_fallthru
          _
        // Predicated region
        $region93: #{tpu_custom_call.1} parent=87 // pred_check
          %p624 = pneg %p81
        $region94: #{tpu_custom_call.1} parent=87 // pred_check_branch
          %626 = sbr.rel (%p624) target = $region96
        $region95: #{tpu_custom_call.1} parent=87 // pred_region
          %p627 = scmp.lt.s32.totalorder %s35, 1
          %s628 = scalar_select %p627, %s35, 1
          %s629 = smul.addr %s628, 8
          %s630 = scalar_lea.vmem %s1, %s629
        $region96: #{tpu_custom_call.1} parent=87 // pred_fallthru
          _
      $region88: #{tpu_custom_call.1} parent=5 // pred_fallthru
        _
      %p631 = scmp.le.s32.totalorder 1, %s35
      %p632 = scmp.lt.s32.totalorder %s35, 3
      %p633 = pnand %p631, %p632
      %p634 = pneg %p633
      // Predicated region
      $region97: #{tpu_custom_call.1} parent=5 // pred_check
        _
      $region98: #{tpu_custom_call.1} parent=5 // pred_check_branch
        %636 = sbr.rel (%p633) target = $region100
      $region99: #{tpu_custom_call.1} parent=5 // pred_region
        %s637 = ssub.s32 %s35, 1
        %p638 = scmp.lt.s32.totalorder %s40, 1
        %s639 = scalar_select %p638, %s40, 1
        %s640 = smul.addr %s639, 7
        %s641 = smul.addr %s640, 8
        %s642 = scalar_lea.vmem %s0, %s641
        %p643 = pneg %p61
        %p644 = pneg %p58
        %p645 = scmp.lt.s32.totalorder %s40, 1
        %s646 = scalar_select %p645, %s40, 1
        %s647 = smul.addr %s646, 8
        %s648 = scalar_lea.vmem %s1, %s647
        %p649 = pneg %p87
        %p650 = pneg %p84
        %p651 = pneg %p108
        %p652 = pneg %p105
        %p653 = pneg %p129
        %p654 = pneg %p126
        %p655 = pneg %p150
        %p656 = pneg %p147
        %p657 = pneg %p171
        %p658 = pneg %p168
        %p659 = pneg %p192
        %p660 = pneg %p189
        %p661 = pneg %p213
        %p662 = pneg %p210
        %p663 = pneg %p234
        %p664 = pneg %p231
        %p665 = pneg %p255
        %p666 = pneg %p252
        %p667 = pneg %p276
        %p668 = pneg %p273
        %p669 = pneg %p297
        %p670 = pneg %p294
        %p671 = pneg %p318
        %p672 = pneg %p315
        %p673 = pneg %p339
        %p674 = pneg %p336
        %p675 = pneg %p360
        %p676 = pneg %p357
        %p677 = pneg %p381
        %p678 = pneg %p378
        %p679 = pneg %p402
        %p680 = pneg %p399
        %p681 = pneg %p423
        %p682 = pneg %p420
        %p683 = pneg %p444
        %p684 = pneg %p441
        %p685 = pneg %p465
        %p686 = pneg %p462
        %p687 = pneg %p491
        %p688 = pneg %p488
        %s689 = sand.u32 %s478, 1
        %s690 = scalar_lea.sflag [#allocation3], %s689
        %s691 = sand.u32 %s478, 1
        %s692 = smul.addr %s691, 56
        %s693 = scalar_lea.vmem [#allocation2], %s692
        %p694 = pneg %p517
        %p695 = pneg %p514
        %s696 = sand.u32 %s40, 1
        %s697 = scalar_lea.sflag [#allocation5], %s696
        %s698 = sand.u32 %s504, 1
        %s699 = smul.addr %s698, 8
        %s700 = scalar_lea.vmem [#allocation4], %s699
        %p701 = pneg %p543
        %p702 = pneg %p540
        %s703 = sand.u32 %s40, 1
        %s704 = scalar_lea.sflag [#allocation5], %s703
        %s705 = sand.u32 %s530, 1
        %s706 = smul.addr %s705, 8
        %s707 = scalar_lea.vmem [#allocation6], %s706
        %p708 = scmp.lt.s32.totalorder %s40, 1
        %s709 = scalar_select %p708, %s40, 1
        %s710 = smul.addr %s709, 7
        %s711 = smul.addr %s710, 8
        %s712 = scalar_lea.vmem %s0, %s711
        %p713 = scmp.lt.s32.totalorder %s40, 1
        %s714 = scalar_select %p713, %s40, 1
        %s715 = smul.addr %s714, 8
        %s716 = scalar_lea.vmem %s1, %s715
        %v717 = vld [vmem:[%s712] sm:$0xff]
        %v718 = vld [vmem:[%s712 + $0x8] sm:$0xff]
        %v719 = vld [vmem:[%s712 + $0x10] sm:$0xff]
        %v720 = vld [vmem:[%s712 + $0x18] sm:$0xff]
        %v721 = vld [vmem:[%s712 + $0x20] sm:$0xff]
        %v722 = vld [vmem:[%s712 + $0x28] sm:$0xff]
        %v723 = vld [vmem:[%s712 + $0x30] sm:$0xff]
        %v724 = vld [vmem:[%s2] sm:$0xff]
        %v725 = vld [vmem:[%s2 + $0x8] sm:$0xff]
        %v726 = vld [vmem:[%s2 + $0x10] sm:$0xff]
        %v727 = vld [vmem:[%s2 + $0x18] sm:$0xff]
        %v728 = vld [vmem:[%s2 + $0x20] sm:$0xff]
        %v729 = vld [vmem:[%s2 + $0x28] sm:$0xff]
        %v730 = vld [vmem:[%s2 + $0x30] sm:$0xff]
        %v731 = vld [vmem:[%s2 + $0x38] sm:$0xff]
        %v732 = vld [vmem:[%s2 + $0x40] sm:$0xff]
        %v733 = vld [vmem:[%s2 + $0x48] sm:$0xff]
        %v734 = vld [vmem:[%s2 + $0x50] sm:$0xff]
        %v735 = vld [vmem:[%s2 + $0x58] sm:$0xff]
        %v736 = vld [vmem:[%s2 + $0x60] sm:$0xff]
        %v737 = vld [vmem:[%s2 + $0x68] sm:$0xff]
        %v738 = vld [vmem:[%s2 + $0x70] sm:$0xff]
        %v739 = vld [vmem:[%s2 + $0x78] sm:$0xff]
        %v740 = vld [vmem:[%s2 + $0x80] sm:$0xff]
        %v741 = vld [vmem:[%s2 + $0x88] sm:$0xff]
        %v742 = vld [vmem:[%s2 + $0x90] sm:$0xff]
        %v743 = vld [vmem:[%s2 + $0x98] sm:$0xff]
        %v744 = vld [vmem:[%s2 + $0xa0] sm:$0xff]
        %v745 = vld [vmem:[%s2 + $0xa8] sm:$0xff]
        %v746 = vld [vmem:[%s2 + $0xb0] sm:$0xff]
        %v747 = vld [vmem:[%s2 + $0xb8] sm:$0xff]
        %v748 = vld [vmem:[%s2 + $0xc0] sm:$0xff]
        %v749 = vld [vmem:[%s2 + $0xc8] sm:$0xff]
        %v750 = vld [vmem:[%s2 + $0xd0] sm:$0xff]
        %v751 = vld [vmem:[%s2 + $0xd8] sm:$0xff]
        %v752 = vld [vmem:[%s2 + $0xe0] sm:$0xff]
        %v753 = vld [vmem:[%s2 + $0xe8] sm:$0xff]
        %v754 = vld [vmem:[%s2 + $0xf0] sm:$0xff]
        %v755 = vld [vmem:[%s2 + $0xf8] sm:$0xff]
        %v756 = vld [vmem:[%s2 + $0x100] sm:$0xff]
        %v757 = vld [vmem:[%s2 + $0x108] sm:$0xff]
        %v758 = vld [vmem:[%s2 + $0x110] sm:$0xff]
        %v759 = vld [vmem:[%s2 + $0x118] sm:$0xff]
        %v760 = vld [vmem:[%s2 + $0x120] sm:$0xff]
        %v761 = vld [vmem:[%s2 + $0x128] sm:$0xff]
        %v762 = vld [vmem:[%s2 + $0x130] sm:$0xff]
        %v763 = vld [vmem:[%s2 + $0x138] sm:$0xff]
        %v764 = vld [vmem:[%s2 + $0x140] sm:$0xff]
        %v765 = vld [vmem:[%s2 + $0x148] sm:$0xff]
        %v766 = vld [vmem:[%s2 + $0x150] sm:$0xff]
        %v767 = vld [vmem:[%s2 + $0x158] sm:$0xff]
        %v768 = vld [vmem:[%s2 + $0x160] sm:$0xff]
        %v769 = vld [vmem:[%s2 + $0x168] sm:$0xff]
        %v770 = vld [vmem:[%s2 + $0x170] sm:$0xff]
        %v771 = vld [vmem:[%s2 + $0x178] sm:$0xff]
        %v772 = vld [vmem:[%s2 + $0x180] sm:$0xff]
        %v773 = vld [vmem:[%s2 + $0x188] sm:$0xff]
        %v774 = vld [vmem:[%s2 + $0x190] sm:$0xff]
        %v775 = vld [vmem:[%s2 + $0x198] sm:$0xff]
        %v776 = vld [vmem:[%s2 + $0x1a0] sm:$0xff]
        %v777 = vld [vmem:[%s2 + $0x1a8] sm:$0xff]
        %v778 = vld [vmem:[%s2 + $0x1b0] sm:$0xff]
        %v779 = vld [vmem:[%s2 + $0x1b8] sm:$0xff]
        %v780 = vld [vmem:[%s2 + $0x1c0] sm:$0xff]
        %v781 = vld [vmem:[%s2 + $0x1c8] sm:$0xff]
        %v782 = vld [vmem:[%s2 + $0x1d0] sm:$0xff]
        %v783 = vld [vmem:[%s2 + $0x1d8] sm:$0xff]
        %v784 = vld [vmem:[%s2 + $0x1e0] sm:$0xff]
        %v785 = vld [vmem:[%s2 + $0x1e8] sm:$0xff]
        %v786 = vld [vmem:[%s2 + $0x1f0] sm:$0xff]
        %v787 = vld [vmem:[%s2 + $0x1f8] sm:$0xff]
        %v788 = vld [vmem:[%s2 + $0x200] sm:$0xff]
        %v789 = vld [vmem:[%s2 + $0x208] sm:$0xff]
        %v790 = vld [vmem:[%s2 + $0x210] sm:$0xff]
        %v791 = vld [vmem:[%s2 + $0x218] sm:$0xff]
        %v792 = vld [vmem:[%s2 + $0x220] sm:$0xff]
        %v793 = vld [vmem:[%s2 + $0x228] sm:$0xff]
        %v794 = vld [vmem:[%s2 + $0x230] sm:$0xff]
        %v795 = vld [vmem:[%s2 + $0x238] sm:$0xff]
        %v796 = vld [vmem:[%s2 + $0x240] sm:$0xff]
        %v797 = vld [vmem:[%s2 + $0x248] sm:$0xff]
        %v798 = vld [vmem:[%s2 + $0x250] sm:$0xff]
        %v799 = vld [vmem:[%s2 + $0x258] sm:$0xff]
        %v800 = vld [vmem:[%s2 + $0x260] sm:$0xff]
        %v801 = vld [vmem:[%s2 + $0x268] sm:$0xff]
        %v802 = vld [vmem:[%s2 + $0x270] sm:$0xff]
        %v803 = vld [vmem:[%s2 + $0x278] sm:$0xff]
        %v804 = vld [vmem:[%s2 + $0x280] sm:$0xff]
        %v805 = vld [vmem:[%s2 + $0x288] sm:$0xff]
        %v806 = vld [vmem:[%s2 + $0x290] sm:$0xff]
        %v807 = vld [vmem:[%s2 + $0x298] sm:$0xff]
        %v808 = vld [vmem:[%s2 + $0x2a0] sm:$0xff]
        %v809 = vld [vmem:[%s2 + $0x2a8] sm:$0xff]
        %v810 = vld [vmem:[%s2 + $0x2b0] sm:$0xff]
        %v811 = vld [vmem:[%s2 + $0x2b8] sm:$0xff]
        %v812 = vld [vmem:[%s2 + $0x2c0] sm:$0xff]
        %v813 = vld [vmem:[%s2 + $0x2c8] sm:$0xff]
        %v814 = vld [vmem:[%s2 + $0x2d0] sm:$0xff]
        %v815 = vld [vmem:[%s2 + $0x2d8] sm:$0xff]
        %v816 = vld [vmem:[%s2 + $0x2e0] sm:$0xff]
        %v817 = vld [vmem:[%s2 + $0x2e8] sm:$0xff]
        %v818 = vld [vmem:[%s2 + $0x2f0] sm:$0xff]
        %v819 = vld [vmem:[%s2 + $0x2f8] sm:$0xff]
        %v820 = vld [vmem:[%s2 + $0x300] sm:$0xff]
        %v821 = vld [vmem:[%s2 + $0x308] sm:$0xff]
        %v822 = vld [vmem:[%s2 + $0x310] sm:$0xff]
        %v823 = vld [vmem:[%s2 + $0x318] sm:$0xff]
        %v824 = vld [vmem:[%s2 + $0x320] sm:$0xff]
        %v825 = vld [vmem:[%s2 + $0x328] sm:$0xff]
        %v826 = vld [vmem:[%s2 + $0x330] sm:$0xff]
        %v827 = vld [vmem:[%s2 + $0x338] sm:$0xff]
        %v828 = vld [vmem:[%s2 + $0x340] sm:$0xff]
        %v829 = vld [vmem:[%s2 + $0x348] sm:$0xff]
        %v830 = vld [vmem:[%s2 + $0x350] sm:$0xff]
        %v831 = vld [vmem:[%s2 + $0x358] sm:$0xff]
        %v832 = vld [vmem:[%s2 + $0x360] sm:$0xff]
        %v833 = vld [vmem:[%s2 + $0x368] sm:$0xff]
        %v834 = vld [vmem:[%s2 + $0x370] sm:$0xff]
        %v835 = vld [vmem:[%s2 + $0x378] sm:$0xff]
        %v836 = vld [vmem:[%s2 + $0x380] sm:$0xff]
        %v837 = vld [vmem:[%s2 + $0x388] sm:$0xff]
        %v838 = vld [vmem:[%s2 + $0x390] sm:$0xff]
        %v839 = vld [vmem:[%s2 + $0x398] sm:$0xff]
        %v840 = vld [vmem:[%s2 + $0x3a0] sm:$0xff]
        %v841 = vld [vmem:[%s2 + $0x3a8] sm:$0xff]
        %v842 = vld [vmem:[%s2 + $0x3b0] sm:$0xff]
        %v843 = vld [vmem:[%s2 + $0x3b8] sm:$0xff]
        %v844 = vld [vmem:[%s2 + $0x3c0] sm:$0xff]
        %v845 = vld [vmem:[%s2 + $0x3c8] sm:$0xff]
        %v846 = vld [vmem:[%s2 + $0x3d0] sm:$0xff]
        %v847 = vld [vmem:[%s2 + $0x3d8] sm:$0xff]
        %v848 = vld [vmem:[%s2 + $0x3e0] sm:$0xff]
        %v849 = vld [vmem:[%s2 + $0x3e8] sm:$0xff]
        %v850 = vld [vmem:[%s2 + $0x3f0] sm:$0xff]
        %v851 = vld [vmem:[%s2 + $0x3f8] sm:$0xff]
        %v852 = vld [vmem:[%s2 + $0x400] sm:$0xff]
        %v853 = vld [vmem:[%s2 + $0x408] sm:$0xff]
        %v854 = vld [vmem:[%s2 + $0x410] sm:$0xff]
        %v855 = vld [vmem:[%s2 + $0x418] sm:$0xff]
        %v856 = vld [vmem:[%s2 + $0x420] sm:$0xff]
        %v857 = vld [vmem:[%s2 + $0x428] sm:$0xff]
        %v858 = vld [vmem:[%s2 + $0x430] sm:$0xff]
        %v859 = vld [vmem:[%s2 + $0x438] sm:$0xff]
        %v860 = vld [vmem:[%s2 + $0x440] sm:$0xff]
        %v861 = vld [vmem:[%s2 + $0x448] sm:$0xff]
        %v862 = vld [vmem:[%s2 + $0x450] sm:$0xff]
        %v863 = vld [vmem:[%s2 + $0x458] sm:$0xff]
        %v864 = vld [vmem:[%s2 + $0x460] sm:$0xff]
        %v865 = vld [vmem:[%s2 + $0x468] sm:$0xff]
        %v866 = vld [vmem:[%s2 + $0x470] sm:$0xff]
        %v867 = vld [vmem:[%s2 + $0x478] sm:$0xff]
        %v868 = vld [vmem:[%s2 + $0x480] sm:$0xff]
        %v869 = vld [vmem:[%s2 + $0x488] sm:$0xff]
        %v870 = vld [vmem:[%s2 + $0x490] sm:$0xff]
        %v871 = vld [vmem:[%s2 + $0x498] sm:$0xff]
        %v872 = vld [vmem:[%s2 + $0x4a0] sm:$0xff]
        %v873 = vld [vmem:[%s2 + $0x4a8] sm:$0xff]
        %v874 = vld [vmem:[%s2 + $0x4b0] sm:$0xff]
        %v875 = vld [vmem:[%s2 + $0x4b8] sm:$0xff]
        %v876 = vld [vmem:[%s2 + $0x4c0] sm:$0xff]
        %v877 = vld [vmem:[%s2 + $0x4c8] sm:$0xff]
        %v878 = vld [vmem:[%s2 + $0x4d0] sm:$0xff]
        %v879 = vld [vmem:[%s2 + $0x4d8] sm:$0xff]
        %v880 = vld [vmem:[%s2 + $0x4e0] sm:$0xff]
        %v881 = vld [vmem:[%s2 + $0x4e8] sm:$0xff]
        %v882 = vld [vmem:[%s2 + $0x4f0] sm:$0xff]
        %v883 = vld [vmem:[%s2 + $0x4f8] sm:$0xff]
        %v884 = vld [vmem:[%s2 + $0x500] sm:$0xff]
        %v885 = vld [vmem:[%s2 + $0x508] sm:$0xff]
        %v886 = vld [vmem:[%s2 + $0x510] sm:$0xff]
        %v887 = vld [vmem:[%s2 + $0x518] sm:$0xff]
        %v888 = vld [vmem:[%s2 + $0x520] sm:$0xff]
        %v889 = vld [vmem:[%s2 + $0x528] sm:$0xff]
        %v890 = vld [vmem:[%s2 + $0x530] sm:$0xff]
        %v891 = vld [vmem:[%s2 + $0x538] sm:$0xff]
        %v892 = vld [vmem:[%s2 + $0x540] sm:$0xff]
        %v893 = vld [vmem:[%s2 + $0x548] sm:$0xff]
        %v894 = vld [vmem:[%s2 + $0x550] sm:$0xff]
        %v895 = vld [vmem:[%s2 + $0x558] sm:$0xff]
        %v896 = vld [vmem:[%s2 + $0x560] sm:$0xff]
        %v897 = vld [vmem:[%s2 + $0x568] sm:$0xff]
        %v898 = vld [vmem:[%s2 + $0x570] sm:$0xff]
        %v899 = vld [vmem:[%s2 + $0x578] sm:$0xff]
        %v900 = vld [vmem:[%s2 + $0x580] sm:$0xff]
        %v901 = vld [vmem:[%s2 + $0x588] sm:$0xff]
        %v902 = vld [vmem:[%s2 + $0x590] sm:$0xff]
        %v903 = vld [vmem:[%s2 + $0x598] sm:$0xff]
        %v904 = vld [vmem:[%s2 + $0x5a0] sm:$0xff]
        %v905 = vld [vmem:[%s2 + $0x5a8] sm:$0xff]
        %v906 = vld [vmem:[%s2 + $0x5b0] sm:$0xff]
        %v907 = vld [vmem:[%s2 + $0x5b8] sm:$0xff]
        %v908 = vld [vmem:[%s2 + $0x5c0] sm:$0xff]
        %v909 = vld [vmem:[%s2 + $0x5c8] sm:$0xff]
        %v910 = vld [vmem:[%s2 + $0x5d0] sm:$0xff]
        %v911 = vld [vmem:[%s2 + $0x5d8] sm:$0xff]
        %v912 = vld [vmem:[%s2 + $0x5e0] sm:$0xff]
        %v913 = vld [vmem:[%s2 + $0x5e8] sm:$0xff]
        %v914 = vld [vmem:[%s2 + $0x5f0] sm:$0xff]
        %v915 = vld [vmem:[%s2 + $0x5f8] sm:$0xff]
        %v916 = vld [vmem:[%s2 + $0x600] sm:$0xff]
        %v917 = vld [vmem:[%s2 + $0x608] sm:$0xff]
        %v918 = vld [vmem:[%s2 + $0x610] sm:$0xff]
        %v919 = vld [vmem:[%s2 + $0x618] sm:$0xff]
        %v920 = vld [vmem:[%s2 + $0x620] sm:$0xff]
        %v921 = vld [vmem:[%s2 + $0x628] sm:$0xff]
        %v922 = vld [vmem:[%s2 + $0x630] sm:$0xff]
        %v923 = vld [vmem:[%s2 + $0x638] sm:$0xff]
        %v924 = vld [vmem:[%s2 + $0x640] sm:$0xff]
        %v925 = vld [vmem:[%s2 + $0x648] sm:$0xff]
        %v926 = vld [vmem:[%s2 + $0x650] sm:$0xff]
        %v927 = vld [vmem:[%s2 + $0x658] sm:$0xff]
        %v928 = vld [vmem:[%s2 + $0x660] sm:$0xff]
        %v929 = vld [vmem:[%s2 + $0x668] sm:$0xff]
        %v930 = vld [vmem:[%s2 + $0x670] sm:$0xff]
        %v931 = vld [vmem:[%s2 + $0x678] sm:$0xff]
        %v932 = vld [vmem:[%s2 + $0x680] sm:$0xff]
        %v933 = vld [vmem:[%s2 + $0x688] sm:$0xff]
        %v934 = vld [vmem:[%s2 + $0x690] sm:$0xff]
        %v935 = vld [vmem:[%s2 + $0x698] sm:$0xff]
        %v936 = vld [vmem:[%s2 + $0x6a0] sm:$0xff]
        %v937 = vld [vmem:[%s2 + $0x6a8] sm:$0xff]
        %v938 = vld [vmem:[%s2 + $0x6b0] sm:$0xff]
        %v939 = vld [vmem:[%s2 + $0x6b8] sm:$0xff]
        %v940 = vld [vmem:[%s2 + $0x6c0] sm:$0xff]
        %v941 = vld [vmem:[%s2 + $0x6c8] sm:$0xff]
        %v942 = vld [vmem:[%s2 + $0x6d0] sm:$0xff]
        %v943 = vld [vmem:[%s2 + $0x6d8] sm:$0xff]
        %v944 = vld [vmem:[%s2 + $0x6e0] sm:$0xff]
        %v945 = vld [vmem:[%s2 + $0x6e8] sm:$0xff]
        %v946 = vld [vmem:[%s2 + $0x6f0] sm:$0xff]
        %v947 = vld [vmem:[%s2 + $0x6f8] sm:$0xff]
        %v948 = vld [vmem:[%s2 + $0x700] sm:$0xff]
        %v949 = vld [vmem:[%s2 + $0x708] sm:$0xff]
        %v950 = vld [vmem:[%s2 + $0x710] sm:$0xff]
        %v951 = vld [vmem:[%s2 + $0x718] sm:$0xff]
        %v952 = vld [vmem:[%s2 + $0x720] sm:$0xff]
        %v953 = vld [vmem:[%s2 + $0x728] sm:$0xff]
        %v954 = vld [vmem:[%s2 + $0x730] sm:$0xff]
        %v955 = vld [vmem:[%s2 + $0x738] sm:$0xff]
        %v956 = vld [vmem:[%s2 + $0x740] sm:$0xff]
        %v957 = vld [vmem:[%s2 + $0x748] sm:$0xff]
        %v958 = vld [vmem:[%s2 + $0x750] sm:$0xff]
        %v959 = vld [vmem:[%s2 + $0x758] sm:$0xff]
        %v960 = vld [vmem:[%s2 + $0x760] sm:$0xff]
        %v961 = vld [vmem:[%s2 + $0x768] sm:$0xff]
        %v962 = vld [vmem:[%s2 + $0x770] sm:$0xff]
        %v963 = vld [vmem:[%s2 + $0x778] sm:$0xff]
        %v964 = vld [vmem:[%s2 + $0x780] sm:$0xff]
        %v965 = vld [vmem:[%s2 + $0x788] sm:$0xff]
        %v966 = vld [vmem:[%s2 + $0x790] sm:$0xff]
        %v967 = vld [vmem:[%s2 + $0x798] sm:$0xff]
        %v968 = vld [vmem:[%s2 + $0x7a0] sm:$0xff]
        %v969 = vld [vmem:[%s2 + $0x7a8] sm:$0xff]
        %v970 = vld [vmem:[%s2 + $0x7b0] sm:$0xff]
        %v971 = vld [vmem:[%s2 + $0x7b8] sm:$0xff]
        %v972 = vld [vmem:[%s2 + $0x7c0] sm:$0xff]
        %v973 = vld [vmem:[%s2 + $0x7c8] sm:$0xff]
        %v974 = vld [vmem:[%s2 + $0x7d0] sm:$0xff]
        %v975 = vld [vmem:[%s2 + $0x7d8] sm:$0xff]
        %v976 = vld [vmem:[%s2 + $0x7e0] sm:$0xff]
        %v977 = vld [vmem:[%s2 + $0x7e8] sm:$0xff]
        %v978 = vld [vmem:[%s2 + $0x7f0] sm:$0xff]
        %v979 = vld [vmem:[%s2 + $0x7f8] sm:$0xff]
        %v980 = vld [vmem:[%s2 + $0x800] sm:$0xff]
        %v981 = vld [vmem:[%s2 + $0x808] sm:$0xff]
        %v982 = vld [vmem:[%s2 + $0x810] sm:$0xff]
        %v983 = vld [vmem:[%s2 + $0x818] sm:$0xff]
        %v984 = vld [vmem:[%s2 + $0x820] sm:$0xff]
        %v985 = vld [vmem:[%s2 + $0x828] sm:$0xff]
        %v986 = vld [vmem:[%s2 + $0x830] sm:$0xff]
        %v987 = vld [vmem:[%s2 + $0x838] sm:$0xff]
        %v988 = vld [vmem:[%s2 + $0x840] sm:$0xff]
        %v989 = vld [vmem:[%s2 + $0x848] sm:$0xff]
        %v990 = vld [vmem:[%s2 + $0x850] sm:$0xff]
        %v991 = vld [vmem:[%s2 + $0x858] sm:$0xff]
        %v992 = vld [vmem:[%s2 + $0x860] sm:$0xff]
        %v993 = vld [vmem:[%s2 + $0x868] sm:$0xff]
        %v994 = vld [vmem:[%s2 + $0x870] sm:$0xff]
        %v995 = vld [vmem:[%s2 + $0x878] sm:$0xff]
        %v996 = vld [vmem:[%s2 + $0x880] sm:$0xff]
        %v997 = vld [vmem:[%s2 + $0x888] sm:$0xff]
        %v998 = vld [vmem:[%s2 + $0x890] sm:$0xff]
        %v999 = vld [vmem:[%s2 + $0x898] sm:$0xff]
        %v1000 = vld [vmem:[%s2 + $0x8a0] sm:$0xff]
        %v1001 = vld [vmem:[%s2 + $0x8a8] sm:$0xff]
        %v1002 = vld [vmem:[%s2 + $0x8b0] sm:$0xff]
        %v1003 = vld [vmem:[%s2 + $0x8b8] sm:$0xff]
        %v1004 = vld [vmem:[%s2 + $0x8c0] sm:$0xff]
        %v1005 = vld [vmem:[%s2 + $0x8c8] sm:$0xff]
        %v1006 = vld [vmem:[%s2 + $0x8d0] sm:$0xff]
        %v1007 = vld [vmem:[%s2 + $0x8d8] sm:$0xff]
        %v1008 = vld [vmem:[%s2 + $0x8e0] sm:$0xff]
        %v1009 = vld [vmem:[%s2 + $0x8e8] sm:$0xff]
        %v1010 = vld [vmem:[%s2 + $0x8f0] sm:$0xff]
        %v1011 = vld [vmem:[%s2 + $0x8f8] sm:$0xff]
        %v1012 = vld [vmem:[%s2 + $0x900] sm:$0xff]
        %v1013 = vld [vmem:[%s2 + $0x908] sm:$0xff]
        %v1014 = vld [vmem:[%s2 + $0x910] sm:$0xff]
        %v1015 = vld [vmem:[%s2 + $0x918] sm:$0xff]
        %v1016 = vld [vmem:[%s2 + $0x920] sm:$0xff]
        %v1017 = vld [vmem:[%s2 + $0x928] sm:$0xff]
        %v1018 = vld [vmem:[%s2 + $0x930] sm:$0xff]
        %v1019 = vld [vmem:[%s2 + $0x938] sm:$0xff]
        %v1020 = vld [vmem:[%s2 + $0x940] sm:$0xff]
        %v1021 = vld [vmem:[%s2 + $0x948] sm:$0xff]
        %v1022 = vld [vmem:[%s2 + $0x950] sm:$0xff]
        %v1023 = vld [vmem:[%s2 + $0x958] sm:$0xff]
        %v1024 = vld [vmem:[%s2 + $0x960] sm:$0xff]
        %v1025 = vld [vmem:[%s2 + $0x968] sm:$0xff]
        %v1026 = vld [vmem:[%s2 + $0x970] sm:$0xff]
        %v1027 = vld [vmem:[%s2 + $0x978] sm:$0xff]
        %v1028 = vld [vmem:[%s2 + $0x980] sm:$0xff]
        %v1029 = vld [vmem:[%s2 + $0x988] sm:$0xff]
        %v1030 = vld [vmem:[%s2 + $0x990] sm:$0xff]
        %v1031 = vld [vmem:[%s2 + $0x998] sm:$0xff]
        %v1032 = vld [vmem:[%s2 + $0x9a0] sm:$0xff]
        %v1033 = vld [vmem:[%s2 + $0x9a8] sm:$0xff]
        %v1034 = vld [vmem:[%s2 + $0x9b0] sm:$0xff]
        %v1035 = vld [vmem:[%s2 + $0x9b8] sm:$0xff]
        %v1036 = vld [vmem:[%s2 + $0x9c0] sm:$0xff]
        %v1037 = vld [vmem:[%s2 + $0x9c8] sm:$0xff]
        %v1038 = vld [vmem:[%s2 + $0x9d0] sm:$0xff]
        %v1039 = vld [vmem:[%s2 + $0x9d8] sm:$0xff]
        %v1040 = vld [vmem:[%s2 + $0x9e0] sm:$0xff]
        %v1041 = vld [vmem:[%s2 + $0x9e8] sm:$0xff]
        %v1042 = vld [vmem:[%s2 + $0x9f0] sm:$0xff]
        %v1043 = vld [vmem:[%s2 + $0x9f8] sm:$0xff]
        %v1044 = vld [vmem:[%s2 + $0xa00] sm:$0xff]
        %v1045 = vld [vmem:[%s2 + $0xa08] sm:$0xff]
        %v1046 = vld [vmem:[%s2 + $0xa10] sm:$0xff]
        %v1047 = vld [vmem:[%s2 + $0xa18] sm:$0xff]
        %v1048 = vld [vmem:[%s2 + $0xa20] sm:$0xff]
        %v1049 = vld [vmem:[%s2 + $0xa28] sm:$0xff]
        %v1050 = vld [vmem:[%s2 + $0xa30] sm:$0xff]
        %v1051 = vld [vmem:[%s2 + $0xa38] sm:$0xff]
        %v1052 = vld [vmem:[%s2 + $0xa40] sm:$0xff]
        %v1053 = vld [vmem:[%s2 + $0xa48] sm:$0xff]
        %v1054 = vld [vmem:[%s2 + $0xa50] sm:$0xff]
        %v1055 = vld [vmem:[%s2 + $0xa58] sm:$0xff]
        %v1056 = vld [vmem:[%s2 + $0xa60] sm:$0xff]
        %v1057 = vld [vmem:[%s2 + $0xa68] sm:$0xff]
        %v1058 = vld [vmem:[%s2 + $0xa70] sm:$0xff]
        %v1059 = vld [vmem:[%s2 + $0xa78] sm:$0xff]
        %v1060 = vld [vmem:[%s2 + $0xa80] sm:$0xff]
        %v1061 = vld [vmem:[%s2 + $0xa88] sm:$0xff]
        %v1062 = vld [vmem:[%s2 + $0xa90] sm:$0xff]
        %v1063 = vld [vmem:[%s2 + $0xa98] sm:$0xff]
        %v1064 = vld [vmem:[%s2 + $0xaa0] sm:$0xff]
        %v1065 = vld [vmem:[%s2 + $0xaa8] sm:$0xff]
        %v1066 = vld [vmem:[%s2 + $0xab0] sm:$0xff]
        %v1067 = vld [vmem:[%s2 + $0xab8] sm:$0xff]
        %v1068 = vld [vmem:[%s2 + $0xac0] sm:$0xff]
        %v1069 = vld [vmem:[%s2 + $0xac8] sm:$0xff]
        %v1070 = vld [vmem:[%s2 + $0xad0] sm:$0xff]
        %v1071 = vld [vmem:[%s2 + $0xad8] sm:$0xff]
        %v1072 = vld [vmem:[%s2 + $0xae0] sm:$0xff]
        %v1073 = vld [vmem:[%s2 + $0xae8] sm:$0xff]
        %v1074 = vld [vmem:[%s2 + $0xaf0] sm:$0xff]
        %v1075 = vld [vmem:[%s2 + $0xaf8] sm:$0xff]
        %v1076 = vld [vmem:[%s2 + $0xb00] sm:$0xff]
        %v1077 = vld [vmem:[%s2 + $0xb08] sm:$0xff]
        %v1078 = vld [vmem:[%s2 + $0xb10] sm:$0xff]
        %v1079 = vld [vmem:[%s2 + $0xb18] sm:$0xff]
        %v1080 = vld [vmem:[%s2 + $0xb20] sm:$0xff]
        %v1081 = vld [vmem:[%s2 + $0xb28] sm:$0xff]
        %v1082 = vld [vmem:[%s2 + $0xb30] sm:$0xff]
        %v1083 = vld [vmem:[%s2 + $0xb38] sm:$0xff]
        %v1084 = vld [vmem:[%s2 + $0xb40] sm:$0xff]
        %v1085 = vld [vmem:[%s2 + $0xb48] sm:$0xff]
        %v1086 = vld [vmem:[%s2 + $0xb50] sm:$0xff]
        %v1087 = vld [vmem:[%s2 + $0xb58] sm:$0xff]
        %v1088 = vld [vmem:[%s2 + $0xb60] sm:$0xff]
        %v1089 = vld [vmem:[%s2 + $0xb68] sm:$0xff]
        %v1090 = vld [vmem:[%s2 + $0xb70] sm:$0xff]
        %v1091 = vld [vmem:[%s2 + $0xb78] sm:$0xff]
        %v1092 = vld [vmem:[%s2 + $0xb80] sm:$0xff]
        %v1093 = vld [vmem:[%s2 + $0xb88] sm:$0xff]
        %v1094 = vld [vmem:[%s2 + $0xb90] sm:$0xff]
        %v1095 = vld [vmem:[%s2 + $0xb98] sm:$0xff]
        %v1096 = vld [vmem:[%s2 + $0xba0] sm:$0xff]
        %v1097 = vld [vmem:[%s2 + $0xba8] sm:$0xff]
        %v1098 = vld [vmem:[%s2 + $0xbb0] sm:$0xff]
        %v1099 = vld [vmem:[%s2 + $0xbb8] sm:$0xff]
        %v1100 = vld [vmem:[%s2 + $0xbc0] sm:$0xff]
        %v1101 = vld [vmem:[%s2 + $0xbc8] sm:$0xff]
        %v1102 = vld [vmem:[%s2 + $0xbd0] sm:$0xff]
        %v1103 = vld [vmem:[%s2 + $0xbd8] sm:$0xff]
        %v1104 = vld [vmem:[%s2 + $0xbe0] sm:$0xff]
        %v1105 = vld [vmem:[%s2 + $0xbe8] sm:$0xff]
        %v1106 = vld [vmem:[%s2 + $0xbf0] sm:$0xff]
        %v1107 = vld [vmem:[%s2 + $0xbf8] sm:$0xff]
        %v1108 = vld [vmem:[%s2 + $0xc00] sm:$0xff]
        %v1109 = vld [vmem:[%s2 + $0xc08] sm:$0xff]
        %v1110 = vld [vmem:[%s2 + $0xc10] sm:$0xff]
        %v1111 = vld [vmem:[%s2 + $0xc18] sm:$0xff]
        %v1112 = vld [vmem:[%s2 + $0xc20] sm:$0xff]
        %v1113 = vld [vmem:[%s2 + $0xc28] sm:$0xff]
        %v1114 = vld [vmem:[%s2 + $0xc30] sm:$0xff]
        %v1115 = vld [vmem:[%s2 + $0xc38] sm:$0xff]
        %v1116 = vld [vmem:[%s3] sm:$0xf]
        %v1118 = vlaneseq
        %v1119 = vshrl.u32 %v1118, 7
        %v1120 = vsub.s32 0, %v1119
        %v1121 = vrot.slane %v1116, %v1120
        %v1122 = vlaneseq
        %v1123 = vshrl.u32 %v1122, 7
        %v1124 = vsub.s32 1, %v1123
        %v1125 = vrot.slane %v1116, %v1124
        %v1126 = vlaneseq
        %v1127 = vshrl.u32 %v1126, 7
        %v1128 = vsub.s32 2, %v1127
        %v1129 = vrot.slane %v1116, %v1128
        %v1130 = vlaneseq
        %v1131 = vshrl.u32 %v1130, 7
        %v1132 = vsub.s32 3, %v1131
        %v1133 = vrot.slane %v1116, %v1132
        %vm1138 = vcmask 130048
        %v1140 = vsel %vm1138, %v723, 0
        %1142 = vmatprep.subr.mxu0 %v785
        %1143 = vmatpush1.msra.mxu0 %v784
        %1144 = vmatprep.subr.mxu0 %v781
        %1145 = vmatpush1.msra.mxu0 %v780
        %1146 = vmatprep.subr.mxu0 %v777
        %1147 = vmatpush1.msra.mxu0 %v776
        %1148 = vmatprep.subr.mxu0 %v773
        %1149 = vmatpush1.msra.mxu0 %v772
        %1150 = vmatprep.subr.mxu0 %v769
        %1151 = vmatpush1.msra.mxu0 %v768
        %1152 = vmatprep.subr.mxu0 %v765
        %1153 = vmatpush1.msra.mxu0 %v764
        %1154 = vmatprep.subr.mxu0 %v761
        %1155 = vmatpush1.msra.mxu0 %v760
        %1156 = vmatprep.subr.mxu0 %v757
        %1157 = vmatpush1.msra.mxu0 %v756
        %1158 = vmatprep.subr.mxu0 %v753
        %1159 = vmatpush1.msra.mxu0 %v752
        %1160 = vmatprep.subr.mxu0 %v749
        %1161 = vmatpush1.msra.mxu0 %v748
        %1162 = vmatprep.subr.mxu0 %v745
        %1163 = vmatpush1.msra.mxu0 %v744
        %1164 = vmatprep.subr.mxu0 %v741
        %1165 = vmatpush1.msra.mxu0 %v740
        %1166 = vmatprep.subr.mxu0 %v737
        %1167 = vmatpush1.msra.mxu0 %v736
        %1168 = vmatprep.subr.mxu0 %v733
        %1169 = vmatpush1.msra.mxu0 %v732
        %1170 = vmatprep.subr.mxu0 %v729
        %1171 = vmatpush1.msra.mxu0 %v728
        %1172 = vmatprep.subr.mxu0 %v725
        %1173 = vmatpush1.msra.mxu0 %v724
        %1174 = vmatprep.subr.mxu0 %v849
        %1175 = vmatpush2.msra.mxu0 %v848
        %1176 = vmatprep.subr.mxu0 %v845
        %1177 = vmatpush2.msra.mxu0 %v844
        %1178 = vmatprep.subr.mxu0 %v841
        %1179 = vmatpush2.msra.mxu0 %v840
        %1180 = vmatprep.subr.mxu0 %v837
        %1181 = vmatpush2.msra.mxu0 %v836
        %1182 = vmatprep.subr.mxu0 %v833
        %1183 = vmatpush2.msra.mxu0 %v832
        %1184 = vmatprep.subr.mxu0 %v829
        %1185 = vmatpush2.msra.mxu0 %v828
        %1186 = vmatprep.subr.mxu0 %v825
        %1187 = vmatpush2.msra.mxu0 %v824
        %1188 = vmatprep.subr.mxu0 %v821
        %1189 = vmatpush2.msra.mxu0 %v820
        %1190 = vmatprep.subr.mxu0 %v817
        %1191 = vmatpush2.msra.mxu0 %v816
        %1192 = vmatprep.subr.mxu0 %v813
        %1193 = vmatpush2.msra.mxu0 %v812
        %1194 = vmatprep.subr.mxu0 %v809
        %1195 = vmatpush2.msra.mxu0 %v808
        %1196 = vmatprep.subr.mxu0 %v805
        %1197 = vmatpush2.msra.mxu0 %v804
        %1198 = vmatprep.subr.mxu0 %v801
        %1199 = vmatpush2.msra.mxu0 %v800
        %1200 = vmatprep.subr.mxu0 %v797
        %1201 = vmatpush2.msra.mxu0 %v796
        %1202 = vmatprep.subr.mxu0 %v793
        %1203 = vmatpush2.msra.mxu0 %v792
        %1204 = vmatprep.subr.mxu0 %v789
        %1205 = vmatpush2.msra.mxu0 %v788
        %1206 = vmatprep.mubr.f32.mxu0 %v718
        %1207 = vmatmul.mubr.f32.gmra.mxu0 %v717
        %v1208 = vpop.f32.mrf.mxu0
        %v1209 = vadd.f32 %v1121, %v1208
        %v1210 = vpop.f32.mrf.mxu0
        %v1211 = vadd.f32 %v1125, %v1210
        %1212 = vdwg.mxu0
        %1213 = vmatprep.subr.mxu0 %v913
        %1214 = vmatpush1.msra.mxu0 %v912
        %1215 = vmatprep.subr.mxu0 %v909
        %1216 = vmatpush1.msra.mxu0 %v908
        %1217 = vmatprep.subr.mxu0 %v905
        %1218 = vmatpush1.msra.mxu0 %v904
        %1219 = vmatprep.subr.mxu0 %v901
        %1220 = vmatpush1.msra.mxu0 %v900
        %1221 = vmatprep.subr.mxu0 %v897
        %1222 = vmatpush1.msra.mxu0 %v896
        %1223 = vmatprep.subr.mxu0 %v893
        %1224 = vmatpush1.msra.mxu0 %v892
        %1225 = vmatprep.subr.mxu0 %v889
        %1226 = vmatpush1.msra.mxu0 %v888
        %1227 = vmatprep.subr.mxu0 %v885
        %1228 = vmatpush1.msra.mxu0 %v884
        %1229 = vmatprep.subr.mxu0 %v881
        %1230 = vmatpush1.msra.mxu0 %v880
        %1231 = vmatprep.subr.mxu0 %v877
        %1232 = vmatpush1.msra.mxu0 %v876
        %1233 = vmatprep.subr.mxu0 %v873
        %1234 = vmatpush1.msra.mxu0 %v872
        %1235 = vmatprep.subr.mxu0 %v869
        %1236 = vmatpush1.msra.mxu0 %v868
        %1237 = vmatprep.subr.mxu0 %v865
        %1238 = vmatpush1.msra.mxu0 %v864
        %1239 = vmatprep.subr.mxu0 %v861
        %1240 = vmatpush1.msra.mxu0 %v860
        %1241 = vmatprep.subr.mxu0 %v857
        %1242 = vmatpush1.msra.mxu0 %v856
        %1243 = vmatprep.subr.mxu0 %v853
        %1244 = vmatpush1.msra.mxu0 %v852
        %1245 = vmatprep.subr.mxu0 %v977
        %1246 = vmatpush2.msra.mxu0 %v976
        %1247 = vmatprep.subr.mxu0 %v973
        %1248 = vmatpush2.msra.mxu0 %v972
        %1249 = vmatprep.subr.mxu0 %v969
        %1250 = vmatpush2.msra.mxu0 %v968
        %1251 = vmatprep.subr.mxu0 %v965
        %1252 = vmatpush2.msra.mxu0 %v964
        %1253 = vmatprep.subr.mxu0 %v961
        %1254 = vmatpush2.msra.mxu0 %v960
        %1255 = vmatprep.subr.mxu0 %v957
        %1256 = vmatpush2.msra.mxu0 %v956
        %1257 = vmatprep.subr.mxu0 %v953
        %1258 = vmatpush2.msra.mxu0 %v952
        %1259 = vmatprep.subr.mxu0 %v949
        %1260 = vmatpush2.msra.mxu0 %v948
        %1261 = vmatprep.subr.mxu0 %v945
        %1262 = vmatpush2.msra.mxu0 %v944
        %1263 = vmatprep.subr.mxu0 %v941
        %1264 = vmatpush2.msra.mxu0 %v940
        %1265 = vmatprep.subr.mxu0 %v937
        %1266 = vmatpush2.msra.mxu0 %v936
        %1267 = vmatprep.subr.mxu0 %v933
        %1268 = vmatpush2.msra.mxu0 %v932
        %1269 = vmatprep.subr.mxu0 %v929
        %1270 = vmatpush2.msra.mxu0 %v928
        %1271 = vmatprep.subr.mxu0 %v925
        %1272 = vmatpush2.msra.mxu0 %v924
        %1273 = vmatprep.subr.mxu0 %v921
        %1274 = vmatpush2.msra.mxu0 %v920
        %1275 = vmatprep.subr.mxu0 %v917
        %1276 = vmatpush2.msra.mxu0 %v916
        %1277 = vmatprep.mubr.f32.mxu0 %v720
        %1278 = vmatmul.mubr.f32.gmra.mxu0 %v719
        %v1279 = vpop.f32.mrf.mxu0
        %v1280 = vadd.f32 %v1209, %v1279
        %v1281 = vpop.f32.mrf.mxu0
        %v1282 = vadd.f32 %v1211, %v1281
        %1283 = vdwg.mxu0
        %1284 = vmatprep.subr.mxu0 %v1041
        %1285 = vmatpush1.msra.mxu0 %v1040
        %1286 = vmatprep.subr.mxu0 %v1037
        %1287 = vmatpush1.msra.mxu0 %v1036
        %1288 = vmatprep.subr.mxu0 %v1033
        %1289 = vmatpush1.msra.mxu0 %v1032
        %1290 = vmatprep.subr.mxu0 %v1029
        %1291 = vmatpush1.msra.mxu0 %v1028
        %1292 = vmatprep.subr.mxu0 %v1025
        %1293 = vmatpush1.msra.mxu0 %v1024
        %1294 = vmatprep.subr.mxu0 %v1021
        %1295 = vmatpush1.msra.mxu0 %v1020
        %1296 = vmatprep.subr.mxu0 %v1017
        %1297 = vmatpush1.msra.mxu0 %v1016
        %1298 = vmatprep.subr.mxu0 %v1013
        %1299 = vmatpush1.msra.mxu0 %v1012
        %1300 = vmatprep.subr.mxu0 %v1009
        %1301 = vmatpush1.msra.mxu0 %v1008
        %1302 = vmatprep.subr.mxu0 %v1005
        %1303 = vmatpush1.msra.mxu0 %v1004
        %1304 = vmatprep.subr.mxu0 %v1001
        %1305 = vmatpush1.msra.mxu0 %v1000
        %1306 = vmatprep.subr.mxu0 %v997
        %1307 = vmatpush1.msra.mxu0 %v996
        %1308 = vmatprep.subr.mxu0 %v993
        %1309 = vmatpush1.msra.mxu0 %v992
        %1310 = vmatprep.subr.mxu0 %v989
        %1311 = vmatpush1.msra.mxu0 %v988
        %1312 = vmatprep.subr.mxu0 %v985
        %1313 = vmatpush1.msra.mxu0 %v984
        %1314 = vmatprep.subr.mxu0 %v981
        %1315 = vmatpush1.msra.mxu0 %v980
        %1316 = vmatprep.subr.mxu0 %v1105
        %1317 = vmatpush2.msra.mxu0 %v1104
        %1318 = vmatprep.subr.mxu0 %v1101
        %1319 = vmatpush2.msra.mxu0 %v1100
        %1320 = vmatprep.subr.mxu0 %v1097
        %1321 = vmatpush2.msra.mxu0 %v1096
        %1322 = vmatprep.subr.mxu0 %v1093
        %1323 = vmatpush2.msra.mxu0 %v1092
        %1324 = vmatprep.subr.mxu0 %v1089
        %1325 = vmatpush2.msra.mxu0 %v1088
        %1326 = vmatprep.subr.mxu0 %v1085
        %1327 = vmatpush2.msra.mxu0 %v1084
        %1328 = vmatprep.subr.mxu0 %v1081
        %1329 = vmatpush2.msra.mxu0 %v1080
        %1330 = vmatprep.subr.mxu0 %v1077
        %1331 = vmatpush2.msra.mxu0 %v1076
        %1332 = vmatprep.subr.mxu0 %v1073
        %1333 = vmatpush2.msra.mxu0 %v1072
        %1334 = vmatprep.subr.mxu0 %v1069
        %1335 = vmatpush2.msra.mxu0 %v1068
        %1336 = vmatprep.subr.mxu0 %v1065
        %1337 = vmatpush2.msra.mxu0 %v1064
        %1338 = vmatprep.subr.mxu0 %v1061
        %1339 = vmatpush2.msra.mxu0 %v1060
        %1340 = vmatprep.subr.mxu0 %v1057
        %1341 = vmatpush2.msra.mxu0 %v1056
        %1342 = vmatprep.subr.mxu0 %v1053
        %1343 = vmatpush2.msra.mxu0 %v1052
        %1344 = vmatprep.subr.mxu0 %v1049
        %1345 = vmatpush2.msra.mxu0 %v1048
        %1346 = vmatprep.subr.mxu0 %v1045
        %1347 = vmatpush2.msra.mxu0 %v1044
        %1348 = vmatprep.mubr.f32.mxu0 %v722
        %1349 = vmatmul.mubr.f32.gmra.mxu0 %v721
        %v1350 = vpop.f32.mrf.mxu0
        %v1351 = vadd.f32 %v1280, %v1350
        %v1352 = vpop.f32.mrf.mxu0
        %v1353 = vadd.f32 %v1282, %v1352
        %1354 = vdwg.mxu0
        %1355 = vmatprep.subr.mxu0 0.0
        %1356 = vmatpush1.msra.mxu0 0.0
        %1357 = vmatprep.subr.mxu0 0.0
        %1358 = vmatpush1.msra.mxu0 0.0
        %1359 = vmatprep.subr.mxu0 0.0
        %1360 = vmatpush1.msra.mxu0 0.0
        %1361 = vmatprep.subr.mxu0 0.0
        %1362 = vmatpush1.msra.mxu0 0.0
        %1363 = vmatprep.subr.mxu0 0.0
        %1364 = vmatpush1.msra.mxu0 0.0
        %1365 = vmatprep.subr.mxu0 0.0
        %1366 = vmatpush1.msra.mxu0 0.0
        %1367 = vmatprep.subr.mxu0 0.0
        %1368 = vmatpush1.msra.mxu0 0.0
        %1369 = vmatprep.subr.mxu0 0.0
        %1370 = vmatpush1.msra.mxu0 0.0
        %1371 = vmatprep.subr.mxu0 0.0
        %1372 = vmatpush1.msra.mxu0 0.0
        %1373 = vmatprep.subr.mxu0 0.0
        %1374 = vmatpush1.msra.mxu0 0.0
        %1375 = vmatprep.subr.mxu0 0.0
        %1376 = vmatpush1.msra.mxu0 0.0
        %1377 = vmatprep.subr.mxu0 0.0
        %1378 = vmatpush1.msra.mxu0 0.0
        %1379 = vmatprep.subr.mxu0 0.0
        %1380 = vmatpush1.msra.mxu0 0.0
        %1381 = vmatprep.subr.mxu0 0.0
        %1382 = vmatpush1.msra.mxu0 0.0
        %1383 = vmatprep.subr.mxu0 %v1113
        %1384 = vmatpush1.msra.mxu0 %v1112
        %1385 = vmatprep.subr.mxu0 %v1109
        %1386 = vmatpush1.msra.mxu0 %v1108
        %1387 = vmatprep.subr.mxu0 0.0
        %1388 = vmatpush2.msra.mxu0 0.0
        %1389 = vmatprep.subr.mxu0 0.0
        %1390 = vmatpush2.msra.mxu0 0.0
        %1391 = vmatprep.subr.mxu0 0.0
        %1392 = vmatpush2.msra.mxu0 0.0
        %1393 = vmatprep.subr.mxu0 0.0
        %1394 = vmatpush2.msra.mxu0 0.0
        %1395 = vmatprep.subr.mxu0 0.0
        %1396 = vmatpush2.msra.mxu0 0.0
        %1397 = vmatprep.subr.mxu0 0.0
        %1398 = vmatpush2.msra.mxu0 0.0
        %1399 = vmatprep.subr.mxu0 0.0
        %1400 = vmatpush2.msra.mxu0 0.0
        %1401 = vmatprep.subr.mxu0 0.0
        %1402 = vmatpush2.msra.mxu0 0.0
        %1403 = vmatprep.subr.mxu0 0.0
        %1404 = vmatpush2.msra.mxu0 0.0
        %1405 = vmatprep.subr.mxu0 0.0
        %1406 = vmatpush2.msra.mxu0 0.0
        %1407 = vmatprep.subr.mxu0 0.0
        %1408 = vmatpush2.msra.mxu0 0.0
        %1409 = vmatprep.subr.mxu0 0.0
        %1410 = vmatpush2.msra.mxu0 0.0
        %1411 = vmatprep.subr.mxu0 0.0
        %1412 = vmatpush2.msra.mxu0 0.0
        %1413 = vmatprep.subr.mxu0 0.0
        %1414 = vmatpush2.msra.mxu0 0.0
        %1415 = vmatprep.subr.mxu0 0.0
        %1416 = vmatpush2.msra.mxu0 0.0
        %1417 = vmatprep.subr.mxu0 0.0
        %1418 = vmatpush2.msra.mxu0 0.0
        %1419 = vmatprep.mubr.f32.mxu0 0.0
        %1420 = vmatmul.mubr.f32.gmra.mxu0 %v1140
        %v1421 = vpop.f32.mrf.mxu0
        %v1422 = vadd.f32 %v1351, %v1421
        %v1423 = vpop.f32.mrf.mxu0
        %v1424 = vadd.f32 %v1353, %v1423
        %1425 = vdwg.mxu0
        %1426 = vmatprep.subr.mxu0 %v787
        %1427 = vmatpush1.msra.mxu0 %v786
        %1428 = vmatprep.subr.mxu0 %v783
        %1429 = vmatpush1.msra.mxu0 %v782
        %1430 = vmatprep.subr.mxu0 %v779
        %1431 = vmatpush1.msra.mxu0 %v778
        %1432 = vmatprep.subr.mxu0 %v775
        %1433 = vmatpush1.msra.mxu0 %v774
        %1434 = vmatprep.subr.mxu0 %v771
        %1435 = vmatpush1.msra.mxu0 %v770
        %1436 = vmatprep.subr.mxu0 %v767
        %1437 = vmatpush1.msra.mxu0 %v766
        %1438 = vmatprep.subr.mxu0 %v763
        %1439 = vmatpush1.msra.mxu0 %v762
        %1440 = vmatprep.subr.mxu0 %v759
        %1441 = vmatpush1.msra.mxu0 %v758
        %1442 = vmatprep.subr.mxu0 %v755
        %1443 = vmatpush1.msra.mxu0 %v754
        %1444 = vmatprep.subr.mxu0 %v751
        %1445 = vmatpush1.msra.mxu0 %v750
        %1446 = vmatprep.subr.mxu0 %v747
        %1447 = vmatpush1.msra.mxu0 %v746
        %1448 = vmatprep.subr.mxu0 %v743
        %1449 = vmatpush1.msra.mxu0 %v742
        %1450 = vmatprep.subr.mxu0 %v739
        %1451 = vmatpush1.msra.mxu0 %v738
        %1452 = vmatprep.subr.mxu0 %v735
        %1453 = vmatpush1.msra.mxu0 %v734
        %1454 = vmatprep.subr.mxu0 %v731
        %1455 = vmatpush1.msra.mxu0 %v730
        %1456 = vmatprep.subr.mxu0 %v727
        %1457 = vmatpush1.msra.mxu0 %v726
        %1458 = vmatprep.subr.mxu0 %v851
        %1459 = vmatpush2.msra.mxu0 %v850
        %1460 = vmatprep.subr.mxu0 %v847
        %1461 = vmatpush2.msra.mxu0 %v846
        %1462 = vmatprep.subr.mxu0 %v843
        %1463 = vmatpush2.msra.mxu0 %v842
        %1464 = vmatprep.subr.mxu0 %v839
        %1465 = vmatpush2.msra.mxu0 %v838
        %1466 = vmatprep.subr.mxu0 %v835
        %1467 = vmatpush2.msra.mxu0 %v834
        %1468 = vmatprep.subr.mxu0 %v831
        %1469 = vmatpush2.msra.mxu0 %v830
        %1470 = vmatprep.subr.mxu0 %v827
        %1471 = vmatpush2.msra.mxu0 %v826
        %1472 = vmatprep.subr.mxu0 %v823
        %1473 = vmatpush2.msra.mxu0 %v822
        %1474 = vmatprep.subr.mxu0 %v819
        %1475 = vmatpush2.msra.mxu0 %v818
        %1476 = vmatprep.subr.mxu0 %v815
        %1477 = vmatpush2.msra.mxu0 %v814
        %1478 = vmatprep.subr.mxu0 %v811
        %1479 = vmatpush2.msra.mxu0 %v810
        %1480 = vmatprep.subr.mxu0 %v807
        %1481 = vmatpush2.msra.mxu0 %v806
        %1482 = vmatprep.subr.mxu0 %v803
        %1483 = vmatpush2.msra.mxu0 %v802
        %1484 = vmatprep.subr.mxu0 %v799
        %1485 = vmatpush2.msra.mxu0 %v798
        %1486 = vmatprep.subr.mxu0 %v795
        %1487 = vmatpush2.msra.mxu0 %v794
        %1488 = vmatprep.subr.mxu0 %v791
        %1489 = vmatpush2.msra.mxu0 %v790
        %1490 = vmatprep.mubr.f32.mxu0 %v718
        %1491 = vmatmul.mubr.f32.gmra.mxu0 %v717
        %v1492 = vpop.f32.mrf.mxu0
        %v1493 = vadd.f32 %v1129, %v1492
        %v1494 = vpop.f32.mrf.mxu0
        %v1495 = vadd.f32 %v1133, %v1494
        %1496 = vdwg.mxu0
        %1497 = vmatprep.subr.mxu0 %v915
        %1498 = vmatpush1.msra.mxu0 %v914
        %1499 = vmatprep.subr.mxu0 %v911
        %1500 = vmatpush1.msra.mxu0 %v910
        %1501 = vmatprep.subr.mxu0 %v907
        %1502 = vmatpush1.msra.mxu0 %v906
        %1503 = vmatprep.subr.mxu0 %v903
        %1504 = vmatpush1.msra.mxu0 %v902
        %1505 = vmatprep.subr.mxu0 %v899
        %1506 = vmatpush1.msra.mxu0 %v898
        %1507 = vmatprep.subr.mxu0 %v895
        %1508 = vmatpush1.msra.mxu0 %v894
        %1509 = vmatprep.subr.mxu0 %v891
        %1510 = vmatpush1.msra.mxu0 %v890
        %1511 = vmatprep.subr.mxu0 %v887
        %1512 = vmatpush1.msra.mxu0 %v886
        %1513 = vmatprep.subr.mxu0 %v883
        %1514 = vmatpush1.msra.mxu0 %v882
        %1515 = vmatprep.subr.mxu0 %v879
        %1516 = vmatpush1.msra.mxu0 %v878
        %1517 = vmatprep.subr.mxu0 %v875
        %1518 = vmatpush1.msra.mxu0 %v874
        %1519 = vmatprep.subr.mxu0 %v871
        %1520 = vmatpush1.msra.mxu0 %v870
        %1521 = vmatprep.subr.mxu0 %v867
        %1522 = vmatpush1.msra.mxu0 %v866
        %1523 = vmatprep.subr.mxu0 %v863
        %1524 = vmatpush1.msra.mxu0 %v862
        %1525 = vmatprep.subr.mxu0 %v859
        %1526 = vmatpush1.msra.mxu0 %v858
        %1527 = vmatprep.subr.mxu0 %v855
        %1528 = vmatpush1.msra.mxu0 %v854
        %1529 = vmatprep.subr.mxu0 %v979
        %1530 = vmatpush2.msra.mxu0 %v978
        %1531 = vmatprep.subr.mxu0 %v975
        %1532 = vmatpush2.msra.mxu0 %v974
        %1533 = vmatprep.subr.mxu0 %v971
        %1534 = vmatpush2.msra.mxu0 %v970
        %1535 = vmatprep.subr.mxu0 %v967
        %1536 = vmatpush2.msra.mxu0 %v966
        %1537 = vmatprep.subr.mxu0 %v963
        %1538 = vmatpush2.msra.mxu0 %v962
        %1539 = vmatprep.subr.mxu0 %v959
        %1540 = vmatpush2.msra.mxu0 %v958
        %1541 = vmatprep.subr.mxu0 %v955
        %1542 = vmatpush2.msra.mxu0 %v954
        %1543 = vmatprep.subr.mxu0 %v951
        %1544 = vmatpush2.msra.mxu0 %v950
        %1545 = vmatprep.subr.mxu0 %v947
        %1546 = vmatpush2.msra.mxu0 %v946
        %1547 = vmatprep.subr.mxu0 %v943
        %1548 = vmatpush2.msra.mxu0 %v942
        %1549 = vmatprep.subr.mxu0 %v939
        %1550 = vmatpush2.msra.mxu0 %v938
        %1551 = vmatprep.subr.mxu0 %v935
        %1552 = vmatpush2.msra.mxu0 %v934
        %1553 = vmatprep.subr.mxu0 %v931
        %1554 = vmatpush2.msra.mxu0 %v930
        %1555 = vmatprep.subr.mxu0 %v927
        %1556 = vmatpush2.msra.mxu0 %v926
        %1557 = vmatprep.subr.mxu0 %v923
        %1558 = vmatpush2.msra.mxu0 %v922
        %1559 = vmatprep.subr.mxu0 %v919
        %1560 = vmatpush2.msra.mxu0 %v918
        %1561 = vmatprep.mubr.f32.mxu0 %v720
        %1562 = vmatmul.mubr.f32.gmra.mxu0 %v719
        %v1563 = vpop.f32.mrf.mxu0
        %v1564 = vadd.f32 %v1493, %v1563
        %v1565 = vpop.f32.mrf.mxu0
        %v1566 = vadd.f32 %v1495, %v1565
        %1567 = vdwg.mxu0
        %1568 = vmatprep.subr.mxu0 %v1043
        %1569 = vmatpush1.msra.mxu0 %v1042
        %1570 = vmatprep.subr.mxu0 %v1039
        %1571 = vmatpush1.msra.mxu0 %v1038
        %1572 = vmatprep.subr.mxu0 %v1035
        %1573 = vmatpush1.msra.mxu0 %v1034
        %1574 = vmatprep.subr.mxu0 %v1031
        %1575 = vmatpush1.msra.mxu0 %v1030
        %1576 = vmatprep.subr.mxu0 %v1027
        %1577 = vmatpush1.msra.mxu0 %v1026
        %1578 = vmatprep.subr.mxu0 %v1023
        %1579 = vmatpush1.msra.mxu0 %v1022
        %1580 = vmatprep.subr.mxu0 %v1019
        %1581 = vmatpush1.msra.mxu0 %v1018
        %1582 = vmatprep.subr.mxu0 %v1015
        %1583 = vmatpush1.msra.mxu0 %v1014
        %1584 = vmatprep.subr.mxu0 %v1011
        %1585 = vmatpush1.msra.mxu0 %v1010
        %1586 = vmatprep.subr.mxu0 %v1007
        %1587 = vmatpush1.msra.mxu0 %v1006
        %1588 = vmatprep.subr.mxu0 %v1003
        %1589 = vmatpush1.msra.mxu0 %v1002
        %1590 = vmatprep.subr.mxu0 %v999
        %1591 = vmatpush1.msra.mxu0 %v998
        %1592 = vmatprep.subr.mxu0 %v995
        %1593 = vmatpush1.msra.mxu0 %v994
        %1594 = vmatprep.subr.mxu0 %v991
        %1595 = vmatpush1.msra.mxu0 %v990
        %1596 = vmatprep.subr.mxu0 %v987
        %1597 = vmatpush1.msra.mxu0 %v986
        %1598 = vmatprep.subr.mxu0 %v983
        %1599 = vmatpush1.msra.mxu0 %v982
        %1600 = vmatprep.subr.mxu0 %v1107
        %1601 = vmatpush2.msra.mxu0 %v1106
        %1602 = vmatprep.subr.mxu0 %v1103
        %1603 = vmatpush2.msra.mxu0 %v1102
        %1604 = vmatprep.subr.mxu0 %v1099
        %1605 = vmatpush2.msra.mxu0 %v1098
        %1606 = vmatprep.subr.mxu0 %v1095
        %1607 = vmatpush2.msra.mxu0 %v1094
        %1608 = vmatprep.subr.mxu0 %v1091
        %1609 = vmatpush2.msra.mxu0 %v1090
        %1610 = vmatprep.subr.mxu0 %v1087
        %1611 = vmatpush2.msra.mxu0 %v1086
        %1612 = vmatprep.subr.mxu0 %v1083
        %1613 = vmatpush2.msra.mxu0 %v1082
        %1614 = vmatprep.subr.mxu0 %v1079
        %1615 = vmatpush2.msra.mxu0 %v1078
        %1616 = vmatprep.subr.mxu0 %v1075
        %1617 = vmatpush2.msra.mxu0 %v1074
        %1618 = vmatprep.subr.mxu0 %v1071
        %1619 = vmatpush2.msra.mxu0 %v1070
        %1620 = vmatprep.subr.mxu0 %v1067
        %1621 = vmatpush2.msra.mxu0 %v1066
        %1622 = vmatprep.subr.mxu0 %v1063
        %1623 = vmatpush2.msra.mxu0 %v1062
        %1624 = vmatprep.subr.mxu0 %v1059
        %1625 = vmatpush2.msra.mxu0 %v1058
        %1626 = vmatprep.subr.mxu0 %v1055
        %1627 = vmatpush2.msra.mxu0 %v1054
        %1628 = vmatprep.subr.mxu0 %v1051
        %1629 = vmatpush2.msra.mxu0 %v1050
        %1630 = vmatprep.subr.mxu0 %v1047
        %1631 = vmatpush2.msra.mxu0 %v1046
        %1632 = vmatprep.mubr.f32.mxu0 %v722
        %1633 = vmatmul.mubr.f32.gmra.mxu0 %v721
        %v1634 = vpop.f32.mrf.mxu0
        %v1635 = vadd.f32 %v1564, %v1634
        %v1636 = vpop.f32.mrf.mxu0
        %v1637 = vadd.f32 %v1566, %v1636
        %1638 = vdwg.mxu0
        %1639 = vmatprep.subr.mxu0 0.0
        %1640 = vmatpush1.msra.mxu0 0.0
        %1641 = vmatprep.subr.mxu0 0.0
        %1642 = vmatpush1.msra.mxu0 0.0
        %1643 = vmatprep.subr.mxu0 0.0
        %1644 = vmatpush1.msra.mxu0 0.0
        %1645 = vmatprep.subr.mxu0 0.0
        %1646 = vmatpush1.msra.mxu0 0.0
        %1647 = vmatprep.subr.mxu0 0.0
        %1648 = vmatpush1.msra.mxu0 0.0
        %1649 = vmatprep.subr.mxu0 0.0
        %1650 = vmatpush1.msra.mxu0 0.0
        %1651 = vmatprep.subr.mxu0 0.0
        %1652 = vmatpush1.msra.mxu0 0.0
        %1653 = vmatprep.subr.mxu0 0.0
        %1654 = vmatpush1.msra.mxu0 0.0
        %1655 = vmatprep.subr.mxu0 0.0
        %1656 = vmatpush1.msra.mxu0 0.0
        %1657 = vmatprep.subr.mxu0 0.0
        %1658 = vmatpush1.msra.mxu0 0.0
        %1659 = vmatprep.subr.mxu0 0.0
        %1660 = vmatpush1.msra.mxu0 0.0
        %1661 = vmatprep.subr.mxu0 0.0
        %1662 = vmatpush1.msra.mxu0 0.0
        %1663 = vmatprep.subr.mxu0 0.0
        %1664 = vmatpush1.msra.mxu0 0.0
        %1665 = vmatprep.subr.mxu0 0.0
        %1666 = vmatpush1.msra.mxu0 0.0
        %1667 = vmatprep.subr.mxu0 %v1115
        %1668 = vmatpush1.msra.mxu0 %v1114
        %1669 = vmatprep.subr.mxu0 %v1111
        %1670 = vmatpush1.msra.mxu0 %v1110
        %1671 = vmatprep.subr.mxu0 0.0
        %1672 = vmatpush2.msra.mxu0 0.0
        %1673 = vmatprep.subr.mxu0 0.0
        %1674 = vmatpush2.msra.mxu0 0.0
        %1675 = vmatprep.subr.mxu0 0.0
        %1676 = vmatpush2.msra.mxu0 0.0
        %1677 = vmatprep.subr.mxu0 0.0
        %1678 = vmatpush2.msra.mxu0 0.0
        %1679 = vmatprep.subr.mxu0 0.0
        %1680 = vmatpush2.msra.mxu0 0.0
        %1681 = vmatprep.subr.mxu0 0.0
        %1682 = vmatpush2.msra.mxu0 0.0
        %1683 = vmatprep.subr.mxu0 0.0
        %1684 = vmatpush2.msra.mxu0 0.0
        %1685 = vmatprep.subr.mxu0 0.0
        %1686 = vmatpush2.msra.mxu0 0.0
        %1687 = vmatprep.subr.mxu0 0.0
        %1688 = vmatpush2.msra.mxu0 0.0
        %1689 = vmatprep.subr.mxu0 0.0
        %1690 = vmatpush2.msra.mxu0 0.0
        %1691 = vmatprep.subr.mxu0 0.0
        %1692 = vmatpush2.msra.mxu0 0.0
        %1693 = vmatprep.subr.mxu0 0.0
        %1694 = vmatpush2.msra.mxu0 0.0
        %1695 = vmatprep.subr.mxu0 0.0
        %1696 = vmatpush2.msra.mxu0 0.0
        %1697 = vmatprep.subr.mxu0 0.0
        %1698 = vmatpush2.msra.mxu0 0.0
        %1699 = vmatprep.subr.mxu0 0.0
        %1700 = vmatpush2.msra.mxu0 0.0
        %1701 = vmatprep.subr.mxu0 0.0
        %1702 = vmatpush2.msra.mxu0 0.0
        %1703 = vmatprep.mubr.f32.mxu0 0.0
        %1704 = vmatmul.mubr.f32.gmra.mxu0 %v1140
        %v1705 = vpop.f32.mrf.mxu0
        %v1706 = vadd.f32 %v1635, %v1705
        %v1707 = vpop.f32.mrf.mxu0
        %v1708 = vadd.f32 %v1637, %v1707
        %1709 = vdwg.mxu0
        %v1710 = vmax.f32 %v1422, 0.0
        %v1711 = vmax.f32 %v1424, 0.0
        %v1712 = vmax.f32 %v1706, 0.0
        %v1713 = vmax.f32 %v1708, 0.0
        %v1714 = vld [vmem:[%s4] sm:$0xff]
        %v1715 = vld [vmem:[%s4 + $0x8] sm:$0xff]
        %v1716 = vld [vmem:[%s4 + $0x10] sm:$0xff]
        %v1717 = vld [vmem:[%s4 + $0x18] sm:$0xff]
        %v1718 = vld [vmem:[%s4 + $0x20] sm:$0xff]
        %v1719 = vld [vmem:[%s4 + $0x28] sm:$0xff]
        %v1720 = vld [vmem:[%s4 + $0x30] sm:$0xff]
        %v1721 = vld [vmem:[%s4 + $0x38] sm:$0xff]
        %v1722 = vld [vmem:[%s4 + $0x40] sm:$0xff]
        %v1723 = vld [vmem:[%s4 + $0x48] sm:$0xff]
        %v1724 = vld [vmem:[%s4 + $0x50] sm:$0xff]
        %v1725 = vld [vmem:[%s4 + $0x58] sm:$0xff]
        %v1726 = vld [vmem:[%s4 + $0x60] sm:$0xff]
        %v1727 = vld [vmem:[%s4 + $0x68] sm:$0xff]
        %v1728 = vld [vmem:[%s4 + $0x70] sm:$0xff]
        %v1729 = vld [vmem:[%s4 + $0x78] sm:$0xff]
        %v1730 = vld [vmem:[%s4 + $0x80] sm:$0xff]
        %v1731 = vld [vmem:[%s4 + $0x88] sm:$0xff]
        %v1732 = vld [vmem:[%s4 + $0x90] sm:$0xff]
        %v1733 = vld [vmem:[%s4 + $0x98] sm:$0xff]
        %v1734 = vld [vmem:[%s4 + $0xa0] sm:$0xff]
        %v1735 = vld [vmem:[%s4 + $0xa8] sm:$0xff]
        %v1736 = vld [vmem:[%s4 + $0xb0] sm:$0xff]
        %v1737 = vld [vmem:[%s4 + $0xb8] sm:$0xff]
        %v1738 = vld [vmem:[%s4 + $0xc0] sm:$0xff]
        %v1739 = vld [vmem:[%s4 + $0xc8] sm:$0xff]
        %v1740 = vld [vmem:[%s4 + $0xd0] sm:$0xff]
        %v1741 = vld [vmem:[%s4 + $0xd8] sm:$0xff]
        %v1742 = vld [vmem:[%s4 + $0xe0] sm:$0xff]
        %v1743 = vld [vmem:[%s4 + $0xe8] sm:$0xff]
        %v1744 = vld [vmem:[%s4 + $0xf0] sm:$0xff]
        %v1745 = vld [vmem:[%s4 + $0xf8] sm:$0xff]
        %v1746 = vld [vmem:[%s4 + $0x100] sm:$0xff]
        %v1747 = vld [vmem:[%s4 + $0x108] sm:$0xff]
        %v1748 = vld [vmem:[%s4 + $0x110] sm:$0xff]
        %v1749 = vld [vmem:[%s4 + $0x118] sm:$0xff]
        %v1750 = vld [vmem:[%s4 + $0x120] sm:$0xff]
        %v1751 = vld [vmem:[%s4 + $0x128] sm:$0xff]
        %v1752 = vld [vmem:[%s4 + $0x130] sm:$0xff]
        %v1753 = vld [vmem:[%s4 + $0x138] sm:$0xff]
        %v1754 = vld [vmem:[%s4 + $0x140] sm:$0xff]
        %v1755 = vld [vmem:[%s4 + $0x148] sm:$0xff]
        %v1756 = vld [vmem:[%s4 + $0x150] sm:$0xff]
        %v1757 = vld [vmem:[%s4 + $0x158] sm:$0xff]
        %v1758 = vld [vmem:[%s4 + $0x160] sm:$0xff]
        %v1759 = vld [vmem:[%s4 + $0x168] sm:$0xff]
        %v1760 = vld [vmem:[%s4 + $0x170] sm:$0xff]
        %v1761 = vld [vmem:[%s4 + $0x178] sm:$0xff]
        %v1762 = vld [vmem:[%s4 + $0x180] sm:$0xff]
        %v1763 = vld [vmem:[%s4 + $0x188] sm:$0xff]
        %v1764 = vld [vmem:[%s4 + $0x190] sm:$0xff]
        %v1765 = vld [vmem:[%s4 + $0x198] sm:$0xff]
        %v1766 = vld [vmem:[%s4 + $0x1a0] sm:$0xff]
        %v1767 = vld [vmem:[%s4 + $0x1a8] sm:$0xff]
        %v1768 = vld [vmem:[%s4 + $0x1b0] sm:$0xff]
        %v1769 = vld [vmem:[%s4 + $0x1b8] sm:$0xff]
        %v1770 = vld [vmem:[%s4 + $0x1c0] sm:$0xff]
        %v1771 = vld [vmem:[%s4 + $0x1c8] sm:$0xff]
        %v1772 = vld [vmem:[%s4 + $0x1d0] sm:$0xff]
        %v1773 = vld [vmem:[%s4 + $0x1d8] sm:$0xff]
        %v1774 = vld [vmem:[%s4 + $0x1e0] sm:$0xff]
        %v1775 = vld [vmem:[%s4 + $0x1e8] sm:$0xff]
        %v1776 = vld [vmem:[%s4 + $0x1f0] sm:$0xff]
        %v1777 = vld [vmem:[%s4 + $0x1f8] sm:$0xff]
        %v1778 = vld [vmem:[%s4 + $0x200] sm:$0xff]
        %v1779 = vld [vmem:[%s4 + $0x208] sm:$0xff]
        %v1780 = vld [vmem:[%s4 + $0x210] sm:$0xff]
        %v1781 = vld [vmem:[%s4 + $0x218] sm:$0xff]
        %v1782 = vld [vmem:[%s4 + $0x220] sm:$0xff]
        %v1783 = vld [vmem:[%s4 + $0x228] sm:$0xff]
        %v1784 = vld [vmem:[%s4 + $0x230] sm:$0xff]
        %v1785 = vld [vmem:[%s4 + $0x238] sm:$0xff]
        %v1786 = vld [vmem:[%s4 + $0x240] sm:$0xff]
        %v1787 = vld [vmem:[%s4 + $0x248] sm:$0xff]
        %v1788 = vld [vmem:[%s4 + $0x250] sm:$0xff]
        %v1789 = vld [vmem:[%s4 + $0x258] sm:$0xff]
        %v1790 = vld [vmem:[%s4 + $0x260] sm:$0xff]
        %v1791 = vld [vmem:[%s4 + $0x268] sm:$0xff]
        %v1792 = vld [vmem:[%s4 + $0x270] sm:$0xff]
        %v1793 = vld [vmem:[%s4 + $0x278] sm:$0xff]
        %v1794 = vld [vmem:[%s4 + $0x280] sm:$0xff]
        %v1795 = vld [vmem:[%s4 + $0x288] sm:$0xff]
        %v1796 = vld [vmem:[%s4 + $0x290] sm:$0xff]
        %v1797 = vld [vmem:[%s4 + $0x298] sm:$0xff]
        %v1798 = vld [vmem:[%s4 + $0x2a0] sm:$0xff]
        %v1799 = vld [vmem:[%s4 + $0x2a8] sm:$0xff]
        %v1800 = vld [vmem:[%s4 + $0x2b0] sm:$0xff]
        %v1801 = vld [vmem:[%s4 + $0x2b8] sm:$0xff]
        %v1802 = vld [vmem:[%s4 + $0x2c0] sm:$0xff]
        %v1803 = vld [vmem:[%s4 + $0x2c8] sm:$0xff]
        %v1804 = vld [vmem:[%s4 + $0x2d0] sm:$0xff]
        %v1805 = vld [vmem:[%s4 + $0x2d8] sm:$0xff]
        %v1806 = vld [vmem:[%s4 + $0x2e0] sm:$0xff]
        %v1807 = vld [vmem:[%s4 + $0x2e8] sm:$0xff]
        %v1808 = vld [vmem:[%s4 + $0x2f0] sm:$0xff]
        %v1809 = vld [vmem:[%s4 + $0x2f8] sm:$0xff]
        %v1810 = vld [vmem:[%s4 + $0x300] sm:$0xff]
        %v1811 = vld [vmem:[%s4 + $0x308] sm:$0xff]
        %v1812 = vld [vmem:[%s4 + $0x310] sm:$0xff]
        %v1813 = vld [vmem:[%s4 + $0x318] sm:$0xff]
        %v1814 = vld [vmem:[%s5] sm:$0x3]
        %v1816 = vlaneseq
        %v1817 = vshrl.u32 %v1816, 7
        %v1818 = vsub.s32 0, %v1817
        %v1819 = vrot.slane %v1814, %v1818
        %v1820 = vlaneseq
        %v1821 = vshrl.u32 %v1820, 7
        %v1822 = vsub.s32 1, %v1821
        %v1823 = vrot.slane %v1814, %v1822
        %v1827 = vsel %vm1138, %v1713, 0
        %1829 = vmatprep.subr.mxu0 %v1745
        %1830 = vmatpush1.msra.mxu0 %v1744
        %1831 = vmatprep.subr.mxu0 %v1743
        %1832 = vmatpush1.msra.mxu0 %v1742
        %1833 = vmatprep.subr.mxu0 %v1741
        %1834 = vmatpush1.msra.mxu0 %v1740
        %1835 = vmatprep.subr.mxu0 %v1739
        %1836 = vmatpush1.msra.mxu0 %v1738
        %1837 = vmatprep.subr.mxu0 %v1737
        %1838 = vmatpush1.msra.mxu0 %v1736
        %1839 = vmatprep.subr.mxu0 %v1735
        %1840 = vmatpush1.msra.mxu0 %v1734
        %1841 = vmatprep.subr.mxu0 %v1733
        %1842 = vmatpush1.msra.mxu0 %v1732
        %1843 = vmatprep.subr.mxu0 %v1731
        %1844 = vmatpush1.msra.mxu0 %v1730
        %1845 = vmatprep.subr.mxu0 %v1729
        %1846 = vmatpush1.msra.mxu0 %v1728
        %1847 = vmatprep.subr.mxu0 %v1727
        %1848 = vmatpush1.msra.mxu0 %v1726
        %1849 = vmatprep.subr.mxu0 %v1725
        %1850 = vmatpush1.msra.mxu0 %v1724
        %1851 = vmatprep.subr.mxu0 %v1723
        %1852 = vmatpush1.msra.mxu0 %v1722
        %1853 = vmatprep.subr.mxu0 %v1721
        %1854 = vmatpush1.msra.mxu0 %v1720
        %1855 = vmatprep.subr.mxu0 %v1719
        %1856 = vmatpush1.msra.mxu0 %v1718
        %1857 = vmatprep.subr.mxu0 %v1717
        %1858 = vmatpush1.msra.mxu0 %v1716
        %1859 = vmatprep.subr.mxu0 %v1715
        %1860 = vmatpush1.msra.mxu0 %v1714
        %1861 = vmatprep.subr.mxu0 %v1777
        %1862 = vmatpush2.msra.mxu0 %v1776
        %1863 = vmatprep.subr.mxu0 %v1775
        %1864 = vmatpush2.msra.mxu0 %v1774
        %1865 = vmatprep.subr.mxu0 %v1773
        %1866 = vmatpush2.msra.mxu0 %v1772
        %1867 = vmatprep.subr.mxu0 %v1771
        %1868 = vmatpush2.msra.mxu0 %v1770
        %1869 = vmatprep.subr.mxu0 %v1769
        %1870 = vmatpush2.msra.mxu0 %v1768
        %1871 = vmatprep.subr.mxu0 %v1767
        %1872 = vmatpush2.msra.mxu0 %v1766
        %1873 = vmatprep.subr.mxu0 %v1765
        %1874 = vmatpush2.msra.mxu0 %v1764
        %1875 = vmatprep.subr.mxu0 %v1763
        %1876 = vmatpush2.msra.mxu0 %v1762
        %1877 = vmatprep.subr.mxu0 %v1761
        %1878 = vmatpush2.msra.mxu0 %v1760
        %1879 = vmatprep.subr.mxu0 %v1759
        %1880 = vmatpush2.msra.mxu0 %v1758
        %1881 = vmatprep.subr.mxu0 %v1757
        %1882 = vmatpush2.msra.mxu0 %v1756
        %1883 = vmatprep.subr.mxu0 %v1755
        %1884 = vmatpush2.msra.mxu0 %v1754
        %1885 = vmatprep.subr.mxu0 %v1753
        %1886 = vmatpush2.msra.mxu0 %v1752
        %1887 = vmatprep.subr.mxu0 %v1751
        %1888 = vmatpush2.msra.mxu0 %v1750
        %1889 = vmatprep.subr.mxu0 %v1749
        %1890 = vmatpush2.msra.mxu0 %v1748
        %1891 = vmatprep.subr.mxu0 %v1747
        %1892 = vmatpush2.msra.mxu0 %v1746
        %1893 = vmatprep.mubr.f32.mxu0 %v1711
        %1894 = vmatmul.mubr.f32.gmra.mxu0 %v1710
        %v1895 = vpop.f32.mrf.mxu0
        %v1896 = vadd.f32 %v1819, %v1895
        %v1897 = vpop.f32.mrf.mxu0
        %v1898 = vadd.f32 %v1823, %v1897
        %1899 = vdwg.mxu0
        %1900 = vmatprep.subr.mxu0 %v1809
        %1901 = vmatpush1.msra.mxu0 %v1808
        %1902 = vmatprep.subr.mxu0 %v1807
        %1903 = vmatpush1.msra.mxu0 %v1806
        %1904 = vmatprep.subr.mxu0 %v1805
        %1905 = vmatpush1.msra.mxu0 %v1804
        %1906 = vmatprep.subr.mxu0 %v1803
        %1907 = vmatpush1.msra.mxu0 %v1802
        %1908 = vmatprep.subr.mxu0 %v1801
        %1909 = vmatpush1.msra.mxu0 %v1800
        %1910 = vmatprep.subr.mxu0 %v1799
        %1911 = vmatpush1.msra.mxu0 %v1798
        %1912 = vmatprep.subr.mxu0 %v1797
        %1913 = vmatpush1.msra.mxu0 %v1796
        %1914 = vmatprep.subr.mxu0 %v1795
        %1915 = vmatpush1.msra.mxu0 %v1794
        %1916 = vmatprep.subr.mxu0 %v1793
        %1917 = vmatpush1.msra.mxu0 %v1792
        %1918 = vmatprep.subr.mxu0 %v1791
        %1919 = vmatpush1.msra.mxu0 %v1790
        %1920 = vmatprep.subr.mxu0 %v1789
        %1921 = vmatpush1.msra.mxu0 %v1788
        %1922 = vmatprep.subr.mxu0 %v1787
        %1923 = vmatpush1.msra.mxu0 %v1786
        %1924 = vmatprep.subr.mxu0 %v1785
        %1925 = vmatpush1.msra.mxu0 %v1784
        %1926 = vmatprep.subr.mxu0 %v1783
        %1927 = vmatpush1.msra.mxu0 %v1782
        %1928 = vmatprep.subr.mxu0 %v1781
        %1929 = vmatpush1.msra.mxu0 %v1780
        %1930 = vmatprep.subr.mxu0 %v1779
        %1931 = vmatpush1.msra.mxu0 %v1778
        %1932 = vmatprep.subr.mxu0 0.0
        %1933 = vmatpush2.msra.mxu0 0.0
        %1934 = vmatprep.subr.mxu0 0.0
        %1935 = vmatpush2.msra.mxu0 0.0
        %1936 = vmatprep.subr.mxu0 0.0
        %1937 = vmatpush2.msra.mxu0 0.0
        %1938 = vmatprep.subr.mxu0 0.0
        %1939 = vmatpush2.msra.mxu0 0.0
        %1940 = vmatprep.subr.mxu0 0.0
        %1941 = vmatpush2.msra.mxu0 0.0
        %1942 = vmatprep.subr.mxu0 0.0
        %1943 = vmatpush2.msra.mxu0 0.0
        %1944 = vmatprep.subr.mxu0 0.0
        %1945 = vmatpush2.msra.mxu0 0.0
        %1946 = vmatprep.subr.mxu0 0.0
        %1947 = vmatpush2.msra.mxu0 0.0
        %1948 = vmatprep.subr.mxu0 0.0
        %1949 = vmatpush2.msra.mxu0 0.0
        %1950 = vmatprep.subr.mxu0 0.0
        %1951 = vmatpush2.msra.mxu0 0.0
        %1952 = vmatprep.subr.mxu0 0.0
        %1953 = vmatpush2.msra.mxu0 0.0
        %1954 = vmatprep.subr.mxu0 0.0
        %1955 = vmatpush2.msra.mxu0 0.0
        %1956 = vmatprep.subr.mxu0 0.0
        %1957 = vmatpush2.msra.mxu0 0.0
        %1958 = vmatprep.subr.mxu0 0.0
        %1959 = vmatpush2.msra.mxu0 0.0
        %1960 = vmatprep.subr.mxu0 %v1813
        %1961 = vmatpush2.msra.mxu0 %v1812
        %1962 = vmatprep.subr.mxu0 %v1811
        %1963 = vmatpush2.msra.mxu0 %v1810
        %1964 = vmatprep.mubr.f32.mxu0 %v1827
        %1965 = vmatmul.mubr.f32.gmra.mxu0 %v1712
        %v1966 = vpop.f32.mrf.mxu0
        %v1967 = vadd.f32 %v1896, %v1966
        %v1968 = vpop.f32.mrf.mxu0
        %v1969 = vadd.f32 %v1898, %v1968
        %1970 = vdwg.mxu0
        %v1971 = vmax.f32 %v1967, 0.0
        %v1972 = vmax.f32 %v1969, 0.0
        %v1973 = vld [vmem:[%s6] sm:$0xff]
        %v1974 = vld [vmem:[%s6 + $0x8] sm:$0xff]
        %v1975 = vld [vmem:[%s6 + $0x10] sm:$0xff]
        %v1976 = vld [vmem:[%s6 + $0x18] sm:$0xff]
        %v1977 = vld [vmem:[%s6 + $0x20] sm:$0xff]
        %v1978 = vld [vmem:[%s6 + $0x28] sm:$0xff]
        %v1979 = vld [vmem:[%s6 + $0x30] sm:$0xff]
        %v1980 = vld [vmem:[%s6 + $0x38] sm:$0xff]
        %v1981 = vld [vmem:[%s6 + $0x40] sm:$0xff]
        %v1982 = vld [vmem:[%s6 + $0x48] sm:$0xff]
        %v1983 = vld [vmem:[%s6 + $0x50] sm:$0xff]
        %v1984 = vld [vmem:[%s6 + $0x58] sm:$0xff]
        %v1985 = vld [vmem:[%s6 + $0x60] sm:$0xff]
        %v1986 = vld [vmem:[%s6 + $0x68] sm:$0xff]
        %v1987 = vld [vmem:[%s6 + $0x70] sm:$0xff]
        %v1988 = vld [vmem:[%s6 + $0x78] sm:$0xff]
        %v1989 = vld [vmem:[%s6 + $0x80] sm:$0xff]
        %v1990 = vld [vmem:[%s6 + $0x88] sm:$0xff]
        %v1991 = vld [vmem:[%s6 + $0x90] sm:$0xff]
        %v1992 = vld [vmem:[%s6 + $0x98] sm:$0xff]
        %v1993 = vld [vmem:[%s6 + $0xa0] sm:$0xff]
        %v1994 = vld [vmem:[%s6 + $0xa8] sm:$0xff]
        %v1995 = vld [vmem:[%s6 + $0xb0] sm:$0xff]
        %v1996 = vld [vmem:[%s6 + $0xb8] sm:$0xff]
        %v1997 = vld [vmem:[%s6 + $0xc0] sm:$0xff]
        %v1998 = vld [vmem:[%s7] sm:$0x1]
        %v2000 = vlaneseq
        %v2001 = vshrl.u32 %v2000, 7
        %v2002 = vsub.s32 0, %v2001
        %v2003 = vrot.slane %v1998, %v2002
        %vm2005 = vcmask 588800
        %v2007 = vsel %vm2005, %v1972, 0
        %2009 = vmatprep.subr.mxu0 0.0
        %2010 = vmatpush1.msra.mxu0 %v1988
        %2011 = vmatprep.subr.mxu0 0.0
        %2012 = vmatpush1.msra.mxu0 %v1987
        %2013 = vmatprep.subr.mxu0 0.0
        %2014 = vmatpush1.msra.mxu0 %v1986
        %2015 = vmatprep.subr.mxu0 0.0
        %2016 = vmatpush1.msra.mxu0 %v1985
        %2017 = vmatprep.subr.mxu0 0.0
        %2018 = vmatpush1.msra.mxu0 %v1984
        %2019 = vmatprep.subr.mxu0 0.0
        %2020 = vmatpush1.msra.mxu0 %v1983
        %2021 = vmatprep.subr.mxu0 0.0
        %2022 = vmatpush1.msra.mxu0 %v1982
        %2023 = vmatprep.subr.mxu0 0.0
        %2024 = vmatpush1.msra.mxu0 %v1981
        %2025 = vmatprep.subr.mxu0 0.0
        %2026 = vmatpush1.msra.mxu0 %v1980
        %2027 = vmatprep.subr.mxu0 0.0
        %2028 = vmatpush1.msra.mxu0 %v1979
        %2029 = vmatprep.subr.mxu0 0.0
        %2030 = vmatpush1.msra.mxu0 %v1978
        %2031 = vmatprep.subr.mxu0 0.0
        %2032 = vmatpush1.msra.mxu0 %v1977
        %2033 = vmatprep.subr.mxu0 0.0
        %2034 = vmatpush1.msra.mxu0 %v1976
        %2035 = vmatprep.subr.mxu0 0.0
        %2036 = vmatpush1.msra.mxu0 %v1975
        %2037 = vmatprep.subr.mxu0 0.0
        %2038 = vmatpush1.msra.mxu0 %v1974
        %2039 = vmatprep.subr.mxu0 0.0
        %2040 = vmatpush1.msra.mxu0 %v1973
        %2041 = vmatprep.subr.mxu0 0.0
        %2042 = vmatpush2.msra.mxu0 0.0
        %2043 = vmatprep.subr.mxu0 0.0
        %2044 = vmatpush2.msra.mxu0 0.0
        %2045 = vmatprep.subr.mxu0 0.0
        %2046 = vmatpush2.msra.mxu0 0.0
        %2047 = vmatprep.subr.mxu0 0.0
        %2048 = vmatpush2.msra.mxu0 0.0
        %2049 = vmatprep.subr.mxu0 0.0
        %2050 = vmatpush2.msra.mxu0 0.0
        %2051 = vmatprep.subr.mxu0 0.0
        %2052 = vmatpush2.msra.mxu0 0.0
        %2053 = vmatprep.subr.mxu0 0.0
        %2054 = vmatpush2.msra.mxu0 0.0
        %2055 = vmatprep.subr.mxu0 0.0
        %2056 = vmatpush2.msra.mxu0 %v1997
        %2057 = vmatprep.subr.mxu0 0.0
        %2058 = vmatpush2.msra.mxu0 %v1996
        %2059 = vmatprep.subr.mxu0 0.0
        %2060 = vmatpush2.msra.mxu0 %v1995
        %2061 = vmatprep.subr.mxu0 0.0
        %2062 = vmatpush2.msra.mxu0 %v1994
        %2063 = vmatprep.subr.mxu0 0.0
        %2064 = vmatpush2.msra.mxu0 %v1993
        %2065 = vmatprep.subr.mxu0 0.0
        %2066 = vmatpush2.msra.mxu0 %v1992
        %2067 = vmatprep.subr.mxu0 0.0
        %2068 = vmatpush2.msra.mxu0 %v1991
        %2069 = vmatprep.subr.mxu0 0.0
        %2070 = vmatpush2.msra.mxu0 %v1990
        %2071 = vmatprep.subr.mxu0 0.0
        %2072 = vmatpush2.msra.mxu0 %v1989
        %2073 = vmatprep.mubr.f32.mxu0 %v2007
        %2074 = vmatmul.mubr.f32.gmra.mxu0 %v1971
        %v2075 = vpop.f32.mrf.mxu0
        %v2076 = vadd.f32 %v2003, %v2075
        %v2077 = vpop.f32.mrf.mxu0
        %2078 = vdwg.mxu0
        %v2079 = vmax.f32 %v2076, 0.0
        %v2080 = vld [vmem:[%s8] sm:$0xff]
        %v2081 = vld [vmem:[%s8 + $0x8] sm:$0xff]
        %v2082 = vld [vmem:[%s8 + $0x10] sm:$0xff]
        %v2083 = vld [vmem:[%s8 + $0x18] sm:$0xff]
        %v2084 = vld [vmem:[%s8 + $0x20] sm:$0xff]
        %v2085 = vld [vmem:[%s8 + $0x28] sm:$0xff]
        %v2086 = vld [vmem:[%s8 + $0x30] sm:$0xff]
        %v2087 = vld [vmem:[%s8 + $0x38] sm:$0xff]
        %v2088 = vld [vmem:[%s8 + $0x40] sm:$0xff]
        %v2089 = vld [vmem:[%s8 + $0x48] sm:$0xff]
        %v2090 = vld [vmem:[%s8 + $0x50] sm:$0xff]
        %v2091 = vld [vmem:[%s8 + $0x58] sm:$0xff]
        %v2092 = vld [vmem:[%s8 + $0x60] sm:$0xf]
        %v2093 = vld [vmem:[%s9] sm:$0x1]
        %v2095 = vlaneseq
        %v2096 = vshrl.u32 %v2095, 7
        %v2097 = vsub.s32 0, %v2096
        %v2098 = vrot.slane %v2093, %v2097
        %vm2100 = vcmask 818176
        %v2102 = vsel %vm2100, %v2079, 0
        %vm2104 = vcmask 1043456
        %v2106 = vsel %vm2104, %v2092, 0
        %2108 = vmatprep.subr.mxu0 0.0
        %2109 = vmatpush1.msra.mxu0 0.0
        %2110 = vmatprep.subr.mxu0 0.0
        %2111 = vmatpush1.msra.mxu0 0.0
        %2112 = vmatprep.subr.mxu0 0.0
        %2113 = vmatpush1.msra.mxu0 0.0
        %2114 = vmatprep.subr.mxu0 0.0
        %2115 = vmatpush1.msra.mxu0 %v2106
        %2116 = vmatprep.subr.mxu0 0.0
        %2117 = vmatpush1.msra.mxu0 %v2091
        %2118 = vmatprep.subr.mxu0 0.0
        %2119 = vmatpush1.msra.mxu0 %v2090
        %2120 = vmatprep.subr.mxu0 0.0
        %2121 = vmatpush1.msra.mxu0 %v2089
        %2122 = vmatprep.subr.mxu0 0.0
        %2123 = vmatpush1.msra.mxu0 %v2088
        %2124 = vmatprep.subr.mxu0 0.0
        %2125 = vmatpush1.msra.mxu0 %v2087
        %2126 = vmatprep.subr.mxu0 0.0
        %2127 = vmatpush1.msra.mxu0 %v2086
        %2128 = vmatprep.subr.mxu0 0.0
        %2129 = vmatpush1.msra.mxu0 %v2085
        %2130 = vmatprep.subr.mxu0 0.0
        %2131 = vmatpush1.msra.mxu0 %v2084
        %2132 = vmatprep.subr.mxu0 0.0
        %2133 = vmatpush1.msra.mxu0 %v2083
        %2134 = vmatprep.subr.mxu0 0.0
        %2135 = vmatpush1.msra.mxu0 %v2082
        %2136 = vmatprep.subr.mxu0 0.0
        %2137 = vmatpush1.msra.mxu0 %v2081
        %2138 = vmatprep.subr.mxu0 0.0
        %2139 = vmatpush1.msra.mxu0 %v2080
        %2140 = vmatprep.subr.mxu0 0.0
        %2141 = vmatpush2.msra.mxu0 0.0
        %2142 = vmatprep.subr.mxu0 0.0
        %2143 = vmatpush2.msra.mxu0 0.0
        %2144 = vmatprep.subr.mxu0 0.0
        %2145 = vmatpush2.msra.mxu0 0.0
        %2146 = vmatprep.subr.mxu0 0.0
        %2147 = vmatpush2.msra.mxu0 0.0
        %2148 = vmatprep.subr.mxu0 0.0
        %2149 = vmatpush2.msra.mxu0 0.0
        %2150 = vmatprep.subr.mxu0 0.0
        %2151 = vmatpush2.msra.mxu0 0.0
        %2152 = vmatprep.subr.mxu0 0.0
        %2153 = vmatpush2.msra.mxu0 0.0
        %2154 = vmatprep.subr.mxu0 0.0
        %2155 = vmatpush2.msra.mxu0 0.0
        %2156 = vmatprep.subr.mxu0 0.0
        %2157 = vmatpush2.msra.mxu0 0.0
        %2158 = vmatprep.subr.mxu0 0.0
        %2159 = vmatpush2.msra.mxu0 0.0
        %2160 = vmatprep.subr.mxu0 0.0
        %2161 = vmatpush2.msra.mxu0 0.0
        %2162 = vmatprep.subr.mxu0 0.0
        %2163 = vmatpush2.msra.mxu0 0.0
        %2164 = vmatprep.subr.mxu0 0.0
        %2165 = vmatpush2.msra.mxu0 0.0
        %2166 = vmatprep.subr.mxu0 0.0
        %2167 = vmatpush2.msra.mxu0 0.0
        %2168 = vmatprep.subr.mxu0 0.0
        %2169 = vmatpush2.msra.mxu0 0.0
        %2170 = vmatprep.subr.mxu0 0.0
        %2171 = vmatpush2.msra.mxu0 0.0
        %2172 = vmatprep.mubr.f32.mxu0 0.0
        %2173 = vmatmul.mubr.f32.gmra.mxu0 %v2102
        %v2174 = vpop.f32.mrf.mxu0
        %v2175 = vadd.f32 %v2098, %v2174
        %v2176 = vpop.f32.mrf.mxu0
        %2177 = vdwg.mxu0
        %v2178 = vld [vmem:[%s10] sm:$0xff]
        %v2179 = vld [vmem:[%s10 + $0x8] sm:$0xff]
        %v2180 = vld [vmem:[%s10 + $0x10] sm:$0xff]
        %v2181 = vld [vmem:[%s10 + $0x18] sm:$0xff]
        %v2182 = vld [vmem:[%s10 + $0x20] sm:$0xff]
        %v2183 = vld [vmem:[%s10 + $0x28] sm:$0xff]
        %v2184 = vld [vmem:[%s10 + $0x30] sm:$0xff]
        %v2185 = vld [vmem:[%s10 + $0x38] sm:$0xff]
        %v2186 = vld [vmem:[%s10 + $0x40] sm:$0xff]
        %v2187 = vld [vmem:[%s10 + $0x48] sm:$0xff]
        %v2188 = vld [vmem:[%s10 + $0x50] sm:$0xff]
        %v2189 = vld [vmem:[%s10 + $0x58] sm:$0xff]
        %v2190 = vld [vmem:[%s10 + $0x60] sm:$0xf]
        %v2191 = vld [vmem:[%s11] sm:$0x1]
        %v2193 = vlaneseq
        %v2194 = vshrl.u32 %v2193, 7
        %v2195 = vsub.s32 0, %v2194
        %v2196 = vrot.slane %v2191, %v2195
        %v2199 = vsel %vm2104, %v2190, 0
        %2201 = vmatprep.subr.mxu0 0.0
        %2202 = vmatpush1.msra.mxu0 0.0
        %2203 = vmatprep.subr.mxu0 0.0
        %2204 = vmatpush1.msra.mxu0 0.0
        %2205 = vmatprep.subr.mxu0 0.0
        %2206 = vmatpush1.msra.mxu0 0.0
        %2207 = vmatprep.subr.mxu0 0.0
        %2208 = vmatpush1.msra.mxu0 %v2199
        %2209 = vmatprep.subr.mxu0 0.0
        %2210 = vmatpush1.msra.mxu0 %v2189
        %2211 = vmatprep.subr.mxu0 0.0
        %2212 = vmatpush1.msra.mxu0 %v2188
        %2213 = vmatprep.subr.mxu0 0.0
        %2214 = vmatpush1.msra.mxu0 %v2187
        %2215 = vmatprep.subr.mxu0 0.0
        %2216 = vmatpush1.msra.mxu0 %v2186
        %2217 = vmatprep.subr.mxu0 0.0
        %2218 = vmatpush1.msra.mxu0 %v2185
        %2219 = vmatprep.subr.mxu0 0.0
        %2220 = vmatpush1.msra.mxu0 %v2184
        %2221 = vmatprep.subr.mxu0 0.0
        %2222 = vmatpush1.msra.mxu0 %v2183
        %2223 = vmatprep.subr.mxu0 0.0
        %2224 = vmatpush1.msra.mxu0 %v2182
        %2225 = vmatprep.subr.mxu0 0.0
        %2226 = vmatpush1.msra.mxu0 %v2181
        %2227 = vmatprep.subr.mxu0 0.0
        %2228 = vmatpush1.msra.mxu0 %v2180
        %2229 = vmatprep.subr.mxu0 0.0
        %2230 = vmatpush1.msra.mxu0 %v2179
        %2231 = vmatprep.subr.mxu0 0.0
        %2232 = vmatpush1.msra.mxu0 %v2178
        %2233 = vmatprep.subr.mxu0 0.0
        %2234 = vmatpush2.msra.mxu0 0.0
        %2235 = vmatprep.subr.mxu0 0.0
        %2236 = vmatpush2.msra.mxu0 0.0
        %2237 = vmatprep.subr.mxu0 0.0
        %2238 = vmatpush2.msra.mxu0 0.0
        %2239 = vmatprep.subr.mxu0 0.0
        %2240 = vmatpush2.msra.mxu0 0.0
        %2241 = vmatprep.subr.mxu0 0.0
        %2242 = vmatpush2.msra.mxu0 0.0
        %2243 = vmatprep.subr.mxu0 0.0
        %2244 = vmatpush2.msra.mxu0 0.0
        %2245 = vmatprep.subr.mxu0 0.0
        %2246 = vmatpush2.msra.mxu0 0.0
        %2247 = vmatprep.subr.mxu0 0.0
        %2248 = vmatpush2.msra.mxu0 0.0
        %2249 = vmatprep.subr.mxu0 0.0
        %2250 = vmatpush2.msra.mxu0 0.0
        %2251 = vmatprep.subr.mxu0 0.0
        %2252 = vmatpush2.msra.mxu0 0.0
        %2253 = vmatprep.subr.mxu0 0.0
        %2254 = vmatpush2.msra.mxu0 0.0
        %2255 = vmatprep.subr.mxu0 0.0
        %2256 = vmatpush2.msra.mxu0 0.0
        %2257 = vmatprep.subr.mxu0 0.0
        %2258 = vmatpush2.msra.mxu0 0.0
        %2259 = vmatprep.subr.mxu0 0.0
        %2260 = vmatpush2.msra.mxu0 0.0
        %2261 = vmatprep.subr.mxu0 0.0
        %2262 = vmatpush2.msra.mxu0 0.0
        %2263 = vmatprep.subr.mxu0 0.0
        %2264 = vmatpush2.msra.mxu0 0.0
        %2265 = vmatprep.mubr.f32.mxu0 0.0
        %2266 = vmatmul.mubr.f32.gmra.mxu0 %v2102
        %v2267 = vpop.f32.mrf.mxu0
        %v2268 = vadd.f32 %v2196, %v2267
        %v2269 = vpop.f32.mrf.mxu0
        %2270 = vdwg.mxu0
        %v2271 = vmul.f32 %v2268, 1.442695
        %v2272 = vpow.pop %v2271
        %v2273 = vrsqrt.pop %v2272
        %v2274 = vmul.f32 %v2272, %v2273
        %vm2275 = vcmp.eq.f32.partialorder %v2272, inf
        %v2276 = vsel %vm2275, %v2272, %v2274
        %vm2277 = vcmp.eq.f32.partialorder %v2272, 0.0
        %v2278 = vand.u32 %v2272, 2147483648
        %v2279 = vsel %vm2277, %v2278, %v2276
        %v2280 = vld [vmem:[%s716] sm:$0xff]
        %v2281 = vmul.f32 %v2280, %v2279
        %v2282 = vadd.f32 %v2175, %v2281
        %v2283 = vld [vmem:[%s12] sm:$0xff]
        %v2284 = vld [vmem:[%s12 + $0x8] sm:$0xff]
        %v2285 = vld [vmem:[%s12 + $0x10] sm:$0xf]
        %v2286 = vld [vmem:[%s13] sm:$0x1]
        %v2288 = vlaneseq
        %v2289 = vshrl.u32 %v2288, 7
        %v2290 = vsub.s32 0, %v2289
        %v2291 = vrot.slane %v2286, %v2290
        %vm2293 = vcmask 162816
        %v2295 = vsel %vm2293, %v2282, 0
        %v2298 = vsel %vm2104, %v2285, 0
        %2300 = vmatprep.subr.mxu0 0.0
        %2301 = vmatpush1.msra.mxu0 0.0
        %2302 = vmatprep.subr.mxu0 0.0
        %2303 = vmatpush1.msra.mxu0 0.0
        %2304 = vmatprep.subr.mxu0 0.0
        %2305 = vmatpush1.msra.mxu0 0.0
        %2306 = vmatprep.subr.mxu0 0.0
        %2307 = vmatpush1.msra.mxu0 0.0
        %2308 = vmatprep.subr.mxu0 0.0
        %2309 = vmatpush1.msra.mxu0 0.0
        %2310 = vmatprep.subr.mxu0 0.0
        %2311 = vmatpush1.msra.mxu0 0.0
        %2312 = vmatprep.subr.mxu0 0.0
        %2313 = vmatpush1.msra.mxu0 0.0
        %2314 = vmatprep.subr.mxu0 0.0
        %2315 = vmatpush1.msra.mxu0 0.0
        %2316 = vmatprep.subr.mxu0 0.0
        %2317 = vmatpush1.msra.mxu0 0.0
        %2318 = vmatprep.subr.mxu0 0.0
        %2319 = vmatpush1.msra.mxu0 0.0
        %2320 = vmatprep.subr.mxu0 0.0
        %2321 = vmatpush1.msra.mxu0 0.0
        %2322 = vmatprep.subr.mxu0 0.0
        %2323 = vmatpush1.msra.mxu0 0.0
        %2324 = vmatprep.subr.mxu0 0.0
        %2325 = vmatpush1.msra.mxu0 0.0
        %2326 = vmatprep.subr.mxu0 0.0
        %2327 = vmatpush1.msra.mxu0 %v2298
        %2328 = vmatprep.subr.mxu0 0.0
        %2329 = vmatpush1.msra.mxu0 %v2284
        %2330 = vmatprep.subr.mxu0 0.0
        %2331 = vmatpush1.msra.mxu0 %v2283
        %2332 = vmatprep.subr.mxu0 0.0
        %2333 = vmatpush2.msra.mxu0 0.0
        %2334 = vmatprep.subr.mxu0 0.0
        %2335 = vmatpush2.msra.mxu0 0.0
        %2336 = vmatprep.subr.mxu0 0.0
        %2337 = vmatpush2.msra.mxu0 0.0
        %2338 = vmatprep.subr.mxu0 0.0
        %2339 = vmatpush2.msra.mxu0 0.0
        %2340 = vmatprep.subr.mxu0 0.0
        %2341 = vmatpush2.msra.mxu0 0.0
        %2342 = vmatprep.subr.mxu0 0.0
        %2343 = vmatpush2.msra.mxu0 0.0
        %2344 = vmatprep.subr.mxu0 0.0
        %2345 = vmatpush2.msra.mxu0 0.0
        %2346 = vmatprep.subr.mxu0 0.0
        %2347 = vmatpush2.msra.mxu0 0.0
        %2348 = vmatprep.subr.mxu0 0.0
        %2349 = vmatpush2.msra.mxu0 0.0
        %2350 = vmatprep.subr.mxu0 0.0
        %2351 = vmatpush2.msra.mxu0 0.0
        %2352 = vmatprep.subr.mxu0 0.0
        %2353 = vmatpush2.msra.mxu0 0.0
        %2354 = vmatprep.subr.mxu0 0.0
        %2355 = vmatpush2.msra.mxu0 0.0
        %2356 = vmatprep.subr.mxu0 0.0
        %2357 = vmatpush2.msra.mxu0 0.0
        %2358 = vmatprep.subr.mxu0 0.0
        %2359 = vmatpush2.msra.mxu0 0.0
        %2360 = vmatprep.subr.mxu0 0.0
        %2361 = vmatpush2.msra.mxu0 0.0
        %2362 = vmatprep.subr.mxu0 0.0
        %2363 = vmatpush2.msra.mxu0 0.0
        %2364 = vmatprep.mubr.f32.mxu0 0.0
        %2365 = vmatmul.mubr.f32.gmra.mxu0 %v2295
        %v2366 = vpop.f32.mrf.mxu0
        %v2367 = vadd.f32 %v2291, %v2366
        %v2368 = vpop.f32.mrf.mxu0
        %2369 = vdwg.mxu0
        %v2370 = vmax.f32 %v2367, 0.0
        %v2371 = vld [vmem:[%s14] sm:$0xff]
        %v2372 = vld [vmem:[%s14 + $0x8] sm:$0xff]
        %v2373 = vld [vmem:[%s14 + $0x10] sm:$0xff]
        %v2374 = vld [vmem:[%s14 + $0x18] sm:$0xff]
        %v2375 = vld [vmem:[%s14 + $0x20] sm:$0xff]
        %v2376 = vld [vmem:[%s14 + $0x28] sm:$0xff]
        %v2377 = vld [vmem:[%s14 + $0x30] sm:$0xff]
        %v2378 = vld [vmem:[%s14 + $0x38] sm:$0xff]
        %v2379 = vld [vmem:[%s14 + $0x40] sm:$0xff]
        %v2380 = vld [vmem:[%s14 + $0x48] sm:$0xff]
        %v2381 = vld [vmem:[%s14 + $0x50] sm:$0xff]
        %v2382 = vld [vmem:[%s14 + $0x58] sm:$0xff]
        %v2383 = vld [vmem:[%s14 + $0x60] sm:$0xff]
        %v2384 = vld [vmem:[%s14 + $0x68] sm:$0xff]
        %v2385 = vld [vmem:[%s14 + $0x70] sm:$0xff]
        %v2386 = vld [vmem:[%s14 + $0x78] sm:$0xff]
        %v2387 = vld [vmem:[%s14 + $0x80] sm:$0xff]
        %v2388 = vld [vmem:[%s14 + $0x88] sm:$0xff]
        %v2389 = vld [vmem:[%s14 + $0x90] sm:$0xff]
        %v2390 = vld [vmem:[%s14 + $0x98] sm:$0xff]
        %v2391 = vld [vmem:[%s14 + $0xa0] sm:$0xff]
        %v2392 = vld [vmem:[%s14 + $0xa8] sm:$0xff]
        %v2393 = vld [vmem:[%s14 + $0xb0] sm:$0xff]
        %v2394 = vld [vmem:[%s14 + $0xb8] sm:$0xff]
        %v2395 = vld [vmem:[%s14 + $0xc0] sm:$0xf]
        %v2396 = vld [vmem:[%s14 + $0xc8] sm:$0xf]
        %v2397 = vld [vmem:[%s15] sm:$0x3]
        %v2399 = vlaneseq
        %v2400 = vshrl.u32 %v2399, 7
        %v2401 = vsub.s32 0, %v2400
        %v2402 = vrot.slane %v2397, %v2401
        %v2403 = vlaneseq
        %v2404 = vshrl.u32 %v2403, 7
        %v2405 = vsub.s32 1, %v2404
        %v2406 = vrot.slane %v2397, %v2405
        %v2410 = vsel %vm2100, %v2370, 0
        %v2413 = vsel %vm2104, %v2395, 0
        %v2416 = vsel %vm2104, %v2396, 0
        %2418 = vmatprep.subr.mxu0 0.0
        %2419 = vmatpush1.msra.mxu0 0.0
        %2420 = vmatprep.subr.mxu0 0.0
        %2421 = vmatpush1.msra.mxu0 0.0
        %2422 = vmatprep.subr.mxu0 0.0
        %2423 = vmatpush1.msra.mxu0 0.0
        %2424 = vmatprep.subr.mxu0 %v2416
        %2425 = vmatpush1.msra.mxu0 %v2413
        %2426 = vmatprep.subr.mxu0 %v2394
        %2427 = vmatpush1.msra.mxu0 %v2393
        %2428 = vmatprep.subr.mxu0 %v2392
        %2429 = vmatpush1.msra.mxu0 %v2391
        %2430 = vmatprep.subr.mxu0 %v2390
        %2431 = vmatpush1.msra.mxu0 %v2389
        %2432 = vmatprep.subr.mxu0 %v2388
        %2433 = vmatpush1.msra.mxu0 %v2387
        %2434 = vmatprep.subr.mxu0 %v2386
        %2435 = vmatpush1.msra.mxu0 %v2385
        %2436 = vmatprep.subr.mxu0 %v2384
        %2437 = vmatpush1.msra.mxu0 %v2383
        %2438 = vmatprep.subr.mxu0 %v2382
        %2439 = vmatpush1.msra.mxu0 %v2381
        %2440 = vmatprep.subr.mxu0 %v2380
        %2441 = vmatpush1.msra.mxu0 %v2379
        %2442 = vmatprep.subr.mxu0 %v2378
        %2443 = vmatpush1.msra.mxu0 %v2377
        %2444 = vmatprep.subr.mxu0 %v2376
        %2445 = vmatpush1.msra.mxu0 %v2375
        %2446 = vmatprep.subr.mxu0 %v2374
        %2447 = vmatpush1.msra.mxu0 %v2373
        %2448 = vmatprep.subr.mxu0 %v2372
        %2449 = vmatpush1.msra.mxu0 %v2371
        %2450 = vmatprep.subr.mxu0 0.0
        %2451 = vmatpush2.msra.mxu0 0.0
        %2452 = vmatprep.subr.mxu0 0.0
        %2453 = vmatpush2.msra.mxu0 0.0
        %2454 = vmatprep.subr.mxu0 0.0
        %2455 = vmatpush2.msra.mxu0 0.0
        %2456 = vmatprep.subr.mxu0 0.0
        %2457 = vmatpush2.msra.mxu0 0.0
        %2458 = vmatprep.subr.mxu0 0.0
        %2459 = vmatpush2.msra.mxu0 0.0
        %2460 = vmatprep.subr.mxu0 0.0
        %2461 = vmatpush2.msra.mxu0 0.0
        %2462 = vmatprep.subr.mxu0 0.0
        %2463 = vmatpush2.msra.mxu0 0.0
        %2464 = vmatprep.subr.mxu0 0.0
        %2465 = vmatpush2.msra.mxu0 0.0
        %2466 = vmatprep.subr.mxu0 0.0
        %2467 = vmatpush2.msra.mxu0 0.0
        %2468 = vmatprep.subr.mxu0 0.0
        %2469 = vmatpush2.msra.mxu0 0.0
        %2470 = vmatprep.subr.mxu0 0.0
        %2471 = vmatpush2.msra.mxu0 0.0
        %2472 = vmatprep.subr.mxu0 0.0
        %2473 = vmatpush2.msra.mxu0 0.0
        %2474 = vmatprep.subr.mxu0 0.0
        %2475 = vmatpush2.msra.mxu0 0.0
        %2476 = vmatprep.subr.mxu0 0.0
        %2477 = vmatpush2.msra.mxu0 0.0
        %2478 = vmatprep.subr.mxu0 0.0
        %2479 = vmatpush2.msra.mxu0 0.0
        %2480 = vmatprep.subr.mxu0 0.0
        %2481 = vmatpush2.msra.mxu0 0.0
        %2482 = vmatprep.mubr.f32.mxu0 0.0
        %2483 = vmatmul.mubr.f32.gmra.mxu0 %v2410
        %v2484 = vpop.f32.mrf.mxu0
        %v2485 = vadd.f32 %v2402, %v2484
        %v2486 = vpop.f32.mrf.mxu0
        %v2487 = vadd.f32 %v2406, %v2486
        %2488 = vdwg.mxu0
        %v2489 = vmax.f32 %v2485, 0.0
        %v2490 = vmax.f32 %v2487, 0.0
        %v2491 = vld [vmem:[%s16] sm:$0xff]
        %v2492 = vld [vmem:[%s16 + $0x8] sm:$0xff]
        %v2493 = vld [vmem:[%s16 + $0x10] sm:$0xff]
        %v2494 = vld [vmem:[%s16 + $0x18] sm:$0xff]
        %v2495 = vld [vmem:[%s16 + $0x20] sm:$0xff]
        %v2496 = vld [vmem:[%s16 + $0x28] sm:$0xff]
        %v2497 = vld [vmem:[%s16 + $0x30] sm:$0xff]
        %v2498 = vld [vmem:[%s16 + $0x38] sm:$0xff]
        %v2499 = vld [vmem:[%s16 + $0x40] sm:$0xff]
        %v2500 = vld [vmem:[%s16 + $0x48] sm:$0xff]
        %v2501 = vld [vmem:[%s16 + $0x50] sm:$0xff]
        %v2502 = vld [vmem:[%s16 + $0x58] sm:$0xff]
        %v2503 = vld [vmem:[%s16 + $0x60] sm:$0xff]
        %v2504 = vld [vmem:[%s16 + $0x68] sm:$0xff]
        %v2505 = vld [vmem:[%s16 + $0x70] sm:$0xff]
        %v2506 = vld [vmem:[%s16 + $0x78] sm:$0xff]
        %v2507 = vld [vmem:[%s16 + $0x80] sm:$0xff]
        %v2508 = vld [vmem:[%s16 + $0x88] sm:$0xff]
        %v2509 = vld [vmem:[%s16 + $0x90] sm:$0xff]
        %v2510 = vld [vmem:[%s16 + $0x98] sm:$0xff]
        %v2511 = vld [vmem:[%s16 + $0xa0] sm:$0xff]
        %v2512 = vld [vmem:[%s16 + $0xa8] sm:$0xff]
        %v2513 = vld [vmem:[%s16 + $0xb0] sm:$0xff]
        %v2514 = vld [vmem:[%s16 + $0xb8] sm:$0xff]
        %v2515 = vld [vmem:[%s16 + $0xc0] sm:$0xff]
        %v2516 = vld [vmem:[%s16 + $0xc8] sm:$0xff]
        %v2517 = vld [vmem:[%s16 + $0xd0] sm:$0xff]
        %v2518 = vld [vmem:[%s16 + $0xd8] sm:$0xff]
        %v2519 = vld [vmem:[%s16 + $0xe0] sm:$0xff]
        %v2520 = vld [vmem:[%s16 + $0xe8] sm:$0xff]
        %v2521 = vld [vmem:[%s16 + $0xf0] sm:$0xff]
        %v2522 = vld [vmem:[%s16 + $0xf8] sm:$0xff]
        %v2523 = vld [vmem:[%s16 + $0x100] sm:$0xff]
        %v2524 = vld [vmem:[%s16 + $0x108] sm:$0xff]
        %v2525 = vld [vmem:[%s16 + $0x110] sm:$0xff]
        %v2526 = vld [vmem:[%s16 + $0x118] sm:$0xff]
        %v2527 = vld [vmem:[%s16 + $0x120] sm:$0xff]
        %v2528 = vld [vmem:[%s16 + $0x128] sm:$0xff]
        %v2529 = vld [vmem:[%s16 + $0x130] sm:$0xff]
        %v2530 = vld [vmem:[%s16 + $0x138] sm:$0xff]
        %v2531 = vld [vmem:[%s16 + $0x140] sm:$0xff]
        %v2532 = vld [vmem:[%s16 + $0x148] sm:$0xff]
        %v2533 = vld [vmem:[%s16 + $0x150] sm:$0xff]
        %v2534 = vld [vmem:[%s16 + $0x158] sm:$0xff]
        %v2535 = vld [vmem:[%s16 + $0x160] sm:$0xff]
        %v2536 = vld [vmem:[%s16 + $0x168] sm:$0xff]
        %v2537 = vld [vmem:[%s16 + $0x170] sm:$0xff]
        %v2538 = vld [vmem:[%s16 + $0x178] sm:$0xff]
        %v2539 = vld [vmem:[%s16 + $0x180] sm:$0xff]
        %v2540 = vld [vmem:[%s16 + $0x188] sm:$0xff]
        %v2541 = vld [vmem:[%s16 + $0x190] sm:$0xff]
        %v2542 = vld [vmem:[%s16 + $0x198] sm:$0xff]
        %v2543 = vld [vmem:[%s16 + $0x1a0] sm:$0xff]
        %v2544 = vld [vmem:[%s16 + $0x1a8] sm:$0xff]
        %v2545 = vld [vmem:[%s16 + $0x1b0] sm:$0xff]
        %v2546 = vld [vmem:[%s16 + $0x1b8] sm:$0xff]
        %v2547 = vld [vmem:[%s16 + $0x1c0] sm:$0xff]
        %v2548 = vld [vmem:[%s16 + $0x1c8] sm:$0xff]
        %v2549 = vld [vmem:[%s16 + $0x1d0] sm:$0xff]
        %v2550 = vld [vmem:[%s16 + $0x1d8] sm:$0xff]
        %v2551 = vld [vmem:[%s16 + $0x1e0] sm:$0xff]
        %v2552 = vld [vmem:[%s16 + $0x1e8] sm:$0xff]
        %v2553 = vld [vmem:[%s16 + $0x1f0] sm:$0xff]
        %v2554 = vld [vmem:[%s16 + $0x1f8] sm:$0xff]
        %v2555 = vld [vmem:[%s16 + $0x200] sm:$0xff]
        %v2556 = vld [vmem:[%s16 + $0x208] sm:$0xff]
        %v2557 = vld [vmem:[%s16 + $0x210] sm:$0xff]
        %v2558 = vld [vmem:[%s16 + $0x218] sm:$0xff]
        %v2559 = vld [vmem:[%s16 + $0x220] sm:$0xff]
        %v2560 = vld [vmem:[%s16 + $0x228] sm:$0xff]
        %v2561 = vld [vmem:[%s16 + $0x230] sm:$0xff]
        %v2562 = vld [vmem:[%s16 + $0x238] sm:$0xff]
        %v2563 = vld [vmem:[%s16 + $0x240] sm:$0xff]
        %v2564 = vld [vmem:[%s16 + $0x248] sm:$0xff]
        %v2565 = vld [vmem:[%s16 + $0x250] sm:$0xff]
        %v2566 = vld [vmem:[%s16 + $0x258] sm:$0xff]
        %v2567 = vld [vmem:[%s16 + $0x260] sm:$0xff]
        %v2568 = vld [vmem:[%s16 + $0x268] sm:$0xff]
        %v2569 = vld [vmem:[%s16 + $0x270] sm:$0xff]
        %v2570 = vld [vmem:[%s16 + $0x278] sm:$0xff]
        %v2571 = vld [vmem:[%s16 + $0x280] sm:$0xff]
        %v2572 = vld [vmem:[%s16 + $0x288] sm:$0xff]
        %v2573 = vld [vmem:[%s16 + $0x290] sm:$0xff]
        %v2574 = vld [vmem:[%s16 + $0x298] sm:$0xff]
        %v2575 = vld [vmem:[%s16 + $0x2a0] sm:$0xff]
        %v2576 = vld [vmem:[%s16 + $0x2a8] sm:$0xff]
        %v2577 = vld [vmem:[%s16 + $0x2b0] sm:$0xff]
        %v2578 = vld [vmem:[%s16 + $0x2b8] sm:$0xff]
        %v2579 = vld [vmem:[%s16 + $0x2c0] sm:$0xff]
        %v2580 = vld [vmem:[%s16 + $0x2c8] sm:$0xff]
        %v2581 = vld [vmem:[%s16 + $0x2d0] sm:$0xff]
        %v2582 = vld [vmem:[%s16 + $0x2d8] sm:$0xff]
        %v2583 = vld [vmem:[%s16 + $0x2e0] sm:$0xff]
        %v2584 = vld [vmem:[%s16 + $0x2e8] sm:$0xff]
        %v2585 = vld [vmem:[%s16 + $0x2f0] sm:$0xff]
        %v2586 = vld [vmem:[%s16 + $0x2f8] sm:$0xff]
        %v2587 = vld [vmem:[%s16 + $0x300] sm:$0xff]
        %v2588 = vld [vmem:[%s16 + $0x308] sm:$0xff]
        %v2589 = vld [vmem:[%s16 + $0x310] sm:$0xff]
        %v2590 = vld [vmem:[%s16 + $0x318] sm:$0xff]
        %v2591 = vld [vmem:[%s17] sm:$0xf]
        %v2593 = vlaneseq
        %v2594 = vshrl.u32 %v2593, 7
        %v2595 = vsub.s32 0, %v2594
        %v2596 = vrot.slane %v2591, %v2595
        %v2597 = vlaneseq
        %v2598 = vshrl.u32 %v2597, 7
        %v2599 = vsub.s32 1, %v2598
        %v2600 = vrot.slane %v2591, %v2599
        %v2601 = vlaneseq
        %v2602 = vshrl.u32 %v2601, 7
        %v2603 = vsub.s32 2, %v2602
        %v2604 = vrot.slane %v2591, %v2603
        %v2605 = vlaneseq
        %v2606 = vshrl.u32 %v2605, 7
        %v2607 = vsub.s32 3, %v2606
        %v2608 = vrot.slane %v2591, %v2607
        %v2614 = vsel %vm2005, %v2490, 0
        %2616 = vmatprep.subr.mxu0 %v2552
        %2617 = vmatpush1.msra.mxu0 %v2551
        %2618 = vmatprep.subr.mxu0 %v2548
        %2619 = vmatpush1.msra.mxu0 %v2547
        %2620 = vmatprep.subr.mxu0 %v2544
        %2621 = vmatpush1.msra.mxu0 %v2543
        %2622 = vmatprep.subr.mxu0 %v2540
        %2623 = vmatpush1.msra.mxu0 %v2539
        %2624 = vmatprep.subr.mxu0 %v2536
        %2625 = vmatpush1.msra.mxu0 %v2535
        %2626 = vmatprep.subr.mxu0 %v2532
        %2627 = vmatpush1.msra.mxu0 %v2531
        %2628 = vmatprep.subr.mxu0 %v2528
        %2629 = vmatpush1.msra.mxu0 %v2527
        %2630 = vmatprep.subr.mxu0 %v2524
        %2631 = vmatpush1.msra.mxu0 %v2523
        %2632 = vmatprep.subr.mxu0 %v2520
        %2633 = vmatpush1.msra.mxu0 %v2519
        %2634 = vmatprep.subr.mxu0 %v2516
        %2635 = vmatpush1.msra.mxu0 %v2515
        %2636 = vmatprep.subr.mxu0 %v2512
        %2637 = vmatpush1.msra.mxu0 %v2511
        %2638 = vmatprep.subr.mxu0 %v2508
        %2639 = vmatpush1.msra.mxu0 %v2507
        %2640 = vmatprep.subr.mxu0 %v2504
        %2641 = vmatpush1.msra.mxu0 %v2503
        %2642 = vmatprep.subr.mxu0 %v2500
        %2643 = vmatpush1.msra.mxu0 %v2499
        %2644 = vmatprep.subr.mxu0 %v2496
        %2645 = vmatpush1.msra.mxu0 %v2495
        %2646 = vmatprep.subr.mxu0 %v2492
        %2647 = vmatpush1.msra.mxu0 %v2491
        %2648 = vmatprep.subr.mxu0 0.0
        %2649 = vmatpush2.msra.mxu0 0.0
        %2650 = vmatprep.subr.mxu0 0.0
        %2651 = vmatpush2.msra.mxu0 0.0
        %2652 = vmatprep.subr.mxu0 0.0
        %2653 = vmatpush2.msra.mxu0 0.0
        %2654 = vmatprep.subr.mxu0 0.0
        %2655 = vmatpush2.msra.mxu0 0.0
        %2656 = vmatprep.subr.mxu0 0.0
        %2657 = vmatpush2.msra.mxu0 0.0
        %2658 = vmatprep.subr.mxu0 0.0
        %2659 = vmatpush2.msra.mxu0 0.0
        %2660 = vmatprep.subr.mxu0 0.0
        %2661 = vmatpush2.msra.mxu0 0.0
        %2662 = vmatprep.subr.mxu0 %v2588
        %2663 = vmatpush2.msra.mxu0 %v2587
        %2664 = vmatprep.subr.mxu0 %v2584
        %2665 = vmatpush2.msra.mxu0 %v2583
        %2666 = vmatprep.subr.mxu0 %v2580
        %2667 = vmatpush2.msra.mxu0 %v2579
        %2668 = vmatprep.subr.mxu0 %v2576
        %2669 = vmatpush2.msra.mxu0 %v2575
        %2670 = vmatprep.subr.mxu0 %v2572
        %2671 = vmatpush2.msra.mxu0 %v2571
        %2672 = vmatprep.subr.mxu0 %v2568
        %2673 = vmatpush2.msra.mxu0 %v2567
        %2674 = vmatprep.subr.mxu0 %v2564
        %2675 = vmatpush2.msra.mxu0 %v2563
        %2676 = vmatprep.subr.mxu0 %v2560
        %2677 = vmatpush2.msra.mxu0 %v2559
        %2678 = vmatprep.subr.mxu0 %v2556
        %2679 = vmatpush2.msra.mxu0 %v2555
        %2680 = vmatprep.mubr.f32.mxu0 %v2614
        %2681 = vmatmul.mubr.f32.gmra.mxu0 %v2489
        %v2682 = vpop.f32.mrf.mxu0
        %v2683 = vadd.f32 %v2596, %v2682
        %v2684 = vpop.f32.mrf.mxu0
        %v2685 = vadd.f32 %v2600, %v2684
        %2686 = vdwg.mxu0
        %2687 = vmatprep.subr.mxu0 %v2554
        %2688 = vmatpush1.msra.mxu0 %v2553
        %2689 = vmatprep.subr.mxu0 %v2550
        %2690 = vmatpush1.msra.mxu0 %v2549
        %2691 = vmatprep.subr.mxu0 %v2546
        %2692 = vmatpush1.msra.mxu0 %v2545
        %2693 = vmatprep.subr.mxu0 %v2542
        %2694 = vmatpush1.msra.mxu0 %v2541
        %2695 = vmatprep.subr.mxu0 %v2538
        %2696 = vmatpush1.msra.mxu0 %v2537
        %2697 = vmatprep.subr.mxu0 %v2534
        %2698 = vmatpush1.msra.mxu0 %v2533
        %2699 = vmatprep.subr.mxu0 %v2530
        %2700 = vmatpush1.msra.mxu0 %v2529
        %2701 = vmatprep.subr.mxu0 %v2526
        %2702 = vmatpush1.msra.mxu0 %v2525
        %2703 = vmatprep.subr.mxu0 %v2522
        %2704 = vmatpush1.msra.mxu0 %v2521
        %2705 = vmatprep.subr.mxu0 %v2518
        %2706 = vmatpush1.msra.mxu0 %v2517
        %2707 = vmatprep.subr.mxu0 %v2514
        %2708 = vmatpush1.msra.mxu0 %v2513
        %2709 = vmatprep.subr.mxu0 %v2510
        %2710 = vmatpush1.msra.mxu0 %v2509
        %2711 = vmatprep.subr.mxu0 %v2506
        %2712 = vmatpush1.msra.mxu0 %v2505
        %2713 = vmatprep.subr.mxu0 %v2502
        %2714 = vmatpush1.msra.mxu0 %v2501
        %2715 = vmatprep.subr.mxu0 %v2498
        %2716 = vmatpush1.msra.mxu0 %v2497
        %2717 = vmatprep.subr.mxu0 %v2494
        %2718 = vmatpush1.msra.mxu0 %v2493
        %2719 = vmatprep.subr.mxu0 0.0
        %2720 = vmatpush2.msra.mxu0 0.0
        %2721 = vmatprep.subr.mxu0 0.0
        %2722 = vmatpush2.msra.mxu0 0.0
        %2723 = vmatprep.subr.mxu0 0.0
        %2724 = vmatpush2.msra.mxu0 0.0
        %2725 = vmatprep.subr.mxu0 0.0
        %2726 = vmatpush2.msra.mxu0 0.0
        %2727 = vmatprep.subr.mxu0 0.0
        %2728 = vmatpush2.msra.mxu0 0.0
        %2729 = vmatprep.subr.mxu0 0.0
        %2730 = vmatpush2.msra.mxu0 0.0
        %2731 = vmatprep.subr.mxu0 0.0
        %2732 = vmatpush2.msra.mxu0 0.0
        %2733 = vmatprep.subr.mxu0 %v2590
        %2734 = vmatpush2.msra.mxu0 %v2589
        %2735 = vmatprep.subr.mxu0 %v2586
        %2736 = vmatpush2.msra.mxu0 %v2585
        %2737 = vmatprep.subr.mxu0 %v2582
        %2738 = vmatpush2.msra.mxu0 %v2581
        %2739 = vmatprep.subr.mxu0 %v2578
        %2740 = vmatpush2.msra.mxu0 %v2577
        %2741 = vmatprep.subr.mxu0 %v2574
        %2742 = vmatpush2.msra.mxu0 %v2573
        %2743 = vmatprep.subr.mxu0 %v2570
        %2744 = vmatpush2.msra.mxu0 %v2569
        %2745 = vmatprep.subr.mxu0 %v2566
        %2746 = vmatpush2.msra.mxu0 %v2565
        %2747 = vmatprep.subr.mxu0 %v2562
        %2748 = vmatpush2.msra.mxu0 %v2561
        %2749 = vmatprep.subr.mxu0 %v2558
        %2750 = vmatpush2.msra.mxu0 %v2557
        %2751 = vmatprep.mubr.f32.mxu0 %v2614
        %2752 = vmatmul.mubr.f32.gmra.mxu0 %v2489
        %v2753 = vpop.f32.mrf.mxu0
        %v2754 = vadd.f32 %v2604, %v2753
        %v2755 = vpop.f32.mrf.mxu0
        %v2756 = vadd.f32 %v2608, %v2755
        %2757 = vdwg.mxu0
        %v2758 = vmax.f32 %v2683, 0.0
        %v2759 = vmax.f32 %v2685, 0.0
        %v2760 = vmax.f32 %v2754, 0.0
        %v2761 = vmax.f32 %v2756, 0.0
        %v2762 = vld [vmem:[%s18] sm:$0xff]
        %v2763 = vld [vmem:[%s18 + $0x8] sm:$0xff]
        %v2764 = vld [vmem:[%s18 + $0x10] sm:$0xff]
        %v2765 = vld [vmem:[%s18 + $0x18] sm:$0xff]
        %v2766 = vld [vmem:[%s18 + $0x20] sm:$0xff]
        %v2767 = vld [vmem:[%s18 + $0x28] sm:$0xff]
        %v2768 = vld [vmem:[%s18 + $0x30] sm:$0xff]
        %v2769 = vld [vmem:[%s18 + $0x38] sm:$0xff]
        %v2770 = vld [vmem:[%s18 + $0x40] sm:$0xff]
        %v2771 = vld [vmem:[%s18 + $0x48] sm:$0xff]
        %v2772 = vld [vmem:[%s18 + $0x50] sm:$0xff]
        %v2773 = vld [vmem:[%s18 + $0x58] sm:$0xff]
        %v2774 = vld [vmem:[%s18 + $0x60] sm:$0xff]
        %v2775 = vld [vmem:[%s18 + $0x68] sm:$0xff]
        %v2776 = vld [vmem:[%s18 + $0x70] sm:$0xff]
        %v2777 = vld [vmem:[%s18 + $0x78] sm:$0xff]
        %v2778 = vld [vmem:[%s18 + $0x80] sm:$0xff]
        %v2779 = vld [vmem:[%s18 + $0x88] sm:$0xff]
        %v2780 = vld [vmem:[%s18 + $0x90] sm:$0xff]
        %v2781 = vld [vmem:[%s18 + $0x98] sm:$0xff]
        %v2782 = vld [vmem:[%s18 + $0xa0] sm:$0xff]
        %v2783 = vld [vmem:[%s18 + $0xa8] sm:$0xff]
        %v2784 = vld [vmem:[%s18 + $0xb0] sm:$0xff]
        %v2785 = vld [vmem:[%s18 + $0xb8] sm:$0xff]
        %v2786 = vld [vmem:[%s18 + $0xc0] sm:$0xff]
        %v2787 = vld [vmem:[%s18 + $0xc8] sm:$0xff]
        %v2788 = vld [vmem:[%s18 + $0xd0] sm:$0xff]
        %v2789 = vld [vmem:[%s18 + $0xd8] sm:$0xff]
        %v2790 = vld [vmem:[%s18 + $0xe0] sm:$0xff]
        %v2791 = vld [vmem:[%s18 + $0xe8] sm:$0xff]
        %v2792 = vld [vmem:[%s18 + $0xf0] sm:$0xff]
        %v2793 = vld [vmem:[%s18 + $0xf8] sm:$0xff]
        %v2794 = vld [vmem:[%s18 + $0x100] sm:$0xff]
        %v2795 = vld [vmem:[%s18 + $0x108] sm:$0xff]
        %v2796 = vld [vmem:[%s18 + $0x110] sm:$0xff]
        %v2797 = vld [vmem:[%s18 + $0x118] sm:$0xff]
        %v2798 = vld [vmem:[%s18 + $0x120] sm:$0xff]
        %v2799 = vld [vmem:[%s18 + $0x128] sm:$0xff]
        %v2800 = vld [vmem:[%s18 + $0x130] sm:$0xff]
        %v2801 = vld [vmem:[%s18 + $0x138] sm:$0xff]
        %v2802 = vld [vmem:[%s18 + $0x140] sm:$0xff]
        %v2803 = vld [vmem:[%s18 + $0x148] sm:$0xff]
        %v2804 = vld [vmem:[%s18 + $0x150] sm:$0xff]
        %v2805 = vld [vmem:[%s18 + $0x158] sm:$0xff]
        %v2806 = vld [vmem:[%s18 + $0x160] sm:$0xff]
        %v2807 = vld [vmem:[%s18 + $0x168] sm:$0xff]
        %v2808 = vld [vmem:[%s18 + $0x170] sm:$0xff]
        %v2809 = vld [vmem:[%s18 + $0x178] sm:$0xff]
        %v2810 = vld [vmem:[%s18 + $0x180] sm:$0xff]
        %v2811 = vld [vmem:[%s18 + $0x188] sm:$0xff]
        %v2812 = vld [vmem:[%s18 + $0x190] sm:$0xff]
        %v2813 = vld [vmem:[%s18 + $0x198] sm:$0xff]
        %v2814 = vld [vmem:[%s18 + $0x1a0] sm:$0xff]
        %v2815 = vld [vmem:[%s18 + $0x1a8] sm:$0xff]
        %v2816 = vld [vmem:[%s18 + $0x1b0] sm:$0xff]
        %v2817 = vld [vmem:[%s18 + $0x1b8] sm:$0xff]
        %v2818 = vld [vmem:[%s18 + $0x1c0] sm:$0xff]
        %v2819 = vld [vmem:[%s18 + $0x1c8] sm:$0xff]
        %v2820 = vld [vmem:[%s18 + $0x1d0] sm:$0xff]
        %v2821 = vld [vmem:[%s18 + $0x1d8] sm:$0xff]
        %v2822 = vld [vmem:[%s18 + $0x1e0] sm:$0xff]
        %v2823 = vld [vmem:[%s18 + $0x1e8] sm:$0xff]
        %v2824 = vld [vmem:[%s18 + $0x1f0] sm:$0xff]
        %v2825 = vld [vmem:[%s18 + $0x1f8] sm:$0xff]
        %v2826 = vld [vmem:[%s18 + $0x200] sm:$0xff]
        %v2827 = vld [vmem:[%s18 + $0x208] sm:$0xff]
        %v2828 = vld [vmem:[%s18 + $0x210] sm:$0xff]
        %v2829 = vld [vmem:[%s18 + $0x218] sm:$0xff]
        %v2830 = vld [vmem:[%s18 + $0x220] sm:$0xff]
        %v2831 = vld [vmem:[%s18 + $0x228] sm:$0xff]
        %v2832 = vld [vmem:[%s18 + $0x230] sm:$0xff]
        %v2833 = vld [vmem:[%s18 + $0x238] sm:$0xff]
        %v2834 = vld [vmem:[%s18 + $0x240] sm:$0xff]
        %v2835 = vld [vmem:[%s18 + $0x248] sm:$0xff]
        %v2836 = vld [vmem:[%s18 + $0x250] sm:$0xff]
        %v2837 = vld [vmem:[%s18 + $0x258] sm:$0xff]
        %v2838 = vld [vmem:[%s18 + $0x260] sm:$0xff]
        %v2839 = vld [vmem:[%s18 + $0x268] sm:$0xff]
        %v2840 = vld [vmem:[%s18 + $0x270] sm:$0xff]
        %v2841 = vld [vmem:[%s18 + $0x278] sm:$0xff]
        %v2842 = vld [vmem:[%s18 + $0x280] sm:$0xff]
        %v2843 = vld [vmem:[%s18 + $0x288] sm:$0xff]
        %v2844 = vld [vmem:[%s18 + $0x290] sm:$0xff]
        %v2845 = vld [vmem:[%s18 + $0x298] sm:$0xff]
        %v2846 = vld [vmem:[%s18 + $0x2a0] sm:$0xff]
        %v2847 = vld [vmem:[%s18 + $0x2a8] sm:$0xff]
        %v2848 = vld [vmem:[%s18 + $0x2b0] sm:$0xff]
        %v2849 = vld [vmem:[%s18 + $0x2b8] sm:$0xff]
        %v2850 = vld [vmem:[%s18 + $0x2c0] sm:$0xff]
        %v2851 = vld [vmem:[%s18 + $0x2c8] sm:$0xff]
        %v2852 = vld [vmem:[%s18 + $0x2d0] sm:$0xff]
        %v2853 = vld [vmem:[%s18 + $0x2d8] sm:$0xff]
        %v2854 = vld [vmem:[%s18 + $0x2e0] sm:$0xff]
        %v2855 = vld [vmem:[%s18 + $0x2e8] sm:$0xff]
        %v2856 = vld [vmem:[%s18 + $0x2f0] sm:$0xff]
        %v2857 = vld [vmem:[%s18 + $0x2f8] sm:$0xff]
        %v2858 = vld [vmem:[%s18 + $0x300] sm:$0xff]
        %v2859 = vld [vmem:[%s18 + $0x308] sm:$0xff]
        %v2860 = vld [vmem:[%s18 + $0x310] sm:$0xff]
        %v2861 = vld [vmem:[%s18 + $0x318] sm:$0xff]
        %v2862 = vld [vmem:[%s18 + $0x320] sm:$0xff]
        %v2863 = vld [vmem:[%s18 + $0x328] sm:$0xff]
        %v2864 = vld [vmem:[%s18 + $0x330] sm:$0xff]
        %v2865 = vld [vmem:[%s18 + $0x338] sm:$0xff]
        %v2866 = vld [vmem:[%s18 + $0x340] sm:$0xff]
        %v2867 = vld [vmem:[%s18 + $0x348] sm:$0xff]
        %v2868 = vld [vmem:[%s18 + $0x350] sm:$0xff]
        %v2869 = vld [vmem:[%s18 + $0x358] sm:$0xff]
        %v2870 = vld [vmem:[%s18 + $0x360] sm:$0xff]
        %v2871 = vld [vmem:[%s18 + $0x368] sm:$0xff]
        %v2872 = vld [vmem:[%s18 + $0x370] sm:$0xff]
        %v2873 = vld [vmem:[%s18 + $0x378] sm:$0xff]
        %v2874 = vld [vmem:[%s18 + $0x380] sm:$0xff]
        %v2875 = vld [vmem:[%s18 + $0x388] sm:$0xff]
        %v2876 = vld [vmem:[%s18 + $0x390] sm:$0xff]
        %v2877 = vld [vmem:[%s18 + $0x398] sm:$0xff]
        %v2878 = vld [vmem:[%s18 + $0x3a0] sm:$0xff]
        %v2879 = vld [vmem:[%s18 + $0x3a8] sm:$0xff]
        %v2880 = vld [vmem:[%s18 + $0x3b0] sm:$0xff]
        %v2881 = vld [vmem:[%s18 + $0x3b8] sm:$0xff]
        %v2882 = vld [vmem:[%s18 + $0x3c0] sm:$0xff]
        %v2883 = vld [vmem:[%s18 + $0x3c8] sm:$0xff]
        %v2884 = vld [vmem:[%s18 + $0x3d0] sm:$0xff]
        %v2885 = vld [vmem:[%s18 + $0x3d8] sm:$0xff]
        %v2886 = vld [vmem:[%s18 + $0x3e0] sm:$0xff]
        %v2887 = vld [vmem:[%s18 + $0x3e8] sm:$0xff]
        %v2888 = vld [vmem:[%s18 + $0x3f0] sm:$0xff]
        %v2889 = vld [vmem:[%s18 + $0x3f8] sm:$0xff]
        %v2890 = vld [vmem:[%s18 + $0x400] sm:$0xff]
        %v2891 = vld [vmem:[%s18 + $0x408] sm:$0xff]
        %v2892 = vld [vmem:[%s18 + $0x410] sm:$0xff]
        %v2893 = vld [vmem:[%s18 + $0x418] sm:$0xff]
        %v2894 = vld [vmem:[%s18 + $0x420] sm:$0xff]
        %v2895 = vld [vmem:[%s18 + $0x428] sm:$0xff]
        %v2896 = vld [vmem:[%s18 + $0x430] sm:$0xff]
        %v2897 = vld [vmem:[%s18 + $0x438] sm:$0xff]
        %v2898 = vld [vmem:[%s18 + $0x440] sm:$0xff]
        %v2899 = vld [vmem:[%s18 + $0x448] sm:$0xff]
        %v2900 = vld [vmem:[%s18 + $0x450] sm:$0xff]
        %v2901 = vld [vmem:[%s18 + $0x458] sm:$0xff]
        %v2902 = vld [vmem:[%s18 + $0x460] sm:$0xff]
        %v2903 = vld [vmem:[%s18 + $0x468] sm:$0xff]
        %v2904 = vld [vmem:[%s18 + $0x470] sm:$0xff]
        %v2905 = vld [vmem:[%s18 + $0x478] sm:$0xff]
        %v2906 = vld [vmem:[%s18 + $0x480] sm:$0xff]
        %v2907 = vld [vmem:[%s18 + $0x488] sm:$0xff]
        %v2908 = vld [vmem:[%s18 + $0x490] sm:$0xff]
        %v2909 = vld [vmem:[%s18 + $0x498] sm:$0xff]
        %v2910 = vld [vmem:[%s18 + $0x4a0] sm:$0xff]
        %v2911 = vld [vmem:[%s18 + $0x4a8] sm:$0xff]
        %v2912 = vld [vmem:[%s18 + $0x4b0] sm:$0xff]
        %v2913 = vld [vmem:[%s18 + $0x4b8] sm:$0xff]
        %v2914 = vld [vmem:[%s18 + $0x4c0] sm:$0xff]
        %v2915 = vld [vmem:[%s18 + $0x4c8] sm:$0xff]
        %v2916 = vld [vmem:[%s18 + $0x4d0] sm:$0xff]
        %v2917 = vld [vmem:[%s18 + $0x4d8] sm:$0xff]
        %v2918 = vld [vmem:[%s18 + $0x4e0] sm:$0xff]
        %v2919 = vld [vmem:[%s18 + $0x4e8] sm:$0xff]
        %v2920 = vld [vmem:[%s18 + $0x4f0] sm:$0xff]
        %v2921 = vld [vmem:[%s18 + $0x4f8] sm:$0xff]
        %v2922 = vld [vmem:[%s18 + $0x500] sm:$0xff]
        %v2923 = vld [vmem:[%s18 + $0x508] sm:$0xff]
        %v2924 = vld [vmem:[%s18 + $0x510] sm:$0xff]
        %v2925 = vld [vmem:[%s18 + $0x518] sm:$0xff]
        %v2926 = vld [vmem:[%s18 + $0x520] sm:$0xff]
        %v2927 = vld [vmem:[%s18 + $0x528] sm:$0xff]
        %v2928 = vld [vmem:[%s18 + $0x530] sm:$0xff]
        %v2929 = vld [vmem:[%s18 + $0x538] sm:$0xff]
        %v2930 = vld [vmem:[%s18 + $0x540] sm:$0xff]
        %v2931 = vld [vmem:[%s18 + $0x548] sm:$0xff]
        %v2932 = vld [vmem:[%s18 + $0x550] sm:$0xff]
        %v2933 = vld [vmem:[%s18 + $0x558] sm:$0xff]
        %v2934 = vld [vmem:[%s18 + $0x560] sm:$0xff]
        %v2935 = vld [vmem:[%s18 + $0x568] sm:$0xff]
        %v2936 = vld [vmem:[%s18 + $0x570] sm:$0xff]
        %v2937 = vld [vmem:[%s18 + $0x578] sm:$0xff]
        %v2938 = vld [vmem:[%s18 + $0x580] sm:$0xff]
        %v2939 = vld [vmem:[%s18 + $0x588] sm:$0xff]
        %v2940 = vld [vmem:[%s18 + $0x590] sm:$0xff]
        %v2941 = vld [vmem:[%s18 + $0x598] sm:$0xff]
        %v2942 = vld [vmem:[%s18 + $0x5a0] sm:$0xff]
        %v2943 = vld [vmem:[%s18 + $0x5a8] sm:$0xff]
        %v2944 = vld [vmem:[%s18 + $0x5b0] sm:$0xff]
        %v2945 = vld [vmem:[%s18 + $0x5b8] sm:$0xff]
        %v2946 = vld [vmem:[%s18 + $0x5c0] sm:$0xff]
        %v2947 = vld [vmem:[%s18 + $0x5c8] sm:$0xff]
        %v2948 = vld [vmem:[%s18 + $0x5d0] sm:$0xff]
        %v2949 = vld [vmem:[%s18 + $0x5d8] sm:$0xff]
        %v2950 = vld [vmem:[%s18 + $0x5e0] sm:$0xff]
        %v2951 = vld [vmem:[%s18 + $0x5e8] sm:$0xff]
        %v2952 = vld [vmem:[%s18 + $0x5f0] sm:$0xff]
        %v2953 = vld [vmem:[%s18 + $0x5f8] sm:$0xff]
        %v2954 = vld [vmem:[%s18 + $0x600] sm:$0xff]
        %v2955 = vld [vmem:[%s18 + $0x608] sm:$0xff]
        %v2956 = vld [vmem:[%s18 + $0x610] sm:$0xff]
        %v2957 = vld [vmem:[%s18 + $0x618] sm:$0xff]
        %v2958 = vld [vmem:[%s18 + $0x620] sm:$0xff]
        %v2959 = vld [vmem:[%s18 + $0x628] sm:$0xff]
        %v2960 = vld [vmem:[%s18 + $0x630] sm:$0xff]
        %v2961 = vld [vmem:[%s18 + $0x638] sm:$0xff]
        %v2962 = vld [vmem:[%s18 + $0x640] sm:$0xff]
        %v2963 = vld [vmem:[%s18 + $0x648] sm:$0xff]
        %v2964 = vld [vmem:[%s18 + $0x650] sm:$0xff]
        %v2965 = vld [vmem:[%s18 + $0x658] sm:$0xff]
        %v2966 = vld [vmem:[%s18 + $0x660] sm:$0xff]
        %v2967 = vld [vmem:[%s18 + $0x668] sm:$0xff]
        %v2968 = vld [vmem:[%s18 + $0x670] sm:$0xff]
        %v2969 = vld [vmem:[%s18 + $0x678] sm:$0xff]
        %v2970 = vld [vmem:[%s18 + $0x680] sm:$0xff]
        %v2971 = vld [vmem:[%s18 + $0x688] sm:$0xff]
        %v2972 = vld [vmem:[%s18 + $0x690] sm:$0xff]
        %v2973 = vld [vmem:[%s18 + $0x698] sm:$0xff]
        %v2974 = vld [vmem:[%s18 + $0x6a0] sm:$0xff]
        %v2975 = vld [vmem:[%s18 + $0x6a8] sm:$0xff]
        %v2976 = vld [vmem:[%s18 + $0x6b0] sm:$0xff]
        %v2977 = vld [vmem:[%s18 + $0x6b8] sm:$0xff]
        %v2978 = vld [vmem:[%s18 + $0x6c0] sm:$0xff]
        %v2979 = vld [vmem:[%s18 + $0x6c8] sm:$0xff]
        %v2980 = vld [vmem:[%s18 + $0x6d0] sm:$0xff]
        %v2981 = vld [vmem:[%s18 + $0x6d8] sm:$0xff]
        %v2982 = vld [vmem:[%s18 + $0x6e0] sm:$0xff]
        %v2983 = vld [vmem:[%s18 + $0x6e8] sm:$0xff]
        %v2984 = vld [vmem:[%s18 + $0x6f0] sm:$0xff]
        %v2985 = vld [vmem:[%s18 + $0x6f8] sm:$0xff]
        %v2986 = vld [vmem:[%s18 + $0x700] sm:$0xff]
        %v2987 = vld [vmem:[%s18 + $0x708] sm:$0xff]
        %v2988 = vld [vmem:[%s18 + $0x710] sm:$0xff]
        %v2989 = vld [vmem:[%s18 + $0x718] sm:$0xff]
        %v2990 = vld [vmem:[%s18 + $0x720] sm:$0xff]
        %v2991 = vld [vmem:[%s18 + $0x728] sm:$0xff]
        %v2992 = vld [vmem:[%s18 + $0x730] sm:$0xff]
        %v2993 = vld [vmem:[%s18 + $0x738] sm:$0xff]
        %v2994 = vld [vmem:[%s18 + $0x740] sm:$0xff]
        %v2995 = vld [vmem:[%s18 + $0x748] sm:$0xff]
        %v2996 = vld [vmem:[%s18 + $0x750] sm:$0xff]
        %v2997 = vld [vmem:[%s18 + $0x758] sm:$0xff]
        %v2998 = vld [vmem:[%s18 + $0x760] sm:$0xff]
        %v2999 = vld [vmem:[%s18 + $0x768] sm:$0xff]
        %v3000 = vld [vmem:[%s18 + $0x770] sm:$0xff]
        %v3001 = vld [vmem:[%s18 + $0x778] sm:$0xff]
        %v3002 = vld [vmem:[%s18 + $0x780] sm:$0xff]
        %v3003 = vld [vmem:[%s18 + $0x788] sm:$0xff]
        %v3004 = vld [vmem:[%s18 + $0x790] sm:$0xff]
        %v3005 = vld [vmem:[%s18 + $0x798] sm:$0xff]
        %v3006 = vld [vmem:[%s18 + $0x7a0] sm:$0xff]
        %v3007 = vld [vmem:[%s18 + $0x7a8] sm:$0xff]
        %v3008 = vld [vmem:[%s18 + $0x7b0] sm:$0xff]
        %v3009 = vld [vmem:[%s18 + $0x7b8] sm:$0xff]
        %v3010 = vld [vmem:[%s18 + $0x7c0] sm:$0xff]
        %v3011 = vld [vmem:[%s18 + $0x7c8] sm:$0xff]
        %v3012 = vld [vmem:[%s18 + $0x7d0] sm:$0xff]
        %v3013 = vld [vmem:[%s18 + $0x7d8] sm:$0xff]
        %v3014 = vld [vmem:[%s18 + $0x7e0] sm:$0xff]
        %v3015 = vld [vmem:[%s18 + $0x7e8] sm:$0xff]
        %v3016 = vld [vmem:[%s18 + $0x7f0] sm:$0xff]
        %v3017 = vld [vmem:[%s18 + $0x7f8] sm:$0xff]
        %v3018 = vld [vmem:[%s18 + $0x800] sm:$0xff]
        %v3019 = vld [vmem:[%s18 + $0x808] sm:$0xff]
        %v3020 = vld [vmem:[%s18 + $0x810] sm:$0xff]
        %v3021 = vld [vmem:[%s18 + $0x818] sm:$0xff]
        %v3022 = vld [vmem:[%s18 + $0x820] sm:$0xff]
        %v3023 = vld [vmem:[%s18 + $0x828] sm:$0xff]
        %v3024 = vld [vmem:[%s18 + $0x830] sm:$0xff]
        %v3025 = vld [vmem:[%s18 + $0x838] sm:$0xff]
        %v3026 = vld [vmem:[%s18 + $0x840] sm:$0xff]
        %v3027 = vld [vmem:[%s18 + $0x848] sm:$0xff]
        %v3028 = vld [vmem:[%s18 + $0x850] sm:$0xff]
        %v3029 = vld [vmem:[%s18 + $0x858] sm:$0xff]
        %v3030 = vld [vmem:[%s18 + $0x860] sm:$0xff]
        %v3031 = vld [vmem:[%s18 + $0x868] sm:$0xff]
        %v3032 = vld [vmem:[%s18 + $0x870] sm:$0xff]
        %v3033 = vld [vmem:[%s18 + $0x878] sm:$0xff]
        %v3034 = vld [vmem:[%s18 + $0x880] sm:$0xff]
        %v3035 = vld [vmem:[%s18 + $0x888] sm:$0xff]
        %v3036 = vld [vmem:[%s18 + $0x890] sm:$0xff]
        %v3037 = vld [vmem:[%s18 + $0x898] sm:$0xff]
        %v3038 = vld [vmem:[%s18 + $0x8a0] sm:$0xff]
        %v3039 = vld [vmem:[%s18 + $0x8a8] sm:$0xff]
        %v3040 = vld [vmem:[%s18 + $0x8b0] sm:$0xff]
        %v3041 = vld [vmem:[%s18 + $0x8b8] sm:$0xff]
        %v3042 = vld [vmem:[%s18 + $0x8c0] sm:$0xff]
        %v3043 = vld [vmem:[%s18 + $0x8c8] sm:$0xff]
        %v3044 = vld [vmem:[%s18 + $0x8d0] sm:$0xff]
        %v3045 = vld [vmem:[%s18 + $0x8d8] sm:$0xff]
        %v3046 = vld [vmem:[%s18 + $0x8e0] sm:$0xff]
        %v3047 = vld [vmem:[%s18 + $0x8e8] sm:$0xff]
        %v3048 = vld [vmem:[%s18 + $0x8f0] sm:$0xff]
        %v3049 = vld [vmem:[%s18 + $0x8f8] sm:$0xff]
        %v3050 = vld [vmem:[%s18 + $0x900] sm:$0xff]
        %v3051 = vld [vmem:[%s18 + $0x908] sm:$0xff]
        %v3052 = vld [vmem:[%s18 + $0x910] sm:$0xff]
        %v3053 = vld [vmem:[%s18 + $0x918] sm:$0xff]
        %v3054 = vld [vmem:[%s18 + $0x920] sm:$0xff]
        %v3055 = vld [vmem:[%s18 + $0x928] sm:$0xff]
        %v3056 = vld [vmem:[%s18 + $0x930] sm:$0xff]
        %v3057 = vld [vmem:[%s18 + $0x938] sm:$0xff]
        %v3058 = vld [vmem:[%s18 + $0x940] sm:$0xff]
        %v3059 = vld [vmem:[%s18 + $0x948] sm:$0xff]
        %v3060 = vld [vmem:[%s18 + $0x950] sm:$0xff]
        %v3061 = vld [vmem:[%s18 + $0x958] sm:$0xff]
        %v3062 = vld [vmem:[%s18 + $0x960] sm:$0xff]
        %v3063 = vld [vmem:[%s18 + $0x968] sm:$0xff]
        %v3064 = vld [vmem:[%s18 + $0x970] sm:$0xff]
        %v3065 = vld [vmem:[%s18 + $0x978] sm:$0xff]
        %v3066 = vld [vmem:[%s18 + $0x980] sm:$0xff]
        %v3067 = vld [vmem:[%s18 + $0x988] sm:$0xff]
        %v3068 = vld [vmem:[%s18 + $0x990] sm:$0xff]
        %v3069 = vld [vmem:[%s18 + $0x998] sm:$0xff]
        %v3070 = vld [vmem:[%s18 + $0x9a0] sm:$0xff]
        %v3071 = vld [vmem:[%s18 + $0x9a8] sm:$0xff]
        %v3072 = vld [vmem:[%s18 + $0x9b0] sm:$0xff]
        %v3073 = vld [vmem:[%s18 + $0x9b8] sm:$0xff]
        %v3074 = vld [vmem:[%s18 + $0x9c0] sm:$0xff]
        %v3075 = vld [vmem:[%s18 + $0x9c8] sm:$0xff]
        %v3076 = vld [vmem:[%s18 + $0x9d0] sm:$0xff]
        %v3077 = vld [vmem:[%s18 + $0x9d8] sm:$0xff]
        %v3078 = vld [vmem:[%s18 + $0x9e0] sm:$0xff]
        %v3079 = vld [vmem:[%s18 + $0x9e8] sm:$0xff]
        %v3080 = vld [vmem:[%s18 + $0x9f0] sm:$0xff]
        %v3081 = vld [vmem:[%s18 + $0x9f8] sm:$0xff]
        %v3082 = vld [vmem:[%s18 + $0xa00] sm:$0xff]
        %v3083 = vld [vmem:[%s18 + $0xa08] sm:$0xff]
        %v3084 = vld [vmem:[%s18 + $0xa10] sm:$0xff]
        %v3085 = vld [vmem:[%s18 + $0xa18] sm:$0xff]
        %v3086 = vld [vmem:[%s18 + $0xa20] sm:$0xff]
        %v3087 = vld [vmem:[%s18 + $0xa28] sm:$0xff]
        %v3088 = vld [vmem:[%s18 + $0xa30] sm:$0xff]
        %v3089 = vld [vmem:[%s18 + $0xa38] sm:$0xff]
        %v3090 = vld [vmem:[%s18 + $0xa40] sm:$0xff]
        %v3091 = vld [vmem:[%s18 + $0xa48] sm:$0xff]
        %v3092 = vld [vmem:[%s18 + $0xa50] sm:$0xff]
        %v3093 = vld [vmem:[%s18 + $0xa58] sm:$0xff]
        %v3094 = vld [vmem:[%s18 + $0xa60] sm:$0xff]
        %v3095 = vld [vmem:[%s18 + $0xa68] sm:$0xff]
        %v3096 = vld [vmem:[%s18 + $0xa70] sm:$0xff]
        %v3097 = vld [vmem:[%s18 + $0xa78] sm:$0xff]
        %v3098 = vld [vmem:[%s18 + $0xa80] sm:$0xff]
        %v3099 = vld [vmem:[%s18 + $0xa88] sm:$0xff]
        %v3100 = vld [vmem:[%s18 + $0xa90] sm:$0xff]
        %v3101 = vld [vmem:[%s18 + $0xa98] sm:$0xff]
        %v3102 = vld [vmem:[%s18 + $0xaa0] sm:$0xff]
        %v3103 = vld [vmem:[%s18 + $0xaa8] sm:$0xff]
        %v3104 = vld [vmem:[%s18 + $0xab0] sm:$0xff]
        %v3105 = vld [vmem:[%s18 + $0xab8] sm:$0xff]
        %v3106 = vld [vmem:[%s18 + $0xac0] sm:$0xff]
        %v3107 = vld [vmem:[%s18 + $0xac8] sm:$0xff]
        %v3108 = vld [vmem:[%s18 + $0xad0] sm:$0xff]
        %v3109 = vld [vmem:[%s18 + $0xad8] sm:$0xff]
        %v3110 = vld [vmem:[%s18 + $0xae0] sm:$0xff]
        %v3111 = vld [vmem:[%s18 + $0xae8] sm:$0xff]
        %v3112 = vld [vmem:[%s19] sm:$0x7f]
        %v3114 = vlaneseq
        %v3115 = vshrl.u32 %v3114, 7
        %v3116 = vsub.s32 0, %v3115
        %v3117 = vrot.slane %v3112, %v3116
        %v3118 = vlaneseq
        %v3119 = vshrl.u32 %v3118, 7
        %v3120 = vsub.s32 1, %v3119
        %v3121 = vrot.slane %v3112, %v3120
        %v3122 = vlaneseq
        %v3123 = vshrl.u32 %v3122, 7
        %v3124 = vsub.s32 2, %v3123
        %v3125 = vrot.slane %v3112, %v3124
        %v3126 = vlaneseq
        %v3127 = vshrl.u32 %v3126, 7
        %v3128 = vsub.s32 3, %v3127
        %v3129 = vrot.slane %v3112, %v3128
        %v3130 = vlaneseq
        %v3131 = vshrl.u32 %v3130, 7
        %v3132 = vsub.s32 4, %v3131
        %v3133 = vrot.slane %v3112, %v3132
        %v3134 = vlaneseq
        %v3135 = vshrl.u32 %v3134, 7
        %v3136 = vsub.s32 5, %v3135
        %v3137 = vrot.slane %v3112, %v3136
        %v3138 = vlaneseq
        %v3139 = vshrl.u32 %v3138, 7
        %v3140 = vsub.s32 6, %v3139
        %v3141 = vrot.slane %v3112, %v3140
        %v3150 = vsel %vm1138, %v2761, 0
        %3152 = vmatprep.subr.mxu0 %v2868
        %3153 = vmatpush1.msra.mxu0 %v2867
        %3154 = vmatprep.subr.mxu0 %v2861
        %3155 = vmatpush1.msra.mxu0 %v2860
        %3156 = vmatprep.subr.mxu0 %v2854
        %3157 = vmatpush1.msra.mxu0 %v2853
        %3158 = vmatprep.subr.mxu0 %v2847
        %3159 = vmatpush1.msra.mxu0 %v2846
        %3160 = vmatprep.subr.mxu0 %v2840
        %3161 = vmatpush1.msra.mxu0 %v2839
        %3162 = vmatprep.subr.mxu0 %v2833
        %3163 = vmatpush1.msra.mxu0 %v2832
        %3164 = vmatprep.subr.mxu0 %v2826
        %3165 = vmatpush1.msra.mxu0 %v2825
        %3166 = vmatprep.subr.mxu0 %v2819
        %3167 = vmatpush1.msra.mxu0 %v2818
        %3168 = vmatprep.subr.mxu0 %v2812
        %3169 = vmatpush1.msra.mxu0 %v2811
        %3170 = vmatprep.subr.mxu0 %v2805
        %3171 = vmatpush1.msra.mxu0 %v2804
        %3172 = vmatprep.subr.mxu0 %v2798
        %3173 = vmatpush1.msra.mxu0 %v2797
        %3174 = vmatprep.subr.mxu0 %v2791
        %3175 = vmatpush1.msra.mxu0 %v2790
        %3176 = vmatprep.subr.mxu0 %v2784
        %3177 = vmatpush1.msra.mxu0 %v2783
        %3178 = vmatprep.subr.mxu0 %v2777
        %3179 = vmatpush1.msra.mxu0 %v2776
        %3180 = vmatprep.subr.mxu0 %v2770
        %3181 = vmatpush1.msra.mxu0 %v2769
        %3182 = vmatprep.subr.mxu0 %v2763
        %3183 = vmatpush1.msra.mxu0 %v2762
        %3184 = vmatprep.subr.mxu0 %v2980
        %3185 = vmatpush2.msra.mxu0 %v2979
        %3186 = vmatprep.subr.mxu0 %v2973
        %3187 = vmatpush2.msra.mxu0 %v2972
        %3188 = vmatprep.subr.mxu0 %v2966
        %3189 = vmatpush2.msra.mxu0 %v2965
        %3190 = vmatprep.subr.mxu0 %v2959
        %3191 = vmatpush2.msra.mxu0 %v2958
        %3192 = vmatprep.subr.mxu0 %v2952
        %3193 = vmatpush2.msra.mxu0 %v2951
        %3194 = vmatprep.subr.mxu0 %v2945
        %3195 = vmatpush2.msra.mxu0 %v2944
        %3196 = vmatprep.subr.mxu0 %v2938
        %3197 = vmatpush2.msra.mxu0 %v2937
        %3198 = vmatprep.subr.mxu0 %v2931
        %3199 = vmatpush2.msra.mxu0 %v2930
        %3200 = vmatprep.subr.mxu0 %v2924
        %3201 = vmatpush2.msra.mxu0 %v2923
        %3202 = vmatprep.subr.mxu0 %v2917
        %3203 = vmatpush2.msra.mxu0 %v2916
        %3204 = vmatprep.subr.mxu0 %v2910
        %3205 = vmatpush2.msra.mxu0 %v2909
        %3206 = vmatprep.subr.mxu0 %v2903
        %3207 = vmatpush2.msra.mxu0 %v2902
        %3208 = vmatprep.subr.mxu0 %v2896
        %3209 = vmatpush2.msra.mxu0 %v2895
        %3210 = vmatprep.subr.mxu0 %v2889
        %3211 = vmatpush2.msra.mxu0 %v2888
        %3212 = vmatprep.subr.mxu0 %v2882
        %3213 = vmatpush2.msra.mxu0 %v2881
        %3214 = vmatprep.subr.mxu0 %v2875
        %3215 = vmatpush2.msra.mxu0 %v2874
        %3216 = vmatprep.mubr.f32.mxu0 %v2759
        %3217 = vmatmul.mubr.f32.gmra.mxu0 %v2758
        %v3218 = vpop.f32.mrf.mxu0
        %v3219 = vadd.f32 %v3117, %v3218
        %v3220 = vpop.f32.mrf.mxu0
        %v3221 = vadd.f32 %v3121, %v3220
        %3222 = vdwg.mxu0
        %3223 = vmatprep.subr.mxu0 %v3092
        %3224 = vmatpush1.msra.mxu0 %v3091
        %3225 = vmatprep.subr.mxu0 %v3085
        %3226 = vmatpush1.msra.mxu0 %v3084
        %3227 = vmatprep.subr.mxu0 %v3078
        %3228 = vmatpush1.msra.mxu0 %v3077
        %3229 = vmatprep.subr.mxu0 %v3071
        %3230 = vmatpush1.msra.mxu0 %v3070
        %3231 = vmatprep.subr.mxu0 %v3064
        %3232 = vmatpush1.msra.mxu0 %v3063
        %3233 = vmatprep.subr.mxu0 %v3057
        %3234 = vmatpush1.msra.mxu0 %v3056
        %3235 = vmatprep.subr.mxu0 %v3050
        %3236 = vmatpush1.msra.mxu0 %v3049
        %3237 = vmatprep.subr.mxu0 %v3043
        %3238 = vmatpush1.msra.mxu0 %v3042
        %3239 = vmatprep.subr.mxu0 %v3036
        %3240 = vmatpush1.msra.mxu0 %v3035
        %3241 = vmatprep.subr.mxu0 %v3029
        %3242 = vmatpush1.msra.mxu0 %v3028
        %3243 = vmatprep.subr.mxu0 %v3022
        %3244 = vmatpush1.msra.mxu0 %v3021
        %3245 = vmatprep.subr.mxu0 %v3015
        %3246 = vmatpush1.msra.mxu0 %v3014
        %3247 = vmatprep.subr.mxu0 %v3008
        %3248 = vmatpush1.msra.mxu0 %v3007
        %3249 = vmatprep.subr.mxu0 %v3001
        %3250 = vmatpush1.msra.mxu0 %v3000
        %3251 = vmatprep.subr.mxu0 %v2994
        %3252 = vmatpush1.msra.mxu0 %v2993
        %3253 = vmatprep.subr.mxu0 %v2987
        %3254 = vmatpush1.msra.mxu0 %v2986
        %3255 = vmatprep.subr.mxu0 0.0
        %3256 = vmatpush2.msra.mxu0 0.0
        %3257 = vmatprep.subr.mxu0 0.0
        %3258 = vmatpush2.msra.mxu0 0.0
        %3259 = vmatprep.subr.mxu0 0.0
        %3260 = vmatpush2.msra.mxu0 0.0
        %3261 = vmatprep.subr.mxu0 0.0
        %3262 = vmatpush2.msra.mxu0 0.0
        %3263 = vmatprep.subr.mxu0 0.0
        %3264 = vmatpush2.msra.mxu0 0.0
        %3265 = vmatprep.subr.mxu0 0.0
        %3266 = vmatpush2.msra.mxu0 0.0
        %3267 = vmatprep.subr.mxu0 0.0
        %3268 = vmatpush2.msra.mxu0 0.0
        %3269 = vmatprep.subr.mxu0 0.0
        %3270 = vmatpush2.msra.mxu0 0.0
        %3271 = vmatprep.subr.mxu0 0.0
        %3272 = vmatpush2.msra.mxu0 0.0
        %3273 = vmatprep.subr.mxu0 0.0
        %3274 = vmatpush2.msra.mxu0 0.0
        %3275 = vmatprep.subr.mxu0 0.0
        %3276 = vmatpush2.msra.mxu0 0.0
        %3277 = vmatprep.subr.mxu0 0.0
        %3278 = vmatpush2.msra.mxu0 0.0
        %3279 = vmatprep.subr.mxu0 0.0
        %3280 = vmatpush2.msra.mxu0 0.0
        %3281 = vmatprep.subr.mxu0 0.0
        %3282 = vmatpush2.msra.mxu0 0.0
        %3283 = vmatprep.subr.mxu0 %v3106
        %3284 = vmatpush2.msra.mxu0 %v3105
        %3285 = vmatprep.subr.mxu0 %v3099
        %3286 = vmatpush2.msra.mxu0 %v3098
        %3287 = vmatprep.mubr.f32.mxu0 %v3150
        %3288 = vmatmul.mubr.f32.gmra.mxu0 %v2760
        %v3289 = vpop.f32.mrf.mxu0
        %v3290 = vadd.f32 %v3219, %v3289
        %v3291 = vpop.f32.mrf.mxu0
        %v3292 = vadd.f32 %v3221, %v3291
        %3293 = vdwg.mxu0
        %3294 = vmatprep.subr.mxu0 %v2870
        %3295 = vmatpush1.msra.mxu0 %v2869
        %3296 = vmatprep.subr.mxu0 %v2863
        %3297 = vmatpush1.msra.mxu0 %v2862
        %3298 = vmatprep.subr.mxu0 %v2856
        %3299 = vmatpush1.msra.mxu0 %v2855
        %3300 = vmatprep.subr.mxu0 %v2849
        %3301 = vmatpush1.msra.mxu0 %v2848
        %3302 = vmatprep.subr.mxu0 %v2842
        %3303 = vmatpush1.msra.mxu0 %v2841
        %3304 = vmatprep.subr.mxu0 %v2835
        %3305 = vmatpush1.msra.mxu0 %v2834
        %3306 = vmatprep.subr.mxu0 %v2828
        %3307 = vmatpush1.msra.mxu0 %v2827
        %3308 = vmatprep.subr.mxu0 %v2821
        %3309 = vmatpush1.msra.mxu0 %v2820
        %3310 = vmatprep.subr.mxu0 %v2814
        %3311 = vmatpush1.msra.mxu0 %v2813
        %3312 = vmatprep.subr.mxu0 %v2807
        %3313 = vmatpush1.msra.mxu0 %v2806
        %3314 = vmatprep.subr.mxu0 %v2800
        %3315 = vmatpush1.msra.mxu0 %v2799
        %3316 = vmatprep.subr.mxu0 %v2793
        %3317 = vmatpush1.msra.mxu0 %v2792
        %3318 = vmatprep.subr.mxu0 %v2786
        %3319 = vmatpush1.msra.mxu0 %v2785
        %3320 = vmatprep.subr.mxu0 %v2779
        %3321 = vmatpush1.msra.mxu0 %v2778
        %3322 = vmatprep.subr.mxu0 %v2772
        %3323 = vmatpush1.msra.mxu0 %v2771
        %3324 = vmatprep.subr.mxu0 %v2765
        %3325 = vmatpush1.msra.mxu0 %v2764
        %3326 = vmatprep.subr.mxu0 %v2982
        %3327 = vmatpush2.msra.mxu0 %v2981
        %3328 = vmatprep.subr.mxu0 %v2975
        %3329 = vmatpush2.msra.mxu0 %v2974
        %3330 = vmatprep.subr.mxu0 %v2968
        %3331 = vmatpush2.msra.mxu0 %v2967
        %3332 = vmatprep.subr.mxu0 %v2961
        %3333 = vmatpush2.msra.mxu0 %v2960
        %3334 = vmatprep.subr.mxu0 %v2954
        %3335 = vmatpush2.msra.mxu0 %v2953
        %3336 = vmatprep.subr.mxu0 %v2947
        %3337 = vmatpush2.msra.mxu0 %v2946
        %3338 = vmatprep.subr.mxu0 %v2940
        %3339 = vmatpush2.msra.mxu0 %v2939
        %3340 = vmatprep.subr.mxu0 %v2933
        %3341 = vmatpush2.msra.mxu0 %v2932
        %3342 = vmatprep.subr.mxu0 %v2926
        %3343 = vmatpush2.msra.mxu0 %v2925
        %3344 = vmatprep.subr.mxu0 %v2919
        %3345 = vmatpush2.msra.mxu0 %v2918
        %3346 = vmatprep.subr.mxu0 %v2912
        %3347 = vmatpush2.msra.mxu0 %v2911
        %3348 = vmatprep.subr.mxu0 %v2905
        %3349 = vmatpush2.msra.mxu0 %v2904
        %3350 = vmatprep.subr.mxu0 %v2898
        %3351 = vmatpush2.msra.mxu0 %v2897
        %3352 = vmatprep.subr.mxu0 %v2891
        %3353 = vmatpush2.msra.mxu0 %v2890
        %3354 = vmatprep.subr.mxu0 %v2884
        %3355 = vmatpush2.msra.mxu0 %v2883
        %3356 = vmatprep.subr.mxu0 %v2877
        %3357 = vmatpush2.msra.mxu0 %v2876
        %3358 = vmatprep.mubr.f32.mxu0 %v2759
        %3359 = vmatmul.mubr.f32.gmra.mxu0 %v2758
        %v3360 = vpop.f32.mrf.mxu0
        %v3361 = vadd.f32 %v3125, %v3360
        %v3362 = vpop.f32.mrf.mxu0
        %v3363 = vadd.f32 %v3129, %v3362
        %3364 = vdwg.mxu0
        %3365 = vmatprep.subr.mxu0 %v3094
        %3366 = vmatpush1.msra.mxu0 %v3093
        %3367 = vmatprep.subr.mxu0 %v3087
        %3368 = vmatpush1.msra.mxu0 %v3086
        %3369 = vmatprep.subr.mxu0 %v3080
        %3370 = vmatpush1.msra.mxu0 %v3079
        %3371 = vmatprep.subr.mxu0 %v3073
        %3372 = vmatpush1.msra.mxu0 %v3072
        %3373 = vmatprep.subr.mxu0 %v3066
        %3374 = vmatpush1.msra.mxu0 %v3065
        %3375 = vmatprep.subr.mxu0 %v3059
        %3376 = vmatpush1.msra.mxu0 %v3058
        %3377 = vmatprep.subr.mxu0 %v3052
        %3378 = vmatpush1.msra.mxu0 %v3051
        %3379 = vmatprep.subr.mxu0 %v3045
        %3380 = vmatpush1.msra.mxu0 %v3044
        %3381 = vmatprep.subr.mxu0 %v3038
        %3382 = vmatpush1.msra.mxu0 %v3037
        %3383 = vmatprep.subr.mxu0 %v3031
        %3384 = vmatpush1.msra.mxu0 %v3030
        %3385 = vmatprep.subr.mxu0 %v3024
        %3386 = vmatpush1.msra.mxu0 %v3023
        %3387 = vmatprep.subr.mxu0 %v3017
        %3388 = vmatpush1.msra.mxu0 %v3016
        %3389 = vmatprep.subr.mxu0 %v3010
        %3390 = vmatpush1.msra.mxu0 %v3009
        %3391 = vmatprep.subr.mxu0 %v3003
        %3392 = vmatpush1.msra.mxu0 %v3002
        %3393 = vmatprep.subr.mxu0 %v2996
        %3394 = vmatpush1.msra.mxu0 %v2995
        %3395 = vmatprep.subr.mxu0 %v2989
        %3396 = vmatpush1.msra.mxu0 %v2988
        %3397 = vmatprep.subr.mxu0 0.0
        %3398 = vmatpush2.msra.mxu0 0.0
        %3399 = vmatprep.subr.mxu0 0.0
        %3400 = vmatpush2.msra.mxu0 0.0
        %3401 = vmatprep.subr.mxu0 0.0
        %3402 = vmatpush2.msra.mxu0 0.0
        %3403 = vmatprep.subr.mxu0 0.0
        %3404 = vmatpush2.msra.mxu0 0.0
        %3405 = vmatprep.subr.mxu0 0.0
        %3406 = vmatpush2.msra.mxu0 0.0
        %3407 = vmatprep.subr.mxu0 0.0
        %3408 = vmatpush2.msra.mxu0 0.0
        %3409 = vmatprep.subr.mxu0 0.0
        %3410 = vmatpush2.msra.mxu0 0.0
        %3411 = vmatprep.subr.mxu0 0.0
        %3412 = vmatpush2.msra.mxu0 0.0
        %3413 = vmatprep.subr.mxu0 0.0
        %3414 = vmatpush2.msra.mxu0 0.0
        %3415 = vmatprep.subr.mxu0 0.0
        %3416 = vmatpush2.msra.mxu0 0.0
        %3417 = vmatprep.subr.mxu0 0.0
        %3418 = vmatpush2.msra.mxu0 0.0
        %3419 = vmatprep.subr.mxu0 0.0
        %3420 = vmatpush2.msra.mxu0 0.0
        %3421 = vmatprep.subr.mxu0 0.0
        %3422 = vmatpush2.msra.mxu0 0.0
        %3423 = vmatprep.subr.mxu0 0.0
        %3424 = vmatpush2.msra.mxu0 0.0
        %3425 = vmatprep.subr.mxu0 %v3108
        %3426 = vmatpush2.msra.mxu0 %v3107
        %3427 = vmatprep.subr.mxu0 %v3101
        %3428 = vmatpush2.msra.mxu0 %v3100
        %3429 = vmatprep.mubr.f32.mxu0 %v3150
        %3430 = vmatmul.mubr.f32.gmra.mxu0 %v2760
        %v3431 = vpop.f32.mrf.mxu0
        %v3432 = vadd.f32 %v3361, %v3431
        %v3433 = vpop.f32.mrf.mxu0
        %v3434 = vadd.f32 %v3363, %v3433
        %3435 = vdwg.mxu0
        %3436 = vmatprep.subr.mxu0 %v2872
        %3437 = vmatpush1.msra.mxu0 %v2871
        %3438 = vmatprep.subr.mxu0 %v2865
        %3439 = vmatpush1.msra.mxu0 %v2864
        %3440 = vmatprep.subr.mxu0 %v2858
        %3441 = vmatpush1.msra.mxu0 %v2857
        %3442 = vmatprep.subr.mxu0 %v2851
        %3443 = vmatpush1.msra.mxu0 %v2850
        %3444 = vmatprep.subr.mxu0 %v2844
        %3445 = vmatpush1.msra.mxu0 %v2843
        %3446 = vmatprep.subr.mxu0 %v2837
        %3447 = vmatpush1.msra.mxu0 %v2836
        %3448 = vmatprep.subr.mxu0 %v2830
        %3449 = vmatpush1.msra.mxu0 %v2829
        %3450 = vmatprep.subr.mxu0 %v2823
        %3451 = vmatpush1.msra.mxu0 %v2822
        %3452 = vmatprep.subr.mxu0 %v2816
        %3453 = vmatpush1.msra.mxu0 %v2815
        %3454 = vmatprep.subr.mxu0 %v2809
        %3455 = vmatpush1.msra.mxu0 %v2808
        %3456 = vmatprep.subr.mxu0 %v2802
        %3457 = vmatpush1.msra.mxu0 %v2801
        %3458 = vmatprep.subr.mxu0 %v2795
        %3459 = vmatpush1.msra.mxu0 %v2794
        %3460 = vmatprep.subr.mxu0 %v2788
        %3461 = vmatpush1.msra.mxu0 %v2787
        %3462 = vmatprep.subr.mxu0 %v2781
        %3463 = vmatpush1.msra.mxu0 %v2780
        %3464 = vmatprep.subr.mxu0 %v2774
        %3465 = vmatpush1.msra.mxu0 %v2773
        %3466 = vmatprep.subr.mxu0 %v2767
        %3467 = vmatpush1.msra.mxu0 %v2766
        %3468 = vmatprep.subr.mxu0 %v2984
        %3469 = vmatpush2.msra.mxu0 %v2983
        %3470 = vmatprep.subr.mxu0 %v2977
        %3471 = vmatpush2.msra.mxu0 %v2976
        %3472 = vmatprep.subr.mxu0 %v2970
        %3473 = vmatpush2.msra.mxu0 %v2969
        %3474 = vmatprep.subr.mxu0 %v2963
        %3475 = vmatpush2.msra.mxu0 %v2962
        %3476 = vmatprep.subr.mxu0 %v2956
        %3477 = vmatpush2.msra.mxu0 %v2955
        %3478 = vmatprep.subr.mxu0 %v2949
        %3479 = vmatpush2.msra.mxu0 %v2948
        %3480 = vmatprep.subr.mxu0 %v2942
        %3481 = vmatpush2.msra.mxu0 %v2941
        %3482 = vmatprep.subr.mxu0 %v2935
        %3483 = vmatpush2.msra.mxu0 %v2934
        %3484 = vmatprep.subr.mxu0 %v2928
        %3485 = vmatpush2.msra.mxu0 %v2927
        %3486 = vmatprep.subr.mxu0 %v2921
        %3487 = vmatpush2.msra.mxu0 %v2920
        %3488 = vmatprep.subr.mxu0 %v2914
        %3489 = vmatpush2.msra.mxu0 %v2913
        %3490 = vmatprep.subr.mxu0 %v2907
        %3491 = vmatpush2.msra.mxu0 %v2906
        %3492 = vmatprep.subr.mxu0 %v2900
        %3493 = vmatpush2.msra.mxu0 %v2899
        %3494 = vmatprep.subr.mxu0 %v2893
        %3495 = vmatpush2.msra.mxu0 %v2892
        %3496 = vmatprep.subr.mxu0 %v2886
        %3497 = vmatpush2.msra.mxu0 %v2885
        %3498 = vmatprep.subr.mxu0 %v2879
        %3499 = vmatpush2.msra.mxu0 %v2878
        %3500 = vmatprep.mubr.f32.mxu0 %v2759
        %3501 = vmatmul.mubr.f32.gmra.mxu0 %v2758
        %v3502 = vpop.f32.mrf.mxu0
        %v3503 = vadd.f32 %v3133, %v3502
        %v3504 = vpop.f32.mrf.mxu0
        %v3505 = vadd.f32 %v3137, %v3504
        %3506 = vdwg.mxu0
        %3507 = vmatprep.subr.mxu0 %v3096
        %3508 = vmatpush1.msra.mxu0 %v3095
        %3509 = vmatprep.subr.mxu0 %v3089
        %3510 = vmatpush1.msra.mxu0 %v3088
        %3511 = vmatprep.subr.mxu0 %v3082
        %3512 = vmatpush1.msra.mxu0 %v3081
        %3513 = vmatprep.subr.mxu0 %v3075
        %3514 = vmatpush1.msra.mxu0 %v3074
        %3515 = vmatprep.subr.mxu0 %v3068
        %3516 = vmatpush1.msra.mxu0 %v3067
        %3517 = vmatprep.subr.mxu0 %v3061
        %3518 = vmatpush1.msra.mxu0 %v3060
        %3519 = vmatprep.subr.mxu0 %v3054
        %3520 = vmatpush1.msra.mxu0 %v3053
        %3521 = vmatprep.subr.mxu0 %v3047
        %3522 = vmatpush1.msra.mxu0 %v3046
        %3523 = vmatprep.subr.mxu0 %v3040
        %3524 = vmatpush1.msra.mxu0 %v3039
        %3525 = vmatprep.subr.mxu0 %v3033
        %3526 = vmatpush1.msra.mxu0 %v3032
        %3527 = vmatprep.subr.mxu0 %v3026
        %3528 = vmatpush1.msra.mxu0 %v3025
        %3529 = vmatprep.subr.mxu0 %v3019
        %3530 = vmatpush1.msra.mxu0 %v3018
        %3531 = vmatprep.subr.mxu0 %v3012
        %3532 = vmatpush1.msra.mxu0 %v3011
        %3533 = vmatprep.subr.mxu0 %v3005
        %3534 = vmatpush1.msra.mxu0 %v3004
        %3535 = vmatprep.subr.mxu0 %v2998
        %3536 = vmatpush1.msra.mxu0 %v2997
        %3537 = vmatprep.subr.mxu0 %v2991
        %3538 = vmatpush1.msra.mxu0 %v2990
        %3539 = vmatprep.subr.mxu0 0.0
        %3540 = vmatpush2.msra.mxu0 0.0
        %3541 = vmatprep.subr.mxu0 0.0
        %3542 = vmatpush2.msra.mxu0 0.0
        %3543 = vmatprep.subr.mxu0 0.0
        %3544 = vmatpush2.msra.mxu0 0.0
        %3545 = vmatprep.subr.mxu0 0.0
        %3546 = vmatpush2.msra.mxu0 0.0
        %3547 = vmatprep.subr.mxu0 0.0
        %3548 = vmatpush2.msra.mxu0 0.0
        %3549 = vmatprep.subr.mxu0 0.0
        %3550 = vmatpush2.msra.mxu0 0.0
        %3551 = vmatprep.subr.mxu0 0.0
        %3552 = vmatpush2.msra.mxu0 0.0
        %3553 = vmatprep.subr.mxu0 0.0
        %3554 = vmatpush2.msra.mxu0 0.0
        %3555 = vmatprep.subr.mxu0 0.0
        %3556 = vmatpush2.msra.mxu0 0.0
        %3557 = vmatprep.subr.mxu0 0.0
        %3558 = vmatpush2.msra.mxu0 0.0
        %3559 = vmatprep.subr.mxu0 0.0
        %3560 = vmatpush2.msra.mxu0 0.0
        %3561 = vmatprep.subr.mxu0 0.0
        %3562 = vmatpush2.msra.mxu0 0.0
        %3563 = vmatprep.subr.mxu0 0.0
        %3564 = vmatpush2.msra.mxu0 0.0
        %3565 = vmatprep.subr.mxu0 0.0
        %3566 = vmatpush2.msra.mxu0 0.0
        %3567 = vmatprep.subr.mxu0 %v3110
        %3568 = vmatpush2.msra.mxu0 %v3109
        %3569 = vmatprep.subr.mxu0 %v3103
        %3570 = vmatpush2.msra.mxu0 %v3102
        %3571 = vmatprep.mubr.f32.mxu0 %v3150
        %3572 = vmatmul.mubr.f32.gmra.mxu0 %v2760
        %v3573 = vpop.f32.mrf.mxu0
        %v3574 = vadd.f32 %v3503, %v3573
        %v3575 = vpop.f32.mrf.mxu0
        %v3576 = vadd.f32 %v3505, %v3575
        %3577 = vdwg.mxu0
        %3578 = vmatprep.subr.mxu0 0.0
        %3579 = vmatpush1.msra.mxu0 %v2873
        %3580 = vmatprep.subr.mxu0 0.0
        %3581 = vmatpush1.msra.mxu0 %v2866
        %3582 = vmatprep.subr.mxu0 0.0
        %3583 = vmatpush1.msra.mxu0 %v2859
        %3584 = vmatprep.subr.mxu0 0.0
        %3585 = vmatpush1.msra.mxu0 %v2852
        %3586 = vmatprep.subr.mxu0 0.0
        %3587 = vmatpush1.msra.mxu0 %v2845
        %3588 = vmatprep.subr.mxu0 0.0
        %3589 = vmatpush1.msra.mxu0 %v2838
        %3590 = vmatprep.subr.mxu0 0.0
        %3591 = vmatpush1.msra.mxu0 %v2831
        %3592 = vmatprep.subr.mxu0 0.0
        %3593 = vmatpush1.msra.mxu0 %v2824
        %3594 = vmatprep.subr.mxu0 0.0
        %3595 = vmatpush1.msra.mxu0 %v2817
        %3596 = vmatprep.subr.mxu0 0.0
        %3597 = vmatpush1.msra.mxu0 %v2810
        %3598 = vmatprep.subr.mxu0 0.0
        %3599 = vmatpush1.msra.mxu0 %v2803
        %3600 = vmatprep.subr.mxu0 0.0
        %3601 = vmatpush1.msra.mxu0 %v2796
        %3602 = vmatprep.subr.mxu0 0.0
        %3603 = vmatpush1.msra.mxu0 %v2789
        %3604 = vmatprep.subr.mxu0 0.0
        %3605 = vmatpush1.msra.mxu0 %v2782
        %3606 = vmatprep.subr.mxu0 0.0
        %3607 = vmatpush1.msra.mxu0 %v2775
        %3608 = vmatprep.subr.mxu0 0.0
        %3609 = vmatpush1.msra.mxu0 %v2768
        %3610 = vmatprep.subr.mxu0 0.0
        %3611 = vmatpush2.msra.mxu0 %v2985
        %3612 = vmatprep.subr.mxu0 0.0
        %3613 = vmatpush2.msra.mxu0 %v2978
        %3614 = vmatprep.subr.mxu0 0.0
        %3615 = vmatpush2.msra.mxu0 %v2971
        %3616 = vmatprep.subr.mxu0 0.0
        %3617 = vmatpush2.msra.mxu0 %v2964
        %3618 = vmatprep.subr.mxu0 0.0
        %3619 = vmatpush2.msra.mxu0 %v2957
        %3620 = vmatprep.subr.mxu0 0.0
        %3621 = vmatpush2.msra.mxu0 %v2950
        %3622 = vmatprep.subr.mxu0 0.0
        %3623 = vmatpush2.msra.mxu0 %v2943
        %3624 = vmatprep.subr.mxu0 0.0
        %3625 = vmatpush2.msra.mxu0 %v2936
        %3626 = vmatprep.subr.mxu0 0.0
        %3627 = vmatpush2.msra.mxu0 %v2929
        %3628 = vmatprep.subr.mxu0 0.0
        %3629 = vmatpush2.msra.mxu0 %v2922
        %3630 = vmatprep.subr.mxu0 0.0
        %3631 = vmatpush2.msra.mxu0 %v2915
        %3632 = vmatprep.subr.mxu0 0.0
        %3633 = vmatpush2.msra.mxu0 %v2908
        %3634 = vmatprep.subr.mxu0 0.0
        %3635 = vmatpush2.msra.mxu0 %v2901
        %3636 = vmatprep.subr.mxu0 0.0
        %3637 = vmatpush2.msra.mxu0 %v2894
        %3638 = vmatprep.subr.mxu0 0.0
        %3639 = vmatpush2.msra.mxu0 %v2887
        %3640 = vmatprep.subr.mxu0 0.0
        %3641 = vmatpush2.msra.mxu0 %v2880
        %3642 = vmatprep.mubr.f32.mxu0 %v2759
        %3643 = vmatmul.mubr.f32.gmra.mxu0 %v2758
        %v3644 = vpop.f32.mrf.mxu0
        %v3645 = vadd.f32 %v3141, %v3644
        %v3646 = vpop.f32.mrf.mxu0
        %3647 = vdwg.mxu0
        %3648 = vmatprep.subr.mxu0 0.0
        %3649 = vmatpush1.msra.mxu0 %v3097
        %3650 = vmatprep.subr.mxu0 0.0
        %3651 = vmatpush1.msra.mxu0 %v3090
        %3652 = vmatprep.subr.mxu0 0.0
        %3653 = vmatpush1.msra.mxu0 %v3083
        %3654 = vmatprep.subr.mxu0 0.0
        %3655 = vmatpush1.msra.mxu0 %v3076
        %3656 = vmatprep.subr.mxu0 0.0
        %3657 = vmatpush1.msra.mxu0 %v3069
        %3658 = vmatprep.subr.mxu0 0.0
        %3659 = vmatpush1.msra.mxu0 %v3062
        %3660 = vmatprep.subr.mxu0 0.0
        %3661 = vmatpush1.msra.mxu0 %v3055
        %3662 = vmatprep.subr.mxu0 0.0
        %3663 = vmatpush1.msra.mxu0 %v3048
        %3664 = vmatprep.subr.mxu0 0.0
        %3665 = vmatpush1.msra.mxu0 %v3041
        %3666 = vmatprep.subr.mxu0 0.0
        %3667 = vmatpush1.msra.mxu0 %v3034
        %3668 = vmatprep.subr.mxu0 0.0
        %3669 = vmatpush1.msra.mxu0 %v3027
        %3670 = vmatprep.subr.mxu0 0.0
        %3671 = vmatpush1.msra.mxu0 %v3020
        %3672 = vmatprep.subr.mxu0 0.0
        %3673 = vmatpush1.msra.mxu0 %v3013
        %3674 = vmatprep.subr.mxu0 0.0
        %3675 = vmatpush1.msra.mxu0 %v3006
        %3676 = vmatprep.subr.mxu0 0.0
        %3677 = vmatpush1.msra.mxu0 %v2999
        %3678 = vmatprep.subr.mxu0 0.0
        %3679 = vmatpush1.msra.mxu0 %v2992
        %3680 = vmatprep.subr.mxu0 0.0
        %3681 = vmatpush2.msra.mxu0 0.0
        %3682 = vmatprep.subr.mxu0 0.0
        %3683 = vmatpush2.msra.mxu0 0.0
        %3684 = vmatprep.subr.mxu0 0.0
        %3685 = vmatpush2.msra.mxu0 0.0
        %3686 = vmatprep.subr.mxu0 0.0
        %3687 = vmatpush2.msra.mxu0 0.0
        %3688 = vmatprep.subr.mxu0 0.0
        %3689 = vmatpush2.msra.mxu0 0.0
        %3690 = vmatprep.subr.mxu0 0.0
        %3691 = vmatpush2.msra.mxu0 0.0
        %3692 = vmatprep.subr.mxu0 0.0
        %3693 = vmatpush2.msra.mxu0 0.0
        %3694 = vmatprep.subr.mxu0 0.0
        %3695 = vmatpush2.msra.mxu0 0.0
        %3696 = vmatprep.subr.mxu0 0.0
        %3697 = vmatpush2.msra.mxu0 0.0
        %3698 = vmatprep.subr.mxu0 0.0
        %3699 = vmatpush2.msra.mxu0 0.0
        %3700 = vmatprep.subr.mxu0 0.0
        %3701 = vmatpush2.msra.mxu0 0.0
        %3702 = vmatprep.subr.mxu0 0.0
        %3703 = vmatpush2.msra.mxu0 0.0
        %3704 = vmatprep.subr.mxu0 0.0
        %3705 = vmatpush2.msra.mxu0 0.0
        %3706 = vmatprep.subr.mxu0 0.0
        %3707 = vmatpush2.msra.mxu0 0.0
        %3708 = vmatprep.subr.mxu0 0.0
        %3709 = vmatpush2.msra.mxu0 %v3111
        %3710 = vmatprep.subr.mxu0 0.0
        %3711 = vmatpush2.msra.mxu0 %v3104
        %3712 = vmatprep.mubr.f32.mxu0 %v3150
        %3713 = vmatmul.mubr.f32.gmra.mxu0 %v2760
        %v3714 = vpop.f32.mrf.mxu0
        %v3715 = vadd.f32 %v3645, %v3714
        %v3716 = vpop.f32.mrf.mxu0
        %3717 = vdwg.mxu0
        %v3718 = vsub.f32 0.0, %v3290
        %v3719 = vsub.f32 0.0, %v3292
        %v3720 = vsub.f32 0.0, %v3432
        %v3721 = vsub.f32 0.0, %v3434
        %v3722 = vsub.f32 0.0, %v3574
        %v3723 = vsub.f32 0.0, %v3576
        %v3724 = vsub.f32 0.0, %v3715
        %v3725 = vmul.f32 %v3718, 1.442695
        %v3726 = vpow.pop %v3725
        %v3727 = vmul.f32 %v3719, 1.442695
        %v3728 = vpow.pop %v3727
        %v3729 = vmul.f32 %v3720, 1.442695
        %v3730 = vpow.pop %v3729
        %v3731 = vmul.f32 %v3721, 1.442695
        %v3732 = vpow.pop %v3731
        %v3733 = vmul.f32 %v3722, 1.442695
        %v3734 = vpow.pop %v3733
        %v3735 = vmul.f32 %v3723, 1.442695
        %v3736 = vpow.pop %v3735
        %v3737 = vmul.f32 %v3724, 1.442695
        %v3738 = vpow.pop %v3737
        %v3739 = vadd.f32 %v3726, 1.0
        %v3740 = vadd.f32 %v3728, 1.0
        %v3741 = vadd.f32 %v3730, 1.0
        %v3742 = vadd.f32 %v3732, 1.0
        %v3743 = vadd.f32 %v3734, 1.0
        %v3744 = vadd.f32 %v3736, 1.0
        %v3745 = vadd.f32 %v3738, 1.0
        %v3746 = vrcp.pop %v3739
        %v3747 = vmul.f32 1.0, %v3746
        %v3748 = vrcp.pop %v3740
        %v3749 = vmul.f32 1.0, %v3748
        %v3750 = vrcp.pop %v3741
        %v3751 = vmul.f32 1.0, %v3750
        %v3752 = vrcp.pop %v3742
        %v3753 = vmul.f32 1.0, %v3752
        %v3754 = vrcp.pop %v3743
        %v3755 = vmul.f32 1.0, %v3754
        %v3756 = vrcp.pop %v3744
        %v3757 = vmul.f32 1.0, %v3756
        %v3758 = vrcp.pop %v3745
        %v3759 = vmul.f32 1.0, %v3758
        %3760 = vst [vmem:[%s693] sm:$0xff] %v3747
        %3761 = vst [vmem:[%s693 + $0x8] sm:$0xff] %v3749
        %3762 = vst [vmem:[%s693 + $0x10] sm:$0xff] %v3751
        %3763 = vst [vmem:[%s693 + $0x18] sm:$0xff] %v3753
        %3764 = vst [vmem:[%s693 + $0x20] sm:$0xff] %v3755
        %3765 = vst [vmem:[%s693 + $0x28] sm:$0xff] %v3757
        %3766 = vst.msk [vmem:[%s693 + $0x30] sm:$0xff] %vm1138, %v3759
        %3767 = vst.msk [vmem:[%s700] sm:$0xff] %vm2293, %v2175
        %3768 = vst.msk [vmem:[%s707] sm:$0xff] %vm2293, %v2268
        %s3769 = sand.u32 %s478, 1
        %s3770 = scalar_lea.sflag [#allocation3], %s3769
        %s3771 = sand.u32 %s478, 1
        %s3772 = smul.addr %s3771, 56
        %s3773 = scalar_lea.vmem [#allocation2], %s3772
        %s3774 = sand.u32 %s40, 1
        %s3775 = scalar_lea.sflag [#allocation5], %s3774
        %s3776 = sand.u32 %s504, 1
        %s3777 = smul.addr %s3776, 8
        %s3778 = scalar_lea.vmem [#allocation4], %s3777
        %s3779 = sand.u32 %s40, 1
        %s3780 = scalar_lea.sflag [#allocation5], %s3779
        %s3781 = sand.u32 %s530, 1
        %s3782 = smul.addr %s3781, 8
        %s3783 = scalar_lea.vmem [#allocation6], %s3782
        // Predicated region
        $region101: #{tpu_custom_call.1} parent=99 // pred_check
          %p3784 = pneg %p488
        $region102: #{tpu_custom_call.1} parent=99 // pred_check_branch
          %3786 = sbr.rel (%p3784) target = $region104
        $region103: #{tpu_custom_call.1} parent=99 // pred_region
          %s3788 = ssub.s32 896, 896
          %3789 = vsyncadd %s3770, %s3788
          %s3790 = smul.addr %s40, 7
          %s3791 = smul.addr %s3790, 128
          %s3792 = scalar_lea.hbm %s20, %s3791
          %s3794 = sshll.u32 %s3773, 4
          %s3795 = int_to_ptr.vmem [resolvable:$true] %s3794
          %3797 = dma.vmem_to_hbm [thread:$0]  %s3795, 896, %s3792, %s3770
        $region104: #{tpu_custom_call.1} parent=99 // pred_fallthru
          _
        // Predicated region
        $region105: #{tpu_custom_call.1} parent=99 // pred_check
          %p3798 = pneg %p514
        $region106: #{tpu_custom_call.1} parent=99 // pred_check_branch
          %3800 = sbr.rel (%p3798) target = $region108
        $region107: #{tpu_custom_call.1} parent=99 // pred_region
          %s3802 = ssub.s32 128, 128
          %3803 = vsyncadd %s3775, %s3802
          %s3804 = smul.addr %s40, 128
          %s3805 = scalar_lea.hbm %s21, %s3804
          %s3807 = sshll.u32 %s3778, 4
          %s3808 = int_to_ptr.vmem [resolvable:$true] %s3807
          %3810 = dma.vmem_to_hbm [thread:$0]  %s3808, 128, %s3805, %s3775
        $region108: #{tpu_custom_call.1} parent=99 // pred_fallthru
          _
        // Predicated region
        $region109: #{tpu_custom_call.1} parent=99 // pred_check
          %p3811 = pneg %p540
        $region110: #{tpu_custom_call.1} parent=99 // pred_check_branch
          %3813 = sbr.rel (%p3811) target = $region112
        $region111: #{tpu_custom_call.1} parent=99 // pred_region
          %s3815 = ssub.s32 128, 128
          %3816 = vsyncadd %s3780, %s3815
          %s3817 = smul.addr %s40, 128
          %s3818 = scalar_lea.hbm %s22, %s3817
          %s3820 = sshll.u32 %s3783, 4
          %s3821 = int_to_ptr.vmem [resolvable:$true] %s3820
          %3823 = dma.vmem_to_hbm [thread:$0]  %s3821, 128, %s3818, %s3780
        $region112: #{tpu_custom_call.1} parent=99 // pred_fallthru
          _
      $region100: #{tpu_custom_call.1} parent=5 // pred_fallthru
        _
      %p3824 = scmp.le.s32.totalorder 2, %s35
      // Predicated region
      $region113: #{tpu_custom_call.1} parent=5 // pred_check
        %p3825 = pneg %p3824
      $region114: #{tpu_custom_call.1} parent=5 // pred_check_branch
        %3827 = sbr.rel (%p3825) target = $region116
      $region115: #{tpu_custom_call.1} parent=5 // pred_region
        %s3828 = ssub.s32 %s35, 2
        // Predicated region
        $region117: #{tpu_custom_call.1} parent=115 // pred_check
          %p3829 = pneg %p494
        $region118: #{tpu_custom_call.1} parent=115 // pred_check_branch
          %3831 = sbr.rel (%p3829) target = $region120
        $region119: #{tpu_custom_call.1} parent=115 // pred_region
          %s3832 = sand.u32 %s479, 1
          %s3833 = scalar_lea.sflag [#allocation3], %s3832
          %s3834 = sand.u32 %s479, 1
          %s3835 = smul.addr %s3834, 56
          %s3836 = scalar_lea.vmem [#allocation2], %s3835
          %3837 = dma.done %s3833, 896
        $region120: #{tpu_custom_call.1} parent=115 // pred_fallthru
          _
        // Predicated region
        $region121: #{tpu_custom_call.1} parent=115 // pred_check
          %p3838 = pneg %p520
        $region122: #{tpu_custom_call.1} parent=115 // pred_check_branch
          %3840 = sbr.rel (%p3838) target = $region124
        $region123: #{tpu_custom_call.1} parent=115 // pred_region
          %s3841 = sand.u32 %s41, 1
          %s3842 = scalar_lea.sflag [#allocation5], %s3841
          %s3843 = sand.u32 %s505, 1
          %s3844 = smul.addr %s3843, 8
          %s3845 = scalar_lea.vmem [#allocation4], %s3844
          %3846 = dma.done %s3842, 128
        $region124: #{tpu_custom_call.1} parent=115 // pred_fallthru
          _
        // Predicated region
        $region125: #{tpu_custom_call.1} parent=115 // pred_check
          %p3847 = pneg %p546
        $region126: #{tpu_custom_call.1} parent=115 // pred_check_branch
          %3849 = sbr.rel (%p3847) target = $region128
        $region127: #{tpu_custom_call.1} parent=115 // pred_region
          %s3850 = sand.u32 %s41, 1
          %s3851 = scalar_lea.sflag [#allocation5], %s3850
          %s3852 = sand.u32 %s531, 1
          %s3853 = smul.addr %s3852, 8
          %s3854 = scalar_lea.vmem [#allocation6], %s3853
          %3855 = dma.done %s3851, 128
        $region128: #{tpu_custom_call.1} parent=115 // pred_fallthru
          _
      $region116: #{tpu_custom_call.1} parent=5 // pred_fallthru
        _
    $region6: #{tpu_custom_call.1} parent=1 // loop_footer
      %s39 = sadd.s32 1, %s35
    $region7: #{tpu_custom_call.1} parent=1 // loop_footer_branch
      %34 = sbr.rel target = $region3
    $region8: #{tpu_custom_call.1} parent=1 // loop_exit
      _
    %3856 = vsyncpa [#allocation3], 1
    %s3857 = scalar_lea.sflag [#allocation3], 1
    %3858 = vsyncpa %s3857, 1
    %3859 = vsyncpa [#allocation5], 1
    %s3860 = scalar_lea.sflag [#allocation5], 1
    %3861 = vsyncpa %s3860, 1

</llo_original>
